<compile_context>
chip_gen: v7x
topology: tpu7x:2x2x1
jax: 0.10.0
libtpu: 0.0.40
codegen_flags: <defaults>
</compile_context>

<pallas_src>
import jax
import jax.numpy as jnp
from jax.experimental import pallas as pl
from jax.experimental.pallas import tpu as pltpu


# ----------------------- static problem geometry ---------------------------
H = W = 10                          # snake board
HP, WP = H + 2, W + 2               # zero-padded image (12, 12)
NPIX = HP * WP                      # 144 padded pixels, flattened row-major
L = (H - 1) * WP + W                # 118 rows of the pitch-WP conv-out buffer
LM = (H - 2) * WP + (W - 2) + 1     # 105 rows touched by the 2x2 pool max
HPO, WPO = H // 2, W // 2           # 5, 5
NPOS = HPO * WPO                    # 25 pooled spatial positions
CPAD = 128                          # conv channels, lane-padded 40 -> 128
NPAD = 128                          # RNN "batch" rows, lane-padded 10 -> 128
NROW = (40 * NPOS) // 100           # 10 rows of x.view(1, -1, 100)
CGRP = 100 // NPOS                  # 4 conv channels per RNN row

# Fail loudly for board sizes the view(1,-1,100) trick cannot support.
assert H % 2 == 0 and W % 2 == 0
assert 100 % NPOS == 0 and (40 * NPOS) % 100 == 0 and CGRP * NROW == 40


# ----------------------------- fused kernel --------------------------------

def _fused_kernel(xpad_ref, mask_ref, w1_ref, b1_ref, w2_ref, b2_ref,
                  gpool_ref, sel_ref, wih_ref, brnn_ref, wout_ref, bout_ref,
                  out_ref, a1pad_ref, relu2_ref):
    """Entire ModelCNNR forward in one invocation; all intermediates in VMEM."""

    # ---- Conv2d(1->40, 3x3, pad=1) + ReLU : 9 shifted broadcast-MACs (VPU) --
    acc1 = jnp.zeros((L, CPAD), jnp.float32)
    for ky in range(3):
        for kx in range(3):
            off = ky * WP + kx
            tap = ky * 3 + kx
            acc1 = acc1 + xpad_ref[off:off + L, :] * w1_ref[tap:tap + 1, :]
    # mask zeroes the two junk columns of the pitch-WP buffer so they can
    # double as conv2's zero padding.
    a1 = jnp.maximum(acc1 + b1_ref[...], 0.0) * mask_ref[...]

    # Stage conv1's output into the interior of a zero-padded flat image so
    # conv2 reads its 9 shifted windows straight out of VMEM (no im2col).
    a1pad_ref[...] = jnp.zeros((NPIX, CPAD), jnp.float32)
    a1pad_ref[WP + 1:WP + 1 + L, :] = a1

    # ---- Conv2d(40->40, 3x3, pad=1) + ReLU : 9 shifted MXU matmuls ----------
    acc2 = jnp.zeros((L, CPAD), jnp.float32)
    for ky in range(3):
        for kx in range(3):
            off = ky * WP + kx
            tap = ky * 3 + kx
            acc2 = acc2 + jnp.dot(a1pad_ref[off:off + L, :], w2_ref[tap],
                                  preferred_element_type=jnp.float32)
    relu2_ref[0:L, :] = jnp.maximum(acc2 + b2_ref[...], 0.0)

    # ---- MaxPool2d(2,2): per-lane max of the 4 window taps (VPU), then ------
    #      gather of the 25 pooled positions with a constant 0/1 matmul (MXU).
    m = jnp.maximum(
        jnp.maximum(relu2_ref[0:LM, :], relu2_ref[1:1 + LM, :]),
        jnp.maximum(relu2_ref[WP:WP + LM, :], relu2_ref[WP + 1:WP + 1 + LM, :]))
    pooled = jnp.dot(gpool_ref[...], m,
                     preferred_element_type=jnp.float32)        # (25, 128)

    # ---- x.view(1,-1,100) + RNN(100,100) single step (h0=0) + Linear(100,3) -
    # Transposed formulation:
    #   h^T = tanh( sum_g W_ih[:, 25g:25g+25] @ P_g + (b_ih+b_hh) )
    # with P_g[s, n] = pooled[s, 4n+g] built via constant 0/1 selection
    # matmuls, so the CHW flatten never needs an in-kernel transpose.
    hT = jnp.zeros((100, NPAD), jnp.float32)
    for g in range(CGRP):
        p_g = jnp.dot(pooled, sel_ref[g],
                      preferred_element_type=jnp.float32)       # (25, 128)
        hT = hT + jnp.dot(wih_ref[g], p_g,
                          preferred_element_type=jnp.float32)   # (100, 128)
    hT = jnp.tanh(hT + brnn_ref[...])
    out_ref[...] = (jnp.dot(wout_ref[...], hT,
                            preferred_element_type=jnp.float32)
                    + bout_ref[...])                            # (8, 128)


# --------------------------- weight repacking -------------------------------

def prepare_weights(params):
    """One-time repack of PyTorch-layout params into the kernel layout.

    Depends only on the parameters, so in steady state (one inference per
    game frame) it is computed once and stays resident; nothing here is in
    the per-frame hot path.
    """
    f32 = jnp.float32

    # conv1: (40,1,3,3) -> (9, 128)  [tap-major, lane-padded out-channels]
    w1 = params['w1'].astype(f32)[:, 0]                          # (40, 3, 3)
    w1r = jnp.zeros((9, CPAD), f32).at[:, :40].set(
        jnp.transpose(w1, (1, 2, 0)).reshape(9, 40))
    b1r = jnp.zeros((1, CPAD), f32).at[0, :40].set(params['b1'].astype(f32))

    # conv2: (40,40,3,3) -> (9, 128, 128)  [tap, cin, cout], zero-padded
    w2 = jnp.transpose(params['w2'].astype(f32), (2, 3, 1, 0)).reshape(9, 40, 40)
    w2r = jnp.zeros((9, CPAD, CPAD), f32).at[:, :40, :40].set(w2)
    b2r = jnp.zeros((1, CPAD), f32).at[0, :40].set(params['b2'].astype(f32))

    # Valid-row mask for the pitch-WP flattened conv output.
    r = jnp.arange(L)
    mask = ((r % WP) < W).astype(f32).reshape(L, 1)

    # 2x2-maxpool gather: pooled[WPO*py+px] = m[2*WP*py + 2*px]
    p = jnp.arange(NPOS)
    src = 2 * WP * (p // WPO) + 2 * (p % WPO)
    gpool = jnp.zeros((NPOS, LM), f32).at[p, src].set(1.0)

    # Channel-group selectors for the CHW flatten: sel[g][c, n] = [c == 4n+g]
    n = jnp.arange(NROW)
    sel = jnp.zeros((CGRP, CPAD, NPAD), f32)
    for g in range(CGRP):
        sel = sel.at[g, CGRP * n + g, n].set(1.0)

    # RNN input weight split into the CGRP channel-group column blocks.
    wih = params['w_ih'].astype(f32)                             # (100, 100)
    wih_blk = jnp.stack([wih[:, NPOS * g:NPOS * (g + 1)] for g in range(CGRP)])
    # W_hh drops out exactly: h0 == 0 and seq_len == 1.
    b_rnn = (params['b_ih'] + params['b_hh']).astype(f32).reshape(100, 1)

    wout = jnp.zeros((8, 100), f32).at[:3, :].set(params['w_out'].astype(f32))
    bout = jnp.zeros((8, 1), f32).at[:3, 0].set(params['b_out'].astype(f32))

    return dict(w1r=w1r, b1r=b1r, w2r=w2r, b2r=b2r, mask=mask, gpool=gpool,
                sel=sel, wih_blk=wih_blk, b_rnn=b_rnn, wout=wout, bout=bout)


# ------------------------------- forward ------------------------------------

def _fused_call(xpad, wts):
    vmem = pl.BlockSpec(memory_space=pltpu.MemorySpace.VMEM)
    return pl.pallas_call(
        _fused_kernel,
        out_shape=jax.ShapeDtypeStruct((8, NPAD), jnp.float32),
        in_specs=[vmem] * 12,
        out_specs=vmem,
        scratch_shapes=[
            pltpu.VMEM((NPIX, CPAD), jnp.float32),   # zero-padded conv1 output
            pltpu.VMEM((128, CPAD), jnp.float32),    # conv2 output (118 rows)
        ],
        # Single board -> no grid (a grid is a serial loop, not a launch).
        # A batched variant would add a leading "parallel" grid axis instead.
    )(xpad, wts['mask'], wts['w1r'], wts['b1r'], wts['w2r'], wts['b2r'],
      wts['gpool'], wts['sel'], wts['wih_blk'], wts['b_rnn'],
      wts['wout'], wts['bout'])


@jax.jit
def forward(wts, x):
    # PyTorch: a 2-D input is unsqueezed to (1, H, W); accept either form.
    x2d = x[0] if x.ndim == 3 else x
    x2d = x2d.astype(jnp.float32)
    assert x2d.shape == (H, W), x2d.shape
    xpad = jnp.pad(x2d, 1).reshape(NPIX, 1)   # only per-frame glue (576 B)
    out_t = _fused_call(xpad, wts)            # rows = Linear outputs, lanes = RNN rows
    return out_t[:3, 0]                       # PyTorch's final x[0] -> (3,)


# ------------------------------ parameters ----------------------------------

def init_params(key):
    ks = jax.random.split(key, 10)

    def u(k, shape, fan_in):
        bound = 1.0 / jnp.sqrt(jnp.float32(fan_in))
        return jax.random.uniform(k, shape, jnp.float32, -bound, bound)

    return dict(
        w1=u(ks[0], (40, 1, 3, 3), 1 * 9),      # Conv2d(1, 40, 3)
        b1=u(ks[1], (40,), 1 * 9),
        w2=u(ks[2], (40, 40, 3, 3), 40 * 9),    # Conv2d(40, 40, 3)
        b2=u(ks[3], (40,), 40 * 9),
        w_ih=u(ks[4], (100, 100), 100),         # nn.RNN(100, 100)
        w_hh=u(ks[5], (100, 100), 100),         # unused: h0 == 0, seq_len == 1
        b_ih=u(ks[6], (100,), 100),
        b_hh=u(ks[7], (100,), 100),
        w_out=u(ks[8], (3, 100), 100),          # Linear(100, 3)
        b_out=u(ks[9], (3,), 100),
    )


# ------------------------------ reference -----------------------------------

def reference(params, x2d):
    x = x2d.astype(jnp.float32)[None, None]                 # (1,1,H,W)
    dn = ('NCHW', 'OIHW', 'NCHW')
    y = jax.lax.conv_general_dilated(x, params['w1'], (1, 1), 'SAME',
                                     dimension_numbers=dn)
    y = jax.nn.relu(y + params['b1'][None, :, None, None])
    y = jax.lax.conv_general_dilated(y, params['w2'], (1, 1), 'SAME',
                                     dimension_numbers=dn)
    y = jax.nn.relu(y + params['b2'][None, :, None, None])
    n, c, h, w = y.shape
    y = y.reshape(n, c, h // 2, 2, w // 2, 2).max(axis=(3, 5))
    rnn_in = y.reshape(-1, 100)
    hid = jnp.tanh(rnn_in @ params['w_ih'].T + params['b_ih'] + params['b_hh'])
    out = hid @ params['w_out'].T + params['b_out']
    return out[0]


# --------------------------------- main --------------------------------------

if __name__ == "__main__":
    key = jax.random.PRNGKey(0)
    pkey, xkey = jax.random.split(key)
    params = init_params(pkey)
    wts = prepare_weights(params)

    # Snake board: 10x10 grid so that 40 * 5 * 5 = 1000 reshapes to (10, 100).
    x = jax.random.uniform(xkey, (H, W), jnp.float32)

    out = jax.block_until_ready(forward(wts, x))
    ref = jax.block_until_ready(reference(params, x))

    assert out.shape == (3,), out.shape
    assert jnp.allclose(out, ref, atol=1e-4, rtol=1e-4), (out, ref)
    print("KERNEL_OK")
</pallas_src>

<mosaic_0001>
module attributes {stable_mosaic.version = 11 : i64} {
  func.func @_fused_kernel(%arg0: memref<144x1xf32, #tpu.memory_space<vmem>>, %arg1: memref<118x1xf32, #tpu.memory_space<vmem>>, %arg2: memref<9x128xf32, #tpu.memory_space<vmem>>, %arg3: memref<1x128xf32, #tpu.memory_space<vmem>>, %arg4: memref<9x128x128xf32, #tpu.memory_space<vmem>>, %arg5: memref<1x128xf32, #tpu.memory_space<vmem>>, %arg6: memref<25x105xf32, #tpu.memory_space<vmem>>, %arg7: memref<4x128x128xf32, #tpu.memory_space<vmem>>, %arg8: memref<4x100x25xf32, #tpu.memory_space<vmem>>, %arg9: memref<100x1xf32, #tpu.memory_space<vmem>>, %arg10: memref<8x100xf32, #tpu.memory_space<vmem>>, %arg11: memref<8x1xf32, #tpu.memory_space<vmem>>, %arg12: memref<8x128xf32, #tpu.memory_space<vmem>>, %arg13: memref<144x128xf32, #tpu.memory_space<vmem>>, %arg14: memref<128x128xf32, #tpu.memory_space<vmem>>) attributes {dimension_semantics = [], scalar_prefetch = 0 : i64, scratch_operands = 2 : i64, tpu.core_type = #tpu.core_type<tc>} {
    %cst = arith.constant 0.000000e+00 : f32
    %0 = vector.broadcast %cst : f32 to vector<118x128xf32>
    %c0 = arith.constant 0 : index
    %c0_0 = arith.constant 0 : index
    %1 = vector.load %arg0[%c0, %c0_0] : memref<144x1xf32, #tpu.memory_space<vmem>>, vector<118x1xf32>
    %c0_1 = arith.constant 0 : index
    %c0_2 = arith.constant 0 : index
    %2 = vector.load %arg2[%c0_1, %c0_2] : memref<9x128xf32, #tpu.memory_space<vmem>>, vector<1x128xf32>
    %3 = vector.broadcast %1 : vector<118x1xf32> to vector<118x128xf32>
    %4 = vector.broadcast %2 : vector<1x128xf32> to vector<118x128xf32>
    %5 = arith.mulf %3, %4 : vector<118x128xf32>
    %6 = arith.addf %0, %5 : vector<118x128xf32>
    %c1 = arith.constant 1 : index
    %c0_3 = arith.constant 0 : index
    %7 = vector.load %arg0[%c1, %c0_3] : memref<144x1xf32, #tpu.memory_space<vmem>>, vector<118x1xf32>
    %c1_4 = arith.constant 1 : index
    %c0_5 = arith.constant 0 : index
    %8 = vector.load %arg2[%c1_4, %c0_5] : memref<9x128xf32, #tpu.memory_space<vmem>>, vector<1x128xf32>
    %9 = vector.broadcast %7 : vector<118x1xf32> to vector<118x128xf32>
    %10 = vector.broadcast %8 : vector<1x128xf32> to vector<118x128xf32>
    %11 = arith.mulf %9, %10 : vector<118x128xf32>
    %12 = arith.addf %6, %11 : vector<118x128xf32>
    %c2 = arith.constant 2 : index
    %c0_6 = arith.constant 0 : index
    %13 = vector.load %arg0[%c2, %c0_6] : memref<144x1xf32, #tpu.memory_space<vmem>>, vector<118x1xf32>
    %c2_7 = arith.constant 2 : index
    %c0_8 = arith.constant 0 : index
    %14 = vector.load %arg2[%c2_7, %c0_8] : memref<9x128xf32, #tpu.memory_space<vmem>>, vector<1x128xf32>
    %15 = vector.broadcast %13 : vector<118x1xf32> to vector<118x128xf32>
    %16 = vector.broadcast %14 : vector<1x128xf32> to vector<118x128xf32>
    %17 = arith.mulf %15, %16 : vector<118x128xf32>
    %18 = arith.addf %12, %17 : vector<118x128xf32>
    %c12 = arith.constant 12 : index
    %c0_9 = arith.constant 0 : index
    %19 = vector.load %arg0[%c12, %c0_9] : memref<144x1xf32, #tpu.memory_space<vmem>>, vector<118x1xf32>
    %c3 = arith.constant 3 : index
    %c0_10 = arith.constant 0 : index
    %20 = vector.load %arg2[%c3, %c0_10] : memref<9x128xf32, #tpu.memory_space<vmem>>, vector<1x128xf32>
    %21 = vector.broadcast %19 : vector<118x1xf32> to vector<118x128xf32>
    %22 = vector.broadcast %20 : vector<1x128xf32> to vector<118x128xf32>
    %23 = arith.mulf %21, %22 : vector<118x128xf32>
    %24 = arith.addf %18, %23 : vector<118x128xf32>
    %c13 = arith.constant 13 : index
    %c0_11 = arith.constant 0 : index
    %25 = vector.load %arg0[%c13, %c0_11] : memref<144x1xf32, #tpu.memory_space<vmem>>, vector<118x1xf32>
    %c4 = arith.constant 4 : index
    %c0_12 = arith.constant 0 : index
    %26 = vector.load %arg2[%c4, %c0_12] : memref<9x128xf32, #tpu.memory_space<vmem>>, vector<1x128xf32>
    %27 = vector.broadcast %25 : vector<118x1xf32> to vector<118x128xf32>
    %28 = vector.broadcast %26 : vector<1x128xf32> to vector<118x128xf32>
    %29 = arith.mulf %27, %28 : vector<118x128xf32>
    %30 = arith.addf %24, %29 : vector<118x128xf32>
    %c14 = arith.constant 14 : index
    %c0_13 = arith.constant 0 : index
    %31 = vector.load %arg0[%c14, %c0_13] : memref<144x1xf32, #tpu.memory_space<vmem>>, vector<118x1xf32>
    %c5 = arith.constant 5 : index
    %c0_14 = arith.constant 0 : index
    %32 = vector.load %arg2[%c5, %c0_14] : memref<9x128xf32, #tpu.memory_space<vmem>>, vector<1x128xf32>
    %33 = vector.broadcast %31 : vector<118x1xf32> to vector<118x128xf32>
    %34 = vector.broadcast %32 : vector<1x128xf32> to vector<118x128xf32>
    %35 = arith.mulf %33, %34 : vector<118x128xf32>
    %36 = arith.addf %30, %35 : vector<118x128xf32>
    %c24 = arith.constant 24 : index
    %c0_15 = arith.constant 0 : index
    %37 = vector.load %arg0[%c24, %c0_15] : memref<144x1xf32, #tpu.memory_space<vmem>>, vector<118x1xf32>
    %c6 = arith.constant 6 : index
    %c0_16 = arith.constant 0 : index
    %38 = vector.load %arg2[%c6, %c0_16] : memref<9x128xf32, #tpu.memory_space<vmem>>, vector<1x128xf32>
    %39 = vector.broadcast %37 : vector<118x1xf32> to vector<118x128xf32>
    %40 = vector.broadcast %38 : vector<1x128xf32> to vector<118x128xf32>
    %41 = arith.mulf %39, %40 : vector<118x128xf32>
    %42 = arith.addf %36, %41 : vector<118x128xf32>
    %c25 = arith.constant 25 : index
    %c0_17 = arith.constant 0 : index
    %43 = vector.load %arg0[%c25, %c0_17] : memref<144x1xf32, #tpu.memory_space<vmem>>, vector<118x1xf32>
    %c7 = arith.constant 7 : index
    %c0_18 = arith.constant 0 : index
    %44 = vector.load %arg2[%c7, %c0_18] : memref<9x128xf32, #tpu.memory_space<vmem>>, vector<1x128xf32>
    %45 = vector.broadcast %43 : vector<118x1xf32> to vector<118x128xf32>
    %46 = vector.broadcast %44 : vector<1x128xf32> to vector<118x128xf32>
    %47 = arith.mulf %45, %46 : vector<118x128xf32>
    %48 = arith.addf %42, %47 : vector<118x128xf32>
    %c26 = arith.constant 26 : index
    %c0_19 = arith.constant 0 : index
    %49 = vector.load %arg0[%c26, %c0_19] : memref<144x1xf32, #tpu.memory_space<vmem>>, vector<118x1xf32>
    %c8 = arith.constant 8 : index
    %c0_20 = arith.constant 0 : index
    %50 = vector.load %arg2[%c8, %c0_20] : memref<9x128xf32, #tpu.memory_space<vmem>>, vector<1x128xf32>
    %51 = vector.broadcast %49 : vector<118x1xf32> to vector<118x128xf32>
    %52 = vector.broadcast %50 : vector<1x128xf32> to vector<118x128xf32>
    %53 = arith.mulf %51, %52 : vector<118x128xf32>
    %54 = arith.addf %48, %53 : vector<118x128xf32>
    %c0_21 = arith.constant 0 : index
    %c0_22 = arith.constant 0 : index
    %55 = vector.load %arg3[%c0_21, %c0_22] : memref<1x128xf32, #tpu.memory_space<vmem>>, vector<1x128xf32>
    %56 = vector.broadcast %55 : vector<1x128xf32> to vector<118x128xf32>
    %57 = arith.addf %54, %56 : vector<118x128xf32>
    %cst_23 = arith.constant 0.000000e+00 : f32
    %58 = vector.broadcast %cst_23 : f32 to vector<118x128xf32>
    %59 = arith.maximumf %57, %58 : vector<118x128xf32>
    %c0_24 = arith.constant 0 : index
    %c0_25 = arith.constant 0 : index
    %60 = vector.load %arg1[%c0_24, %c0_25] : memref<118x1xf32, #tpu.memory_space<vmem>>, vector<118x1xf32>
    %61 = vector.broadcast %60 : vector<118x1xf32> to vector<118x128xf32>
    %62 = arith.mulf %59, %61 : vector<118x128xf32>
    %cst_26 = arith.constant 0.000000e+00 : f32
    %63 = vector.broadcast %cst_26 : f32 to vector<144x128xf32>
    %c0_27 = arith.constant 0 : index
    %c0_28 = arith.constant 0 : index
    %64 = vector.load %arg13[%c0_27, %c0_28] : memref<144x128xf32, #tpu.memory_space<vmem>>, vector<144x128xf32>
    tpu.vector_store %arg13[%c0_27, %c0_28], %63 {strides = array<i32>} : memref<144x128xf32, #tpu.memory_space<vmem>>, vector<144x128xf32>,
    %c13_29 = arith.constant 13 : index
    %c0_30 = arith.constant 0 : index
    %65 = vector.load %arg13[%c13_29, %c0_30] : memref<144x128xf32, #tpu.memory_space<vmem>>, vector<118x128xf32>
    tpu.vector_store %arg13[%c13_29, %c0_30], %62 {strides = array<i32>} : memref<144x128xf32, #tpu.memory_space<vmem>>, vector<118x128xf32>,
    %cst_31 = arith.constant 0.000000e+00 : f32
    %66 = vector.broadcast %cst_31 : f32 to vector<118x128xf32>
    %c0_32 = arith.constant 0 : index
    %c0_33 = arith.constant 0 : index
    %67 = vector.load %arg13[%c0_32, %c0_33] : memref<144x128xf32, #tpu.memory_space<vmem>>, vector<118x128xf32>
    %c0_34 = arith.constant 0 : index
    %c0_35 = arith.constant 0 : index
    %c0_36 = arith.constant 0 : index
    %68 = vector.load %arg4[%c0_34, %c0_35, %c0_36] : memref<9x128x128xf32, #tpu.memory_space<vmem>>, vector<1x128x128xf32>
    %69 = vector.shape_cast %68 : vector<1x128x128xf32> to vector<128x128xf32>
    %cst_37 = arith.constant dense<0.000000e+00> : vector<118x128xf32>
    %70 = tpu.matmul %67, %69, %cst_37 {dimension_numbers = #tpu.dot_dimension_numbers<[1], [0], [0], [1], [0, 0, 1, 1], [], []>} : vector<118x128xf32>, vector<128x128xf32>, vector<118x128xf32> -> vector<118x128xf32>
    %71 = arith.addf %66, %70 : vector<118x128xf32>
    %c1_38 = arith.constant 1 : index
    %c0_39 = arith.constant 0 : index
    %72 = vector.load %arg13[%c1_38, %c0_39] : memref<144x128xf32, #tpu.memory_space<vmem>>, vector<118x128xf32>
    %c1_40 = arith.constant 1 : index
    %c0_41 = arith.constant 0 : index
    %c0_42 = arith.constant 0 : index
    %73 = vector.load %arg4[%c1_40, %c0_41, %c0_42] : memref<9x128x128xf32, #tpu.memory_space<vmem>>, vector<1x128x128xf32>
    %74 = vector.shape_cast %73 : vector<1x128x128xf32> to vector<128x128xf32>
    %cst_43 = arith.constant dense<0.000000e+00> : vector<118x128xf32>
    %75 = tpu.matmul %72, %74, %cst_43 {dimension_numbers = #tpu.dot_dimension_numbers<[1], [0], [0], [1], [0, 0, 1, 1], [], []>} : vector<118x128xf32>, vector<128x128xf32>, vector<118x128xf32> -> vector<118x128xf32>
    %76 = arith.addf %71, %75 : vector<118x128xf32>
    %c2_44 = arith.constant 2 : index
    %c0_45 = arith.constant 0 : index
    %77 = vector.load %arg13[%c2_44, %c0_45] : memref<144x128xf32, #tpu.memory_space<vmem>>, vector<118x128xf32>
    %c2_46 = arith.constant 2 : index
    %c0_47 = arith.constant 0 : index
    %c0_48 = arith.constant 0 : index
    %78 = vector.load %arg4[%c2_46, %c0_47, %c0_48] : memref<9x128x128xf32, #tpu.memory_space<vmem>>, vector<1x128x128xf32>
    %79 = vector.shape_cast %78 : vector<1x128x128xf32> to vector<128x128xf32>
    %cst_49 = arith.constant dense<0.000000e+00> : vector<118x128xf32>
    %80 = tpu.matmul %77, %79, %cst_49 {dimension_numbers = #tpu.dot_dimension_numbers<[1], [0], [0], [1], [0, 0, 1, 1], [], []>} : vector<118x128xf32>, vector<128x128xf32>, vector<118x128xf32> -> vector<118x128xf32>
    %81 = arith.addf %76, %80 : vector<118x128xf32>
    %c12_50 = arith.constant 12 : index
    %c0_51 = arith.constant 0 : index
    %82 = vector.load %arg13[%c12_50, %c0_51] : memref<144x128xf32, #tpu.memory_space<vmem>>, vector<118x128xf32>
    %c3_52 = arith.constant 3 : index
    %c0_53 = arith.constant 0 : index
    %c0_54 = arith.constant 0 : index
    %83 = vector.load %arg4[%c3_52, %c0_53, %c0_54] : memref<9x128x128xf32, #tpu.memory_space<vmem>>, vector<1x128x128xf32>
    %84 = vector.shape_cast %83 : vector<1x128x128xf32> to vector<128x128xf32>
    %cst_55 = arith.constant dense<0.000000e+00> : vector<118x128xf32>
    %85 = tpu.matmul %82, %84, %cst_55 {dimension_numbers = #tpu.dot_dimension_numbers<[1], [0], [0], [1], [0, 0, 1, 1], [], []>} : vector<118x128xf32>, vector<128x128xf32>, vector<118x128xf32> -> vector<118x128xf32>
    %86 = arith.addf %81, %85 : vector<118x128xf32>
    %c13_56 = arith.constant 13 : index
    %c0_57 = arith.constant 0 : index
    %87 = vector.load %arg13[%c13_56, %c0_57] : memref<144x128xf32, #tpu.memory_space<vmem>>, vector<118x128xf32>
    %c4_58 = arith.constant 4 : index
    %c0_59 = arith.constant 0 : index
    %c0_60 = arith.constant 0 : index
    %88 = vector.load %arg4[%c4_58, %c0_59, %c0_60] : memref<9x128x128xf32, #tpu.memory_space<vmem>>, vector<1x128x128xf32>
    %89 = vector.shape_cast %88 : vector<1x128x128xf32> to vector<128x128xf32>
    %cst_61 = arith.constant dense<0.000000e+00> : vector<118x128xf32>
    %90 = tpu.matmul %87, %89, %cst_61 {dimension_numbers = #tpu.dot_dimension_numbers<[1], [0], [0], [1], [0, 0, 1, 1], [], []>} : vector<118x128xf32>, vector<128x128xf32>, vector<118x128xf32> -> vector<118x128xf32>
    %91 = arith.addf %86, %90 : vector<118x128xf32>
    %c14_62 = arith.constant 14 : index
    %c0_63 = arith.constant 0 : index
    %92 = vector.load %arg13[%c14_62, %c0_63] : memref<144x128xf32, #tpu.memory_space<vmem>>, vector<118x128xf32>
    %c5_64 = arith.constant 5 : index
    %c0_65 = arith.constant 0 : index
    %c0_66 = arith.constant 0 : index
    %93 = vector.load %arg4[%c5_64, %c0_65, %c0_66] : memref<9x128x128xf32, #tpu.memory_space<vmem>>, vector<1x128x128xf32>
    %94 = vector.shape_cast %93 : vector<1x128x128xf32> to vector<128x128xf32>
    %cst_67 = arith.constant dense<0.000000e+00> : vector<118x128xf32>
    %95 = tpu.matmul %92, %94, %cst_67 {dimension_numbers = #tpu.dot_dimension_numbers<[1], [0], [0], [1], [0, 0, 1, 1], [], []>} : vector<118x128xf32>, vector<128x128xf32>, vector<118x128xf32> -> vector<118x128xf32>
    %96 = arith.addf %91, %95 : vector<118x128xf32>
    %c24_68 = arith.constant 24 : index
    %c0_69 = arith.constant 0 : index
    %97 = vector.load %arg13[%c24_68, %c0_69] : memref<144x128xf32, #tpu.memory_space<vmem>>, vector<118x128xf32>
    %c6_70 = arith.constant 6 : index
    %c0_71 = arith.constant 0 : index
    %c0_72 = arith.constant 0 : index
    %98 = vector.load %arg4[%c6_70, %c0_71, %c0_72] : memref<9x128x128xf32, #tpu.memory_space<vmem>>, vector<1x128x128xf32>
    %99 = vector.shape_cast %98 : vector<1x128x128xf32> to vector<128x128xf32>
    %cst_73 = arith.constant dense<0.000000e+00> : vector<118x128xf32>
    %100 = tpu.matmul %97, %99, %cst_73 {dimension_numbers = #tpu.dot_dimension_numbers<[1], [0], [0], [1], [0, 0, 1, 1], [], []>} : vector<118x128xf32>, vector<128x128xf32>, vector<118x128xf32> -> vector<118x128xf32>
    %101 = arith.addf %96, %100 : vector<118x128xf32>
    %c25_74 = arith.constant 25 : index
    %c0_75 = arith.constant 0 : index
    %102 = vector.load %arg13[%c25_74, %c0_75] : memref<144x128xf32, #tpu.memory_space<vmem>>, vector<118x128xf32>
    %c7_76 = arith.constant 7 : index
    %c0_77 = arith.constant 0 : index
    %c0_78 = arith.constant 0 : index
    %103 = vector.load %arg4[%c7_76, %c0_77, %c0_78] : memref<9x128x128xf32, #tpu.memory_space<vmem>>, vector<1x128x128xf32>
    %104 = vector.shape_cast %103 : vector<1x128x128xf32> to vector<128x128xf32>
    %cst_79 = arith.constant dense<0.000000e+00> : vector<118x128xf32>
    %105 = tpu.matmul %102, %104, %cst_79 {dimension_numbers = #tpu.dot_dimension_numbers<[1], [0], [0], [1], [0, 0, 1, 1], [], []>} : vector<118x128xf32>, vector<128x128xf32>, vector<118x128xf32> -> vector<118x128xf32>
    %106 = arith.addf %101, %105 : vector<118x128xf32>
    %c26_80 = arith.constant 26 : index
    %c0_81 = arith.constant 0 : index
    %107 = vector.load %arg13[%c26_80, %c0_81] : memref<144x128xf32, #tpu.memory_space<vmem>>, vector<118x128xf32>
    %c8_82 = arith.constant 8 : index
    %c0_83 = arith.constant 0 : index
    %c0_84 = arith.constant 0 : index
    %108 = vector.load %arg4[%c8_82, %c0_83, %c0_84] : memref<9x128x128xf32, #tpu.memory_space<vmem>>, vector<1x128x128xf32>
    %109 = vector.shape_cast %108 : vector<1x128x128xf32> to vector<128x128xf32>
    %cst_85 = arith.constant dense<0.000000e+00> : vector<118x128xf32>
    %110 = tpu.matmul %107, %109, %cst_85 {dimension_numbers = #tpu.dot_dimension_numbers<[1], [0], [0], [1], [0, 0, 1, 1], [], []>} : vector<118x128xf32>, vector<128x128xf32>, vector<118x128xf32> -> vector<118x128xf32>
    %111 = arith.addf %106, %110 : vector<118x128xf32>
    %c0_86 = arith.constant 0 : index
    %c0_87 = arith.constant 0 : index
    %112 = vector.load %arg5[%c0_86, %c0_87] : memref<1x128xf32, #tpu.memory_space<vmem>>, vector<1x128xf32>
    %113 = vector.broadcast %112 : vector<1x128xf32> to vector<118x128xf32>
    %114 = arith.addf %111, %113 : vector<118x128xf32>
    %cst_88 = arith.constant 0.000000e+00 : f32
    %115 = vector.broadcast %cst_88 : f32 to vector<118x128xf32>
    %116 = arith.maximumf %114, %115 : vector<118x128xf32>
    %c0_89 = arith.constant 0 : index
    %c0_90 = arith.constant 0 : index
    %117 = vector.load %arg14[%c0_89, %c0_90] : memref<128x128xf32, #tpu.memory_space<vmem>>, vector<118x128xf32>
    tpu.vector_store %arg14[%c0_89, %c0_90], %116 {strides = array<i32>} : memref<128x128xf32, #tpu.memory_space<vmem>>, vector<118x128xf32>,
    %c0_91 = arith.constant 0 : index
    %c0_92 = arith.constant 0 : index
    %118 = vector.load %arg14[%c0_91, %c0_92] : memref<128x128xf32, #tpu.memory_space<vmem>>, vector<105x128xf32>
    %c1_93 = arith.constant 1 : index
    %c0_94 = arith.constant 0 : index
    %119 = vector.load %arg14[%c1_93, %c0_94] : memref<128x128xf32, #tpu.memory_space<vmem>>, vector<105x128xf32>
    %120 = arith.maximumf %118, %119 : vector<105x128xf32>
    %c12_95 = arith.constant 12 : index
    %c0_96 = arith.constant 0 : index
    %121 = vector.load %arg14[%c12_95, %c0_96] : memref<128x128xf32, #tpu.memory_space<vmem>>, vector<105x128xf32>
    %c13_97 = arith.constant 13 : index
    %c0_98 = arith.constant 0 : index
    %122 = vector.load %arg14[%c13_97, %c0_98] : memref<128x128xf32, #tpu.memory_space<vmem>>, vector<105x128xf32>
    %123 = arith.maximumf %121, %122 : vector<105x128xf32>
    %124 = arith.maximumf %120, %123 : vector<105x128xf32>
    %c0_99 = arith.constant 0 : index
    %c0_100 = arith.constant 0 : index
    %125 = vector.load %arg6[%c0_99, %c0_100] : memref<25x105xf32, #tpu.memory_space<vmem>>, vector<25x105xf32>
    %cst_101 = arith.constant dense<0.000000e+00> : vector<25x128xf32>
    %126 = tpu.matmul %125, %124, %cst_101 {dimension_numbers = #tpu.dot_dimension_numbers<[1], [0], [0], [1], [0, 0, 1, 1], [], []>} : vector<25x105xf32>, vector<105x128xf32>, vector<25x128xf32> -> vector<25x128xf32>
    %cst_102 = arith.constant 0.000000e+00 : f32
    %127 = vector.broadcast %cst_102 : f32 to vector<100x128xf32>
    %c0_103 = arith.constant 0 : index
    %c0_104 = arith.constant 0 : index
    %c0_105 = arith.constant 0 : index
    %128 = vector.load %arg7[%c0_103, %c0_104, %c0_105] : memref<4x128x128xf32, #tpu.memory_space<vmem>>, vector<1x128x128xf32>
    %129 = vector.shape_cast %128 : vector<1x128x128xf32> to vector<128x128xf32>
    %cst_106 = arith.constant dense<0.000000e+00> : vector<25x128xf32>
    %130 = tpu.matmul %126, %129, %cst_106 {dimension_numbers = #tpu.dot_dimension_numbers<[1], [0], [0], [1], [0, 0, 1, 1], [], []>} : vector<25x128xf32>, vector<128x128xf32>, vector<25x128xf32> -> vector<25x128xf32>
    %c0_107 = arith.constant 0 : index
    %c0_108 = arith.constant 0 : index
    %c0_109 = arith.constant 0 : index
    %131 = vector.load %arg8[%c0_107, %c0_108, %c0_109] : memref<4x100x25xf32, #tpu.memory_space<vmem>>, vector<1x100x25xf32>
    %132 = vector.shape_cast %131 : vector<1x100x25xf32> to vector<100x25xf32>
    %cst_110 = arith.constant dense<0.000000e+00> : vector<100x128xf32>
    %133 = tpu.matmul %132, %130, %cst_110 {dimension_numbers = #tpu.dot_dimension_numbers<[1], [0], [0], [1], [0, 0, 1, 1], [], []>} : vector<100x25xf32>, vector<25x128xf32>, vector<100x128xf32> -> vector<100x128xf32>
    %134 = arith.addf %127, %133 : vector<100x128xf32>
    %c1_111 = arith.constant 1 : index
    %c0_112 = arith.constant 0 : index
    %c0_113 = arith.constant 0 : index
    %135 = vector.load %arg7[%c1_111, %c0_112, %c0_113] : memref<4x128x128xf32, #tpu.memory_space<vmem>>, vector<1x128x128xf32>
    %136 = vector.shape_cast %135 : vector<1x128x128xf32> to vector<128x128xf32>
    %cst_114 = arith.constant dense<0.000000e+00> : vector<25x128xf32>
    %137 = tpu.matmul %126, %136, %cst_114 {dimension_numbers = #tpu.dot_dimension_numbers<[1], [0], [0], [1], [0, 0, 1, 1], [], []>} : vector<25x128xf32>, vector<128x128xf32>, vector<25x128xf32> -> vector<25x128xf32>
    %c1_115 = arith.constant 1 : index
    %c0_116 = arith.constant 0 : index
    %c0_117 = arith.constant 0 : index
    %138 = vector.load %arg8[%c1_115, %c0_116, %c0_117] : memref<4x100x25xf32, #tpu.memory_space<vmem>>, vector<1x100x25xf32>
    %139 = vector.shape_cast %138 : vector<1x100x25xf32> to vector<100x25xf32>
    %cst_118 = arith.constant dense<0.000000e+00> : vector<100x128xf32>
    %140 = tpu.matmul %139, %137, %cst_118 {dimension_numbers = #tpu.dot_dimension_numbers<[1], [0], [0], [1], [0, 0, 1, 1], [], []>} : vector<100x25xf32>, vector<25x128xf32>, vector<100x128xf32> -> vector<100x128xf32>
    %141 = arith.addf %134, %140 : vector<100x128xf32>
    %c2_119 = arith.constant 2 : index
    %c0_120 = arith.constant 0 : index
    %c0_121 = arith.constant 0 : index
    %142 = vector.load %arg7[%c2_119, %c0_120, %c0_121] : memref<4x128x128xf32, #tpu.memory_space<vmem>>, vector<1x128x128xf32>
    %143 = vector.shape_cast %142 : vector<1x128x128xf32> to vector<128x128xf32>
    %cst_122 = arith.constant dense<0.000000e+00> : vector<25x128xf32>
    %144 = tpu.matmul %126, %143, %cst_122 {dimension_numbers = #tpu.dot_dimension_numbers<[1], [0], [0], [1], [0, 0, 1, 1], [], []>} : vector<25x128xf32>, vector<128x128xf32>, vector<25x128xf32> -> vector<25x128xf32>
    %c2_123 = arith.constant 2 : index
    %c0_124 = arith.constant 0 : index
    %c0_125 = arith.constant 0 : index
    %145 = vector.load %arg8[%c2_123, %c0_124, %c0_125] : memref<4x100x25xf32, #tpu.memory_space<vmem>>, vector<1x100x25xf32>
    %146 = vector.shape_cast %145 : vector<1x100x25xf32> to vector<100x25xf32>
    %cst_126 = arith.constant dense<0.000000e+00> : vector<100x128xf32>
    %147 = tpu.matmul %146, %144, %cst_126 {dimension_numbers = #tpu.dot_dimension_numbers<[1], [0], [0], [1], [0, 0, 1, 1], [], []>} : vector<100x25xf32>, vector<25x128xf32>, vector<100x128xf32> -> vector<100x128xf32>
    %148 = arith.addf %141, %147 : vector<100x128xf32>
    %c3_127 = arith.constant 3 : index
    %c0_128 = arith.constant 0 : index
    %c0_129 = arith.constant 0 : index
    %149 = vector.load %arg7[%c3_127, %c0_128, %c0_129] : memref<4x128x128xf32, #tpu.memory_space<vmem>>, vector<1x128x128xf32>
    %150 = vector.shape_cast %149 : vector<1x128x128xf32> to vector<128x128xf32>
    %cst_130 = arith.constant dense<0.000000e+00> : vector<25x128xf32>
    %151 = tpu.matmul %126, %150, %cst_130 {dimension_numbers = #tpu.dot_dimension_numbers<[1], [0], [0], [1], [0, 0, 1, 1], [], []>} : vector<25x128xf32>, vector<128x128xf32>, vector<25x128xf32> -> vector<25x128xf32>
    %c3_131 = arith.constant 3 : index
    %c0_132 = arith.constant 0 : index
    %c0_133 = arith.constant 0 : index
    %152 = vector.load %arg8[%c3_131, %c0_132, %c0_133] : memref<4x100x25xf32, #tpu.memory_space<vmem>>, vector<1x100x25xf32>
    %153 = vector.shape_cast %152 : vector<1x100x25xf32> to vector<100x25xf32>
    %cst_134 = arith.constant dense<0.000000e+00> : vector<100x128xf32>
    %154 = tpu.matmul %153, %151, %cst_134 {dimension_numbers = #tpu.dot_dimension_numbers<[1], [0], [0], [1], [0, 0, 1, 1], [], []>} : vector<100x25xf32>, vector<25x128xf32>, vector<100x128xf32> -> vector<100x128xf32>
    %155 = arith.addf %148, %154 : vector<100x128xf32>
    %c0_135 = arith.constant 0 : index
    %c0_136 = arith.constant 0 : index
    %156 = vector.load %arg9[%c0_135, %c0_136] : memref<100x1xf32, #tpu.memory_space<vmem>>, vector<100x1xf32>
    %157 = vector.broadcast %156 : vector<100x1xf32> to vector<100x128xf32>
    %158 = arith.addf %155, %157 : vector<100x128xf32>
    %159 = math.tanh %158 : vector<100x128xf32>
    %c0_137 = arith.constant 0 : index
    %c0_138 = arith.constant 0 : index
    %160 = vector.load %arg10[%c0_137, %c0_138] : memref<8x100xf32, #tpu.memory_space<vmem>>, vector<8x100xf32>
    %cst_139 = arith.constant dense<0.000000e+00> : vector<8x128xf32>
    %161 = tpu.matmul %160, %159, %cst_139 {dimension_numbers = #tpu.dot_dimension_numbers<[1], [0], [0], [1], [0, 0, 1, 1], [], []>} : vector<8x100xf32>, vector<100x128xf32>, vector<8x128xf32> -> vector<8x128xf32>
    %c0_140 = arith.constant 0 : index
    %c0_141 = arith.constant 0 : index
    %162 = vector.load %arg11[%c0_140, %c0_141] : memref<8x1xf32, #tpu.memory_space<vmem>>, vector<8x1xf32>
    %163 = vector.broadcast %162 : vector<8x1xf32> to vector<8x128xf32>
    %164 = arith.addf %161, %163 : vector<8x128xf32>
    %c0_142 = arith.constant 0 : index
    %c0_143 = arith.constant 0 : index
    %165 = vector.load %arg12[%c0_142, %c0_143] : memref<8x128xf32, #tpu.memory_space<vmem>>, vector<8x128xf32>
    tpu.vector_store %arg12[%c0_142, %c0_143], %164 {strides = array<i32>} : memref<8x128xf32, #tpu.memory_space<vmem>>, vector<8x128xf32>,
    return
  }
}

</mosaic_0001>

<llo_original>
// kernel: forward.1
$region0: #{forward.1}
  #allocation0 [shape = 'u32[]', space=smem, size = 0x4, offset = 0x4, fixed_abs, tag = 'smem constant byte address 0x4 - core index']
  #allocation1 [shape = 'u32[144,128]{1,0:T(1,128)}', space=vmem, size = 0x12000, scoped, tag = 'internal scratch']
  #allocation2 [shape = 'f32[144,128]{1,0:T(8,128)}', space=vmem, size = 0x12000, scoped, tag = 'scratch operand']
  #allocation3 [shape = 'f32[128,128]{1,0:T(8,128)}', space=vmem, size = 0x10000, scoped, tag = 'scratch operand']
  %s0 = inlined_call_operand.vmem [shape: f32[144,1], index: 0, kind: input, shape index: {}]
  %s1 = inlined_call_operand.vmem [shape: f32[118,1], index: 1, kind: input, shape index: {}]
  %s2 = inlined_call_operand.vmem [shape: f32[9,128], index: 2, kind: input, shape index: {}]
  %s3 = inlined_call_operand.vmem [shape: f32[1,128], index: 3, kind: input, shape index: {}]
  %s4 = inlined_call_operand.hbm [shape: f32[9,128,128], index: 4, kind: input, shape index: {}]
  %s5 = inlined_call_operand.vmem [shape: f32[1,128], index: 5, kind: input, shape index: {}]
  %s6 = inlined_call_operand.vmem [shape: f32[25,105], index: 6, kind: input, shape index: {}]
  %s7 = inlined_call_operand.vmem [shape: f32[4,128,128], index: 7, kind: input, shape index: {}]
  %s8 = inlined_call_operand.vmem [shape: f32[4,100,25], index: 8, kind: input, shape index: {}]
  %s9 = inlined_call_operand.vmem [shape: f32[100,1], index: 9, kind: input, shape index: {}]
  %s10 = inlined_call_operand.vmem [shape: f32[8,100], index: 10, kind: input, shape index: {}]
  %s11 = inlined_call_operand.vmem [shape: f32[8,1], index: 11, kind: input, shape index: {}]
  %s12 = inlined_call_operand.vmem [shape: f32[8,128], index: 12, kind: output, shape index: {}]
  %s13 = sld [smem:[#allocation0]]
  $region62: #{forward.1} parent=0
    _
  %s15 = ssub.s32 1, %s13
  %s16 = scalar_select 0, %s15, %s13
  $region1: #{forward.1} parent=0
    #allocation4 [shape = 'u8[589824]{0}', space=vmem, size = 0x90000, scoped, tag = 'input window, operand 4, single buffered']
    #allocation5 [shape = 's32[1]{0}', space=sflag, size = 0x4, scoped, tag = 'scoped memory for forward.1']
    %17 = vsyncpa [#allocation5], 0
    // Predicated region
    $region2: #{forward.1} parent=1 // pred_check
      _
    $region3: #{forward.1} parent=1 // pred_check_branch
      %19 = sbr.rel (0) target = $region5
    $region4: #{forward.1} parent=1 // pred_region
      _
    $region5: #{forward.1} parent=1 // pred_fallthru
      _
    // Predicated region
    $region6: #{forward.1} parent=1 // pred_check
      _
    $region7: #{forward.1} parent=1 // pred_check_branch
      %21 = sbr.rel (0) target = $region9
    $region8: #{forward.1} parent=1 // pred_region
      _
    $region9: #{forward.1} parent=1 // pred_fallthru
      _
    // Predicated region
    $region10: #{forward.1} parent=1 // pred_check
      _
    $region11: #{forward.1} parent=1 // pred_check_branch
      %23 = sbr.rel (0) target = $region13
    $region12: #{forward.1} parent=1 // pred_region
      _
    $region13: #{forward.1} parent=1 // pred_fallthru
      _
    // Predicated region
    $region14: #{forward.1} parent=1 // pred_check
      _
    $region15: #{forward.1} parent=1 // pred_check_branch
      %25 = sbr.rel (0) target = $region17
    $region16: #{forward.1} parent=1 // pred_region
      _
    $region17: #{forward.1} parent=1 // pred_fallthru
      _
    // Predicated region
    $region18: #{forward.1} parent=1 // pred_check
      _
    $region19: #{forward.1} parent=1 // pred_check_branch
      %27 = sbr.rel (0) target = $region21
    $region20: #{forward.1} parent=1 // pred_region
      %s29 = ssub.s32 18432, 18432
      %30 = vsyncadd [#allocation5], %s29
      %s31 = sshll.u32 [#allocation4], 4
      %s32 = int_to_ptr.vmem [resolvable:$true] %s31
      %37 = dma.hbm_to_vmem [thread:$0]  %s4, 18432, %s32, [#allocation5], 128, 128, 8
    $region21: #{forward.1} parent=1 // pred_fallthru
      _
    // Predicated region
    $region22: #{forward.1} parent=1 // pred_check
      _
    $region23: #{forward.1} parent=1 // pred_check_branch
      %39 = sbr.rel (0) target = $region25
    $region24: #{forward.1} parent=1 // pred_region
      _
    $region25: #{forward.1} parent=1 // pred_fallthru
      _
    // Predicated region
    $region26: #{forward.1} parent=1 // pred_check
      _
    $region27: #{forward.1} parent=1 // pred_check_branch
      %41 = sbr.rel (0) target = $region29
    $region28: #{forward.1} parent=1 // pred_region
      _
    $region29: #{forward.1} parent=1 // pred_fallthru
      _
    // Predicated region
    $region30: #{forward.1} parent=1 // pred_check
      _
    $region31: #{forward.1} parent=1 // pred_check_branch
      %43 = sbr.rel (0) target = $region33
    $region32: #{forward.1} parent=1 // pred_region
      _
    $region33: #{forward.1} parent=1 // pred_fallthru
      _
    // Predicated region
    $region34: #{forward.1} parent=1 // pred_check
      _
    $region35: #{forward.1} parent=1 // pred_check_branch
      %45 = sbr.rel (0) target = $region37
    $region36: #{forward.1} parent=1 // pred_region
      _
    $region37: #{forward.1} parent=1 // pred_fallthru
      _
    // Predicated region
    $region38: #{forward.1} parent=1 // pred_check
      _
    $region39: #{forward.1} parent=1 // pred_check_branch
      %47 = sbr.rel (0) target = $region41
    $region40: #{forward.1} parent=1 // pred_region
      _
    $region41: #{forward.1} parent=1 // pred_fallthru
      _
    // Predicated region
    $region42: #{forward.1} parent=1 // pred_check
      _
    $region43: #{forward.1} parent=1 // pred_check_branch
      %49 = sbr.rel (0) target = $region45
    $region44: #{forward.1} parent=1 // pred_region
      _
    $region45: #{forward.1} parent=1 // pred_fallthru
      _
    // Predicated region
    $region46: #{forward.1} parent=1 // pred_check
      _
    $region47: #{forward.1} parent=1 // pred_check_branch
      %51 = sbr.rel (0) target = $region49
    $region48: #{forward.1} parent=1 // pred_region
      _
    $region49: #{forward.1} parent=1 // pred_fallthru
      _
    // Predicated region
    $region50: #{forward.1} parent=1 // pred_check
      _
    $region51: #{forward.1} parent=1 // pred_check_branch
      %53 = sbr.rel (0) target = $region53
    $region52: #{forward.1} parent=1 // pred_region
      %54 = dma.done [#allocation5], 18432
    $region53: #{forward.1} parent=1 // pred_fallthru
      _
    %v55 = vld [vmem:[%s0] sm:$0xff]
    %v56 = vld [vmem:[%s0 + $0x8] sm:$0xff]
    %v57 = vld [vmem:[%s0 + $0x10] sm:$0xff]
    %v58 = vld [vmem:[%s0 + $0x18] sm:$0xff]
    %v59 = vld [vmem:[%s0 + $0x20] sm:$0xff]
    %v60 = vld [vmem:[%s0 + $0x28] sm:$0xff]
    %v61 = vld [vmem:[%s0 + $0x30] sm:$0xff]
    %v62 = vld [vmem:[%s0 + $0x38] sm:$0xff]
    %v63 = vld [vmem:[%s0 + $0x40] sm:$0xff]
    %v64 = vld [vmem:[%s0 + $0x48] sm:$0xff]
    %v65 = vld [vmem:[%s0 + $0x50] sm:$0xff]
    %v66 = vld [vmem:[%s0 + $0x58] sm:$0xff]
    %v67 = vld [vmem:[%s0 + $0x60] sm:$0xff]
    %v68 = vld [vmem:[%s0 + $0x68] sm:$0xff]
    %v69 = vld [vmem:[%s0 + $0x70] sm:$0x3f]
    %v70 = vld [vmem:[%s2] sm:$0x1]
    %72 = vset.pattern.permute.xlu0 0
    %73 = vperm.xlu0 %72, %v55
    %v74 = vpop.permute.xlu0 %73
    %77 = vset.pattern.permute.xlu0 0
    %78 = vperm.xlu0 %77, %v56
    %v79 = vpop.permute.xlu0 %78
    %82 = vset.pattern.permute.xlu0 0
    %83 = vperm.xlu0 %82, %v57
    %v84 = vpop.permute.xlu0 %83
    %87 = vset.pattern.permute.xlu0 0
    %88 = vperm.xlu0 %87, %v58
    %v89 = vpop.permute.xlu0 %88
    %92 = vset.pattern.permute.xlu0 0
    %93 = vperm.xlu0 %92, %v59
    %v94 = vpop.permute.xlu0 %93
    %97 = vset.pattern.permute.xlu0 0
    %98 = vperm.xlu0 %97, %v60
    %v99 = vpop.permute.xlu0 %98
    %102 = vset.pattern.permute.xlu0 0
    %103 = vperm.xlu0 %102, %v61
    %v104 = vpop.permute.xlu0 %103
    %107 = vset.pattern.permute.xlu0 0
    %108 = vperm.xlu0 %107, %v62
    %v109 = vpop.permute.xlu0 %108
    %112 = vset.pattern.permute.xlu0 0
    %113 = vperm.xlu0 %112, %v63
    %v114 = vpop.permute.xlu0 %113
    %117 = vset.pattern.permute.xlu0 0
    %118 = vperm.xlu0 %117, %v64
    %v119 = vpop.permute.xlu0 %118
    %122 = vset.pattern.permute.xlu0 0
    %123 = vperm.xlu0 %122, %v65
    %v124 = vpop.permute.xlu0 %123
    %127 = vset.pattern.permute.xlu0 0
    %128 = vperm.xlu0 %127, %v66
    %v129 = vpop.permute.xlu0 %128
    %132 = vset.pattern.permute.xlu0 0
    %133 = vperm.xlu0 %132, %v67
    %v134 = vpop.permute.xlu0 %133
    %137 = vset.pattern.permute.xlu0 0
    %138 = vperm.xlu0 %137, %v68
    %v139 = vpop.permute.xlu0 %138
    %142 = vset.pattern.permute.xlu0 0
    %143 = vperm.xlu0 %142, %v69
    %v144 = vpop.permute.xlu0 %143
    %v146 = vlaneseq
    %v147 = vshrl.u32 %v146, 7
    %v148 = vsub.s32 0, %v147
    %v149 = vrot.slane %v70, %v148
    %v150 = vmul.f32 %v74, %v149
    %v151 = vmul.f32 %v79, %v149
    %v152 = vmul.f32 %v84, %v149
    %v153 = vmul.f32 %v89, %v149
    %v154 = vmul.f32 %v94, %v149
    %v155 = vmul.f32 %v99, %v149
    %v156 = vmul.f32 %v104, %v149
    %v157 = vmul.f32 %v109, %v149
    %v158 = vmul.f32 %v114, %v149
    %v159 = vmul.f32 %v119, %v149
    %v160 = vmul.f32 %v124, %v149
    %v161 = vmul.f32 %v129, %v149
    %v162 = vmul.f32 %v134, %v149
    %v163 = vmul.f32 %v139, %v149
    %v164 = vmul.f32 %v144, %v149
    %v165 = vadd.f32 %v150, 0.0
    %v166 = vadd.f32 %v151, 0.0
    %v167 = vadd.f32 %v152, 0.0
    %v168 = vadd.f32 %v153, 0.0
    %v169 = vadd.f32 %v154, 0.0
    %v170 = vadd.f32 %v155, 0.0
    %v171 = vadd.f32 %v156, 0.0
    %v172 = vadd.f32 %v157, 0.0
    %v173 = vadd.f32 %v158, 0.0
    %v174 = vadd.f32 %v159, 0.0
    %v175 = vadd.f32 %v160, 0.0
    %v176 = vadd.f32 %v161, 0.0
    %v177 = vadd.f32 %v162, 0.0
    %v178 = vadd.f32 %v163, 0.0
    %v179 = vadd.f32 %v164, 0.0
    %v180 = vld [vmem:[%s0 + $0x1] sm:$0xff]
    %v181 = vld [vmem:[%s0 + $0x9] sm:$0xff]
    %v182 = vld [vmem:[%s0 + $0x11] sm:$0xff]
    %v183 = vld [vmem:[%s0 + $0x19] sm:$0xff]
    %v184 = vld [vmem:[%s0 + $0x21] sm:$0xff]
    %v185 = vld [vmem:[%s0 + $0x29] sm:$0xff]
    %v186 = vld [vmem:[%s0 + $0x31] sm:$0xff]
    %v187 = vld [vmem:[%s0 + $0x39] sm:$0xff]
    %v188 = vld [vmem:[%s0 + $0x41] sm:$0xff]
    %v189 = vld [vmem:[%s0 + $0x49] sm:$0xff]
    %v190 = vld [vmem:[%s0 + $0x51] sm:$0xff]
    %v191 = vld [vmem:[%s0 + $0x59] sm:$0xff]
    %v192 = vld [vmem:[%s0 + $0x61] sm:$0xff]
    %v193 = vld [vmem:[%s0 + $0x69] sm:$0xff]
    %v194 = vld [vmem:[%s0 + $0x71] sm:$0x3f]
    %v195 = vld [vmem:[%s2 + $0x1] sm:$0x1]
    %197 = vset.pattern.permute.xlu0 0
    %198 = vperm.xlu0 %197, %v180
    %v199 = vpop.permute.xlu0 %198
    %202 = vset.pattern.permute.xlu0 0
    %203 = vperm.xlu0 %202, %v181
    %v204 = vpop.permute.xlu0 %203
    %207 = vset.pattern.permute.xlu0 0
    %208 = vperm.xlu0 %207, %v182
    %v209 = vpop.permute.xlu0 %208
    %212 = vset.pattern.permute.xlu0 0
    %213 = vperm.xlu0 %212, %v183
    %v214 = vpop.permute.xlu0 %213
    %217 = vset.pattern.permute.xlu0 0
    %218 = vperm.xlu0 %217, %v184
    %v219 = vpop.permute.xlu0 %218
    %222 = vset.pattern.permute.xlu0 0
    %223 = vperm.xlu0 %222, %v185
    %v224 = vpop.permute.xlu0 %223
    %227 = vset.pattern.permute.xlu0 0
    %228 = vperm.xlu0 %227, %v186
    %v229 = vpop.permute.xlu0 %228
    %232 = vset.pattern.permute.xlu0 0
    %233 = vperm.xlu0 %232, %v187
    %v234 = vpop.permute.xlu0 %233
    %237 = vset.pattern.permute.xlu0 0
    %238 = vperm.xlu0 %237, %v188
    %v239 = vpop.permute.xlu0 %238
    %242 = vset.pattern.permute.xlu0 0
    %243 = vperm.xlu0 %242, %v189
    %v244 = vpop.permute.xlu0 %243
    %247 = vset.pattern.permute.xlu0 0
    %248 = vperm.xlu0 %247, %v190
    %v249 = vpop.permute.xlu0 %248
    %252 = vset.pattern.permute.xlu0 0
    %253 = vperm.xlu0 %252, %v191
    %v254 = vpop.permute.xlu0 %253
    %257 = vset.pattern.permute.xlu0 0
    %258 = vperm.xlu0 %257, %v192
    %v259 = vpop.permute.xlu0 %258
    %262 = vset.pattern.permute.xlu0 0
    %263 = vperm.xlu0 %262, %v193
    %v264 = vpop.permute.xlu0 %263
    %267 = vset.pattern.permute.xlu0 0
    %268 = vperm.xlu0 %267, %v194
    %v269 = vpop.permute.xlu0 %268
    %v271 = vlaneseq
    %v272 = vshrl.u32 %v271, 7
    %v273 = vsub.s32 0, %v272
    %v274 = vrot.slane %v195, %v273
    %v275 = vmul.f32 %v199, %v274
    %v276 = vmul.f32 %v204, %v274
    %v277 = vmul.f32 %v209, %v274
    %v278 = vmul.f32 %v214, %v274
    %v279 = vmul.f32 %v219, %v274
    %v280 = vmul.f32 %v224, %v274
    %v281 = vmul.f32 %v229, %v274
    %v282 = vmul.f32 %v234, %v274
    %v283 = vmul.f32 %v239, %v274
    %v284 = vmul.f32 %v244, %v274
    %v285 = vmul.f32 %v249, %v274
    %v286 = vmul.f32 %v254, %v274
    %v287 = vmul.f32 %v259, %v274
    %v288 = vmul.f32 %v264, %v274
    %v289 = vmul.f32 %v269, %v274
    %v290 = vadd.f32 %v165, %v275
    %v291 = vadd.f32 %v166, %v276
    %v292 = vadd.f32 %v167, %v277
    %v293 = vadd.f32 %v168, %v278
    %v294 = vadd.f32 %v169, %v279
    %v295 = vadd.f32 %v170, %v280
    %v296 = vadd.f32 %v171, %v281
    %v297 = vadd.f32 %v172, %v282
    %v298 = vadd.f32 %v173, %v283
    %v299 = vadd.f32 %v174, %v284
    %v300 = vadd.f32 %v175, %v285
    %v301 = vadd.f32 %v176, %v286
    %v302 = vadd.f32 %v177, %v287
    %v303 = vadd.f32 %v178, %v288
    %v304 = vadd.f32 %v179, %v289
    %v305 = vld [vmem:[%s0 + $0x2] sm:$0xff]
    %v306 = vld [vmem:[%s0 + $0xa] sm:$0xff]
    %v307 = vld [vmem:[%s0 + $0x12] sm:$0xff]
    %v308 = vld [vmem:[%s0 + $0x1a] sm:$0xff]
    %v309 = vld [vmem:[%s0 + $0x22] sm:$0xff]
    %v310 = vld [vmem:[%s0 + $0x2a] sm:$0xff]
    %v311 = vld [vmem:[%s0 + $0x32] sm:$0xff]
    %v312 = vld [vmem:[%s0 + $0x3a] sm:$0xff]
    %v313 = vld [vmem:[%s0 + $0x42] sm:$0xff]
    %v314 = vld [vmem:[%s0 + $0x4a] sm:$0xff]
    %v315 = vld [vmem:[%s0 + $0x52] sm:$0xff]
    %v316 = vld [vmem:[%s0 + $0x5a] sm:$0xff]
    %v317 = vld [vmem:[%s0 + $0x62] sm:$0xff]
    %v318 = vld [vmem:[%s0 + $0x6a] sm:$0xff]
    %v319 = vld [vmem:[%s0 + $0x72] sm:$0x3f]
    %v320 = vld [vmem:[%s2 + $0x2] sm:$0x1]
    %322 = vset.pattern.permute.xlu0 0
    %323 = vperm.xlu0 %322, %v305
    %v324 = vpop.permute.xlu0 %323
    %327 = vset.pattern.permute.xlu0 0
    %328 = vperm.xlu0 %327, %v306
    %v329 = vpop.permute.xlu0 %328
    %332 = vset.pattern.permute.xlu0 0
    %333 = vperm.xlu0 %332, %v307
    %v334 = vpop.permute.xlu0 %333
    %337 = vset.pattern.permute.xlu0 0
    %338 = vperm.xlu0 %337, %v308
    %v339 = vpop.permute.xlu0 %338
    %342 = vset.pattern.permute.xlu0 0
    %343 = vperm.xlu0 %342, %v309
    %v344 = vpop.permute.xlu0 %343
    %347 = vset.pattern.permute.xlu0 0
    %348 = vperm.xlu0 %347, %v310
    %v349 = vpop.permute.xlu0 %348
    %352 = vset.pattern.permute.xlu0 0
    %353 = vperm.xlu0 %352, %v311
    %v354 = vpop.permute.xlu0 %353
    %357 = vset.pattern.permute.xlu0 0
    %358 = vperm.xlu0 %357, %v312
    %v359 = vpop.permute.xlu0 %358
    %362 = vset.pattern.permute.xlu0 0
    %363 = vperm.xlu0 %362, %v313
    %v364 = vpop.permute.xlu0 %363
    %367 = vset.pattern.permute.xlu0 0
    %368 = vperm.xlu0 %367, %v314
    %v369 = vpop.permute.xlu0 %368
    %372 = vset.pattern.permute.xlu0 0
    %373 = vperm.xlu0 %372, %v315
    %v374 = vpop.permute.xlu0 %373
    %377 = vset.pattern.permute.xlu0 0
    %378 = vperm.xlu0 %377, %v316
    %v379 = vpop.permute.xlu0 %378
    %382 = vset.pattern.permute.xlu0 0
    %383 = vperm.xlu0 %382, %v317
    %v384 = vpop.permute.xlu0 %383
    %387 = vset.pattern.permute.xlu0 0
    %388 = vperm.xlu0 %387, %v318
    %v389 = vpop.permute.xlu0 %388
    %392 = vset.pattern.permute.xlu0 0
    %393 = vperm.xlu0 %392, %v319
    %v394 = vpop.permute.xlu0 %393
    %v396 = vlaneseq
    %v397 = vshrl.u32 %v396, 7
    %v398 = vsub.s32 0, %v397
    %v399 = vrot.slane %v320, %v398
    %v400 = vmul.f32 %v324, %v399
    %v401 = vmul.f32 %v329, %v399
    %v402 = vmul.f32 %v334, %v399
    %v403 = vmul.f32 %v339, %v399
    %v404 = vmul.f32 %v344, %v399
    %v405 = vmul.f32 %v349, %v399
    %v406 = vmul.f32 %v354, %v399
    %v407 = vmul.f32 %v359, %v399
    %v408 = vmul.f32 %v364, %v399
    %v409 = vmul.f32 %v369, %v399
    %v410 = vmul.f32 %v374, %v399
    %v411 = vmul.f32 %v379, %v399
    %v412 = vmul.f32 %v384, %v399
    %v413 = vmul.f32 %v389, %v399
    %v414 = vmul.f32 %v394, %v399
    %v415 = vadd.f32 %v290, %v400
    %v416 = vadd.f32 %v291, %v401
    %v417 = vadd.f32 %v292, %v402
    %v418 = vadd.f32 %v293, %v403
    %v419 = vadd.f32 %v294, %v404
    %v420 = vadd.f32 %v295, %v405
    %v421 = vadd.f32 %v296, %v406
    %v422 = vadd.f32 %v297, %v407
    %v423 = vadd.f32 %v298, %v408
    %v424 = vadd.f32 %v299, %v409
    %v425 = vadd.f32 %v300, %v410
    %v426 = vadd.f32 %v301, %v411
    %v427 = vadd.f32 %v302, %v412
    %v428 = vadd.f32 %v303, %v413
    %v429 = vadd.f32 %v304, %v414
    %v430 = vld [vmem:[%s0 + $0xc] sm:$0xff]
    %v431 = vld [vmem:[%s0 + $0x14] sm:$0xff]
    %v432 = vld [vmem:[%s0 + $0x1c] sm:$0xff]
    %v433 = vld [vmem:[%s0 + $0x24] sm:$0xff]
    %v434 = vld [vmem:[%s0 + $0x2c] sm:$0xff]
    %v435 = vld [vmem:[%s0 + $0x34] sm:$0xff]
    %v436 = vld [vmem:[%s0 + $0x3c] sm:$0xff]
    %v437 = vld [vmem:[%s0 + $0x44] sm:$0xff]
    %v438 = vld [vmem:[%s0 + $0x4c] sm:$0xff]
    %v439 = vld [vmem:[%s0 + $0x54] sm:$0xff]
    %v440 = vld [vmem:[%s0 + $0x5c] sm:$0xff]
    %v441 = vld [vmem:[%s0 + $0x64] sm:$0xff]
    %v442 = vld [vmem:[%s0 + $0x6c] sm:$0xff]
    %v443 = vld [vmem:[%s0 + $0x74] sm:$0xff]
    %v444 = vld [vmem:[%s0 + $0x7c] sm:$0x3f]
    %v445 = vld [vmem:[%s2 + $0x3] sm:$0x1]
    %447 = vset.pattern.permute.xlu0 0
    %448 = vperm.xlu0 %447, %v430
    %v449 = vpop.permute.xlu0 %448
    %452 = vset.pattern.permute.xlu0 0
    %453 = vperm.xlu0 %452, %v431
    %v454 = vpop.permute.xlu0 %453
    %457 = vset.pattern.permute.xlu0 0
    %458 = vperm.xlu0 %457, %v432
    %v459 = vpop.permute.xlu0 %458
    %462 = vset.pattern.permute.xlu0 0
    %463 = vperm.xlu0 %462, %v433
    %v464 = vpop.permute.xlu0 %463
    %467 = vset.pattern.permute.xlu0 0
    %468 = vperm.xlu0 %467, %v434
    %v469 = vpop.permute.xlu0 %468
    %472 = vset.pattern.permute.xlu0 0
    %473 = vperm.xlu0 %472, %v435
    %v474 = vpop.permute.xlu0 %473
    %477 = vset.pattern.permute.xlu0 0
    %478 = vperm.xlu0 %477, %v436
    %v479 = vpop.permute.xlu0 %478
    %482 = vset.pattern.permute.xlu0 0
    %483 = vperm.xlu0 %482, %v437
    %v484 = vpop.permute.xlu0 %483
    %487 = vset.pattern.permute.xlu0 0
    %488 = vperm.xlu0 %487, %v438
    %v489 = vpop.permute.xlu0 %488
    %492 = vset.pattern.permute.xlu0 0
    %493 = vperm.xlu0 %492, %v439
    %v494 = vpop.permute.xlu0 %493
    %497 = vset.pattern.permute.xlu0 0
    %498 = vperm.xlu0 %497, %v440
    %v499 = vpop.permute.xlu0 %498
    %502 = vset.pattern.permute.xlu0 0
    %503 = vperm.xlu0 %502, %v441
    %v504 = vpop.permute.xlu0 %503
    %507 = vset.pattern.permute.xlu0 0
    %508 = vperm.xlu0 %507, %v442
    %v509 = vpop.permute.xlu0 %508
    %512 = vset.pattern.permute.xlu0 0
    %513 = vperm.xlu0 %512, %v443
    %v514 = vpop.permute.xlu0 %513
    %517 = vset.pattern.permute.xlu0 0
    %518 = vperm.xlu0 %517, %v444
    %v519 = vpop.permute.xlu0 %518
    %v521 = vlaneseq
    %v522 = vshrl.u32 %v521, 7
    %v523 = vsub.s32 0, %v522
    %v524 = vrot.slane %v445, %v523
    %v525 = vmul.f32 %v449, %v524
    %v526 = vmul.f32 %v454, %v524
    %v527 = vmul.f32 %v459, %v524
    %v528 = vmul.f32 %v464, %v524
    %v529 = vmul.f32 %v469, %v524
    %v530 = vmul.f32 %v474, %v524
    %v531 = vmul.f32 %v479, %v524
    %v532 = vmul.f32 %v484, %v524
    %v533 = vmul.f32 %v489, %v524
    %v534 = vmul.f32 %v494, %v524
    %v535 = vmul.f32 %v499, %v524
    %v536 = vmul.f32 %v504, %v524
    %v537 = vmul.f32 %v509, %v524
    %v538 = vmul.f32 %v514, %v524
    %v539 = vmul.f32 %v519, %v524
    %v540 = vadd.f32 %v415, %v525
    %v541 = vadd.f32 %v416, %v526
    %v542 = vadd.f32 %v417, %v527
    %v543 = vadd.f32 %v418, %v528
    %v544 = vadd.f32 %v419, %v529
    %v545 = vadd.f32 %v420, %v530
    %v546 = vadd.f32 %v421, %v531
    %v547 = vadd.f32 %v422, %v532
    %v548 = vadd.f32 %v423, %v533
    %v549 = vadd.f32 %v424, %v534
    %v550 = vadd.f32 %v425, %v535
    %v551 = vadd.f32 %v426, %v536
    %v552 = vadd.f32 %v427, %v537
    %v553 = vadd.f32 %v428, %v538
    %v554 = vadd.f32 %v429, %v539
    %v555 = vld [vmem:[%s0 + $0xd] sm:$0xff]
    %v556 = vld [vmem:[%s0 + $0x15] sm:$0xff]
    %v557 = vld [vmem:[%s0 + $0x1d] sm:$0xff]
    %v558 = vld [vmem:[%s0 + $0x25] sm:$0xff]
    %v559 = vld [vmem:[%s0 + $0x2d] sm:$0xff]
    %v560 = vld [vmem:[%s0 + $0x35] sm:$0xff]
    %v561 = vld [vmem:[%s0 + $0x3d] sm:$0xff]
    %v562 = vld [vmem:[%s0 + $0x45] sm:$0xff]
    %v563 = vld [vmem:[%s0 + $0x4d] sm:$0xff]
    %v564 = vld [vmem:[%s0 + $0x55] sm:$0xff]
    %v565 = vld [vmem:[%s0 + $0x5d] sm:$0xff]
    %v566 = vld [vmem:[%s0 + $0x65] sm:$0xff]
    %v567 = vld [vmem:[%s0 + $0x6d] sm:$0xff]
    %v568 = vld [vmem:[%s0 + $0x75] sm:$0xff]
    %v569 = vld [vmem:[%s0 + $0x7d] sm:$0x3f]
    %v570 = vld [vmem:[%s2 + $0x4] sm:$0x1]
    %572 = vset.pattern.permute.xlu0 0
    %573 = vperm.xlu0 %572, %v555
    %v574 = vpop.permute.xlu0 %573
    %577 = vset.pattern.permute.xlu0 0
    %578 = vperm.xlu0 %577, %v556
    %v579 = vpop.permute.xlu0 %578
    %582 = vset.pattern.permute.xlu0 0
    %583 = vperm.xlu0 %582, %v557
    %v584 = vpop.permute.xlu0 %583
    %587 = vset.pattern.permute.xlu0 0
    %588 = vperm.xlu0 %587, %v558
    %v589 = vpop.permute.xlu0 %588
    %592 = vset.pattern.permute.xlu0 0
    %593 = vperm.xlu0 %592, %v559
    %v594 = vpop.permute.xlu0 %593
    %597 = vset.pattern.permute.xlu0 0
    %598 = vperm.xlu0 %597, %v560
    %v599 = vpop.permute.xlu0 %598
    %602 = vset.pattern.permute.xlu0 0
    %603 = vperm.xlu0 %602, %v561
    %v604 = vpop.permute.xlu0 %603
    %607 = vset.pattern.permute.xlu0 0
    %608 = vperm.xlu0 %607, %v562
    %v609 = vpop.permute.xlu0 %608
    %612 = vset.pattern.permute.xlu0 0
    %613 = vperm.xlu0 %612, %v563
    %v614 = vpop.permute.xlu0 %613
    %617 = vset.pattern.permute.xlu0 0
    %618 = vperm.xlu0 %617, %v564
    %v619 = vpop.permute.xlu0 %618
    %622 = vset.pattern.permute.xlu0 0
    %623 = vperm.xlu0 %622, %v565
    %v624 = vpop.permute.xlu0 %623
    %627 = vset.pattern.permute.xlu0 0
    %628 = vperm.xlu0 %627, %v566
    %v629 = vpop.permute.xlu0 %628
    %632 = vset.pattern.permute.xlu0 0
    %633 = vperm.xlu0 %632, %v567
    %v634 = vpop.permute.xlu0 %633
    %637 = vset.pattern.permute.xlu0 0
    %638 = vperm.xlu0 %637, %v568
    %v639 = vpop.permute.xlu0 %638
    %642 = vset.pattern.permute.xlu0 0
    %643 = vperm.xlu0 %642, %v569
    %v644 = vpop.permute.xlu0 %643
    %v646 = vlaneseq
    %v647 = vshrl.u32 %v646, 7
    %v648 = vsub.s32 0, %v647
    %v649 = vrot.slane %v570, %v648
    %v650 = vmul.f32 %v574, %v649
    %v651 = vmul.f32 %v579, %v649
    %v652 = vmul.f32 %v584, %v649
    %v653 = vmul.f32 %v589, %v649
    %v654 = vmul.f32 %v594, %v649
    %v655 = vmul.f32 %v599, %v649
    %v656 = vmul.f32 %v604, %v649
    %v657 = vmul.f32 %v609, %v649
    %v658 = vmul.f32 %v614, %v649
    %v659 = vmul.f32 %v619, %v649
    %v660 = vmul.f32 %v624, %v649
    %v661 = vmul.f32 %v629, %v649
    %v662 = vmul.f32 %v634, %v649
    %v663 = vmul.f32 %v639, %v649
    %v664 = vmul.f32 %v644, %v649
    %v665 = vadd.f32 %v540, %v650
    %v666 = vadd.f32 %v541, %v651
    %v667 = vadd.f32 %v542, %v652
    %v668 = vadd.f32 %v543, %v653
    %v669 = vadd.f32 %v544, %v654
    %v670 = vadd.f32 %v545, %v655
    %v671 = vadd.f32 %v546, %v656
    %v672 = vadd.f32 %v547, %v657
    %v673 = vadd.f32 %v548, %v658
    %v674 = vadd.f32 %v549, %v659
    %v675 = vadd.f32 %v550, %v660
    %v676 = vadd.f32 %v551, %v661
    %v677 = vadd.f32 %v552, %v662
    %v678 = vadd.f32 %v553, %v663
    %v679 = vadd.f32 %v554, %v664
    %v680 = vld [vmem:[%s0 + $0xe] sm:$0xff]
    %v681 = vld [vmem:[%s0 + $0x16] sm:$0xff]
    %v682 = vld [vmem:[%s0 + $0x1e] sm:$0xff]
    %v683 = vld [vmem:[%s0 + $0x26] sm:$0xff]
    %v684 = vld [vmem:[%s0 + $0x2e] sm:$0xff]
    %v685 = vld [vmem:[%s0 + $0x36] sm:$0xff]
    %v686 = vld [vmem:[%s0 + $0x3e] sm:$0xff]
    %v687 = vld [vmem:[%s0 + $0x46] sm:$0xff]
    %v688 = vld [vmem:[%s0 + $0x4e] sm:$0xff]
    %v689 = vld [vmem:[%s0 + $0x56] sm:$0xff]
    %v690 = vld [vmem:[%s0 + $0x5e] sm:$0xff]
    %v691 = vld [vmem:[%s0 + $0x66] sm:$0xff]
    %v692 = vld [vmem:[%s0 + $0x6e] sm:$0xff]
    %v693 = vld [vmem:[%s0 + $0x76] sm:$0xff]
    %v694 = vld [vmem:[%s0 + $0x7e] sm:$0x3f]
    %v695 = vld [vmem:[%s2 + $0x5] sm:$0x1]
    %697 = vset.pattern.permute.xlu0 0
    %698 = vperm.xlu0 %697, %v680
    %v699 = vpop.permute.xlu0 %698
    %702 = vset.pattern.permute.xlu0 0
    %703 = vperm.xlu0 %702, %v681
    %v704 = vpop.permute.xlu0 %703
    %707 = vset.pattern.permute.xlu0 0
    %708 = vperm.xlu0 %707, %v682
    %v709 = vpop.permute.xlu0 %708
    %712 = vset.pattern.permute.xlu0 0
    %713 = vperm.xlu0 %712, %v683
    %v714 = vpop.permute.xlu0 %713
    %717 = vset.pattern.permute.xlu0 0
    %718 = vperm.xlu0 %717, %v684
    %v719 = vpop.permute.xlu0 %718
    %722 = vset.pattern.permute.xlu0 0
    %723 = vperm.xlu0 %722, %v685
    %v724 = vpop.permute.xlu0 %723
    %727 = vset.pattern.permute.xlu0 0
    %728 = vperm.xlu0 %727, %v686
    %v729 = vpop.permute.xlu0 %728
    %732 = vset.pattern.permute.xlu0 0
    %733 = vperm.xlu0 %732, %v687
    %v734 = vpop.permute.xlu0 %733
    %737 = vset.pattern.permute.xlu0 0
    %738 = vperm.xlu0 %737, %v688
    %v739 = vpop.permute.xlu0 %738
    %742 = vset.pattern.permute.xlu0 0
    %743 = vperm.xlu0 %742, %v689
    %v744 = vpop.permute.xlu0 %743
    %747 = vset.pattern.permute.xlu0 0
    %748 = vperm.xlu0 %747, %v690
    %v749 = vpop.permute.xlu0 %748
    %752 = vset.pattern.permute.xlu0 0
    %753 = vperm.xlu0 %752, %v691
    %v754 = vpop.permute.xlu0 %753
    %757 = vset.pattern.permute.xlu0 0
    %758 = vperm.xlu0 %757, %v692
    %v759 = vpop.permute.xlu0 %758
    %762 = vset.pattern.permute.xlu0 0
    %763 = vperm.xlu0 %762, %v693
    %v764 = vpop.permute.xlu0 %763
    %767 = vset.pattern.permute.xlu0 0
    %768 = vperm.xlu0 %767, %v694
    %v769 = vpop.permute.xlu0 %768
    %v771 = vlaneseq
    %v772 = vshrl.u32 %v771, 7
    %v773 = vsub.s32 0, %v772
    %v774 = vrot.slane %v695, %v773
    %v775 = vmul.f32 %v699, %v774
    %v776 = vmul.f32 %v704, %v774
    %v777 = vmul.f32 %v709, %v774
    %v778 = vmul.f32 %v714, %v774
    %v779 = vmul.f32 %v719, %v774
    %v780 = vmul.f32 %v724, %v774
    %v781 = vmul.f32 %v729, %v774
    %v782 = vmul.f32 %v734, %v774
    %v783 = vmul.f32 %v739, %v774
    %v784 = vmul.f32 %v744, %v774
    %v785 = vmul.f32 %v749, %v774
    %v786 = vmul.f32 %v754, %v774
    %v787 = vmul.f32 %v759, %v774
    %v788 = vmul.f32 %v764, %v774
    %v789 = vmul.f32 %v769, %v774
    %v790 = vadd.f32 %v665, %v775
    %v791 = vadd.f32 %v666, %v776
    %v792 = vadd.f32 %v667, %v777
    %v793 = vadd.f32 %v668, %v778
    %v794 = vadd.f32 %v669, %v779
    %v795 = vadd.f32 %v670, %v780
    %v796 = vadd.f32 %v671, %v781
    %v797 = vadd.f32 %v672, %v782
    %v798 = vadd.f32 %v673, %v783
    %v799 = vadd.f32 %v674, %v784
    %v800 = vadd.f32 %v675, %v785
    %v801 = vadd.f32 %v676, %v786
    %v802 = vadd.f32 %v677, %v787
    %v803 = vadd.f32 %v678, %v788
    %v804 = vadd.f32 %v679, %v789
    %v805 = vld [vmem:[%s0 + $0x18] sm:$0xff]
    %v806 = vld [vmem:[%s0 + $0x20] sm:$0xff]
    %v807 = vld [vmem:[%s0 + $0x28] sm:$0xff]
    %v808 = vld [vmem:[%s0 + $0x30] sm:$0xff]
    %v809 = vld [vmem:[%s0 + $0x38] sm:$0xff]
    %v810 = vld [vmem:[%s0 + $0x40] sm:$0xff]
    %v811 = vld [vmem:[%s0 + $0x48] sm:$0xff]
    %v812 = vld [vmem:[%s0 + $0x50] sm:$0xff]
    %v813 = vld [vmem:[%s0 + $0x58] sm:$0xff]
    %v814 = vld [vmem:[%s0 + $0x60] sm:$0xff]
    %v815 = vld [vmem:[%s0 + $0x68] sm:$0xff]
    %v816 = vld [vmem:[%s0 + $0x70] sm:$0xff]
    %v817 = vld [vmem:[%s0 + $0x78] sm:$0xff]
    %v818 = vld [vmem:[%s0 + $0x80] sm:$0xff]
    %v819 = vld [vmem:[%s0 + $0x88] sm:$0x3f]
    %v820 = vld [vmem:[%s2 + $0x6] sm:$0x1]
    %822 = vset.pattern.permute.xlu0 0
    %823 = vperm.xlu0 %822, %v805
    %v824 = vpop.permute.xlu0 %823
    %827 = vset.pattern.permute.xlu0 0
    %828 = vperm.xlu0 %827, %v806
    %v829 = vpop.permute.xlu0 %828
    %832 = vset.pattern.permute.xlu0 0
    %833 = vperm.xlu0 %832, %v807
    %v834 = vpop.permute.xlu0 %833
    %837 = vset.pattern.permute.xlu0 0
    %838 = vperm.xlu0 %837, %v808
    %v839 = vpop.permute.xlu0 %838
    %842 = vset.pattern.permute.xlu0 0
    %843 = vperm.xlu0 %842, %v809
    %v844 = vpop.permute.xlu0 %843
    %847 = vset.pattern.permute.xlu0 0
    %848 = vperm.xlu0 %847, %v810
    %v849 = vpop.permute.xlu0 %848
    %852 = vset.pattern.permute.xlu0 0
    %853 = vperm.xlu0 %852, %v811
    %v854 = vpop.permute.xlu0 %853
    %857 = vset.pattern.permute.xlu0 0
    %858 = vperm.xlu0 %857, %v812
    %v859 = vpop.permute.xlu0 %858
    %862 = vset.pattern.permute.xlu0 0
    %863 = vperm.xlu0 %862, %v813
    %v864 = vpop.permute.xlu0 %863
    %867 = vset.pattern.permute.xlu0 0
    %868 = vperm.xlu0 %867, %v814
    %v869 = vpop.permute.xlu0 %868
    %872 = vset.pattern.permute.xlu0 0
    %873 = vperm.xlu0 %872, %v815
    %v874 = vpop.permute.xlu0 %873
    %877 = vset.pattern.permute.xlu0 0
    %878 = vperm.xlu0 %877, %v816
    %v879 = vpop.permute.xlu0 %878
    %882 = vset.pattern.permute.xlu0 0
    %883 = vperm.xlu0 %882, %v817
    %v884 = vpop.permute.xlu0 %883
    %887 = vset.pattern.permute.xlu0 0
    %888 = vperm.xlu0 %887, %v818
    %v889 = vpop.permute.xlu0 %888
    %892 = vset.pattern.permute.xlu0 0
    %893 = vperm.xlu0 %892, %v819
    %v894 = vpop.permute.xlu0 %893
    %v896 = vlaneseq
    %v897 = vshrl.u32 %v896, 7
    %v898 = vsub.s32 0, %v897
    %v899 = vrot.slane %v820, %v898
    %v900 = vmul.f32 %v824, %v899
    %v901 = vmul.f32 %v829, %v899
    %v902 = vmul.f32 %v834, %v899
    %v903 = vmul.f32 %v839, %v899
    %v904 = vmul.f32 %v844, %v899
    %v905 = vmul.f32 %v849, %v899
    %v906 = vmul.f32 %v854, %v899
    %v907 = vmul.f32 %v859, %v899
    %v908 = vmul.f32 %v864, %v899
    %v909 = vmul.f32 %v869, %v899
    %v910 = vmul.f32 %v874, %v899
    %v911 = vmul.f32 %v879, %v899
    %v912 = vmul.f32 %v884, %v899
    %v913 = vmul.f32 %v889, %v899
    %v914 = vmul.f32 %v894, %v899
    %v915 = vadd.f32 %v790, %v900
    %v916 = vadd.f32 %v791, %v901
    %v917 = vadd.f32 %v792, %v902
    %v918 = vadd.f32 %v793, %v903
    %v919 = vadd.f32 %v794, %v904
    %v920 = vadd.f32 %v795, %v905
    %v921 = vadd.f32 %v796, %v906
    %v922 = vadd.f32 %v797, %v907
    %v923 = vadd.f32 %v798, %v908
    %v924 = vadd.f32 %v799, %v909
    %v925 = vadd.f32 %v800, %v910
    %v926 = vadd.f32 %v801, %v911
    %v927 = vadd.f32 %v802, %v912
    %v928 = vadd.f32 %v803, %v913
    %v929 = vadd.f32 %v804, %v914
    %v930 = vld [vmem:[%s0 + $0x19] sm:$0xff]
    %v931 = vld [vmem:[%s0 + $0x21] sm:$0xff]
    %v932 = vld [vmem:[%s0 + $0x29] sm:$0xff]
    %v933 = vld [vmem:[%s0 + $0x31] sm:$0xff]
    %v934 = vld [vmem:[%s0 + $0x39] sm:$0xff]
    %v935 = vld [vmem:[%s0 + $0x41] sm:$0xff]
    %v936 = vld [vmem:[%s0 + $0x49] sm:$0xff]
    %v937 = vld [vmem:[%s0 + $0x51] sm:$0xff]
    %v938 = vld [vmem:[%s0 + $0x59] sm:$0xff]
    %v939 = vld [vmem:[%s0 + $0x61] sm:$0xff]
    %v940 = vld [vmem:[%s0 + $0x69] sm:$0xff]
    %v941 = vld [vmem:[%s0 + $0x71] sm:$0xff]
    %v942 = vld [vmem:[%s0 + $0x79] sm:$0xff]
    %v943 = vld [vmem:[%s0 + $0x81] sm:$0xff]
    %v944 = vld [vmem:[%s0 + $0x89] sm:$0x3f]
    %v945 = vld [vmem:[%s2 + $0x7] sm:$0x1]
    %947 = vset.pattern.permute.xlu0 0
    %948 = vperm.xlu0 %947, %v930
    %v949 = vpop.permute.xlu0 %948
    %952 = vset.pattern.permute.xlu0 0
    %953 = vperm.xlu0 %952, %v931
    %v954 = vpop.permute.xlu0 %953
    %957 = vset.pattern.permute.xlu0 0
    %958 = vperm.xlu0 %957, %v932
    %v959 = vpop.permute.xlu0 %958
    %962 = vset.pattern.permute.xlu0 0
    %963 = vperm.xlu0 %962, %v933
    %v964 = vpop.permute.xlu0 %963
    %967 = vset.pattern.permute.xlu0 0
    %968 = vperm.xlu0 %967, %v934
    %v969 = vpop.permute.xlu0 %968
    %972 = vset.pattern.permute.xlu0 0
    %973 = vperm.xlu0 %972, %v935
    %v974 = vpop.permute.xlu0 %973
    %977 = vset.pattern.permute.xlu0 0
    %978 = vperm.xlu0 %977, %v936
    %v979 = vpop.permute.xlu0 %978
    %982 = vset.pattern.permute.xlu0 0
    %983 = vperm.xlu0 %982, %v937
    %v984 = vpop.permute.xlu0 %983
    %987 = vset.pattern.permute.xlu0 0
    %988 = vperm.xlu0 %987, %v938
    %v989 = vpop.permute.xlu0 %988
    %992 = vset.pattern.permute.xlu0 0
    %993 = vperm.xlu0 %992, %v939
    %v994 = vpop.permute.xlu0 %993
    %997 = vset.pattern.permute.xlu0 0
    %998 = vperm.xlu0 %997, %v940
    %v999 = vpop.permute.xlu0 %998
    %1002 = vset.pattern.permute.xlu0 0
    %1003 = vperm.xlu0 %1002, %v941
    %v1004 = vpop.permute.xlu0 %1003
    %1007 = vset.pattern.permute.xlu0 0
    %1008 = vperm.xlu0 %1007, %v942
    %v1009 = vpop.permute.xlu0 %1008
    %1012 = vset.pattern.permute.xlu0 0
    %1013 = vperm.xlu0 %1012, %v943
    %v1014 = vpop.permute.xlu0 %1013
    %1017 = vset.pattern.permute.xlu0 0
    %1018 = vperm.xlu0 %1017, %v944
    %v1019 = vpop.permute.xlu0 %1018
    %v1021 = vlaneseq
    %v1022 = vshrl.u32 %v1021, 7
    %v1023 = vsub.s32 0, %v1022
    %v1024 = vrot.slane %v945, %v1023
    %v1025 = vmul.f32 %v949, %v1024
    %v1026 = vmul.f32 %v954, %v1024
    %v1027 = vmul.f32 %v959, %v1024
    %v1028 = vmul.f32 %v964, %v1024
    %v1029 = vmul.f32 %v969, %v1024
    %v1030 = vmul.f32 %v974, %v1024
    %v1031 = vmul.f32 %v979, %v1024
    %v1032 = vmul.f32 %v984, %v1024
    %v1033 = vmul.f32 %v989, %v1024
    %v1034 = vmul.f32 %v994, %v1024
    %v1035 = vmul.f32 %v999, %v1024
    %v1036 = vmul.f32 %v1004, %v1024
    %v1037 = vmul.f32 %v1009, %v1024
    %v1038 = vmul.f32 %v1014, %v1024
    %v1039 = vmul.f32 %v1019, %v1024
    %v1040 = vadd.f32 %v915, %v1025
    %v1041 = vadd.f32 %v916, %v1026
    %v1042 = vadd.f32 %v917, %v1027
    %v1043 = vadd.f32 %v918, %v1028
    %v1044 = vadd.f32 %v919, %v1029
    %v1045 = vadd.f32 %v920, %v1030
    %v1046 = vadd.f32 %v921, %v1031
    %v1047 = vadd.f32 %v922, %v1032
    %v1048 = vadd.f32 %v923, %v1033
    %v1049 = vadd.f32 %v924, %v1034
    %v1050 = vadd.f32 %v925, %v1035
    %v1051 = vadd.f32 %v926, %v1036
    %v1052 = vadd.f32 %v927, %v1037
    %v1053 = vadd.f32 %v928, %v1038
    %v1054 = vadd.f32 %v929, %v1039
    %v1055 = vld [vmem:[%s0 + $0x1a] sm:$0xff]
    %v1056 = vld [vmem:[%s0 + $0x22] sm:$0xff]
    %v1057 = vld [vmem:[%s0 + $0x2a] sm:$0xff]
    %v1058 = vld [vmem:[%s0 + $0x32] sm:$0xff]
    %v1059 = vld [vmem:[%s0 + $0x3a] sm:$0xff]
    %v1060 = vld [vmem:[%s0 + $0x42] sm:$0xff]
    %v1061 = vld [vmem:[%s0 + $0x4a] sm:$0xff]
    %v1062 = vld [vmem:[%s0 + $0x52] sm:$0xff]
    %v1063 = vld [vmem:[%s0 + $0x5a] sm:$0xff]
    %v1064 = vld [vmem:[%s0 + $0x62] sm:$0xff]
    %v1065 = vld [vmem:[%s0 + $0x6a] sm:$0xff]
    %v1066 = vld [vmem:[%s0 + $0x72] sm:$0xff]
    %v1067 = vld [vmem:[%s0 + $0x7a] sm:$0xff]
    %v1068 = vld [vmem:[%s0 + $0x82] sm:$0xff]
    %v1069 = vld [vmem:[%s0 + $0x8a] sm:$0x3f]
    %v1070 = vld [vmem:[%s2 + $0x8] sm:$0x1]
    %1072 = vset.pattern.permute.xlu0 0
    %1073 = vperm.xlu0 %1072, %v1055
    %v1074 = vpop.permute.xlu0 %1073
    %1077 = vset.pattern.permute.xlu0 0
    %1078 = vperm.xlu0 %1077, %v1056
    %v1079 = vpop.permute.xlu0 %1078
    %1082 = vset.pattern.permute.xlu0 0
    %1083 = vperm.xlu0 %1082, %v1057
    %v1084 = vpop.permute.xlu0 %1083
    %1087 = vset.pattern.permute.xlu0 0
    %1088 = vperm.xlu0 %1087, %v1058
    %v1089 = vpop.permute.xlu0 %1088
    %1092 = vset.pattern.permute.xlu0 0
    %1093 = vperm.xlu0 %1092, %v1059
    %v1094 = vpop.permute.xlu0 %1093
    %1097 = vset.pattern.permute.xlu0 0
    %1098 = vperm.xlu0 %1097, %v1060
    %v1099 = vpop.permute.xlu0 %1098
    %1102 = vset.pattern.permute.xlu0 0
    %1103 = vperm.xlu0 %1102, %v1061
    %v1104 = vpop.permute.xlu0 %1103
    %1107 = vset.pattern.permute.xlu0 0
    %1108 = vperm.xlu0 %1107, %v1062
    %v1109 = vpop.permute.xlu0 %1108
    %1112 = vset.pattern.permute.xlu0 0
    %1113 = vperm.xlu0 %1112, %v1063
    %v1114 = vpop.permute.xlu0 %1113
    %1117 = vset.pattern.permute.xlu0 0
    %1118 = vperm.xlu0 %1117, %v1064
    %v1119 = vpop.permute.xlu0 %1118
    %1122 = vset.pattern.permute.xlu0 0
    %1123 = vperm.xlu0 %1122, %v1065
    %v1124 = vpop.permute.xlu0 %1123
    %1127 = vset.pattern.permute.xlu0 0
    %1128 = vperm.xlu0 %1127, %v1066
    %v1129 = vpop.permute.xlu0 %1128
    %1132 = vset.pattern.permute.xlu0 0
    %1133 = vperm.xlu0 %1132, %v1067
    %v1134 = vpop.permute.xlu0 %1133
    %1137 = vset.pattern.permute.xlu0 0
    %1138 = vperm.xlu0 %1137, %v1068
    %v1139 = vpop.permute.xlu0 %1138
    %1142 = vset.pattern.permute.xlu0 0
    %1143 = vperm.xlu0 %1142, %v1069
    %v1144 = vpop.permute.xlu0 %1143
    %v1146 = vlaneseq
    %v1147 = vshrl.u32 %v1146, 7
    %v1148 = vsub.s32 0, %v1147
    %v1149 = vrot.slane %v1070, %v1148
    %v1150 = vmul.f32 %v1074, %v1149
    %v1151 = vmul.f32 %v1079, %v1149
    %v1152 = vmul.f32 %v1084, %v1149
    %v1153 = vmul.f32 %v1089, %v1149
    %v1154 = vmul.f32 %v1094, %v1149
    %v1155 = vmul.f32 %v1099, %v1149
    %v1156 = vmul.f32 %v1104, %v1149
    %v1157 = vmul.f32 %v1109, %v1149
    %v1158 = vmul.f32 %v1114, %v1149
    %v1159 = vmul.f32 %v1119, %v1149
    %v1160 = vmul.f32 %v1124, %v1149
    %v1161 = vmul.f32 %v1129, %v1149
    %v1162 = vmul.f32 %v1134, %v1149
    %v1163 = vmul.f32 %v1139, %v1149
    %v1164 = vmul.f32 %v1144, %v1149
    %v1165 = vadd.f32 %v1040, %v1150
    %v1166 = vadd.f32 %v1041, %v1151
    %v1167 = vadd.f32 %v1042, %v1152
    %v1168 = vadd.f32 %v1043, %v1153
    %v1169 = vadd.f32 %v1044, %v1154
    %v1170 = vadd.f32 %v1045, %v1155
    %v1171 = vadd.f32 %v1046, %v1156
    %v1172 = vadd.f32 %v1047, %v1157
    %v1173 = vadd.f32 %v1048, %v1158
    %v1174 = vadd.f32 %v1049, %v1159
    %v1175 = vadd.f32 %v1050, %v1160
    %v1176 = vadd.f32 %v1051, %v1161
    %v1177 = vadd.f32 %v1052, %v1162
    %v1178 = vadd.f32 %v1053, %v1163
    %v1179 = vadd.f32 %v1054, %v1164
    %v1180 = vld [vmem:[%s3] sm:$0x1]
    %v1182 = vlaneseq
    %v1183 = vshrl.u32 %v1182, 7
    %v1184 = vsub.s32 0, %v1183
    %v1185 = vrot.slane %v1180, %v1184
    %v1187 = vadd.f32 %v1165, %v1185
    %v1188 = vadd.f32 %v1166, %v1185
    %v1189 = vadd.f32 %v1167, %v1185
    %v1190 = vadd.f32 %v1168, %v1185
    %v1191 = vadd.f32 %v1169, %v1185
    %v1192 = vadd.f32 %v1170, %v1185
    %v1193 = vadd.f32 %v1171, %v1185
    %v1194 = vadd.f32 %v1172, %v1185
    %v1195 = vadd.f32 %v1173, %v1185
    %v1196 = vadd.f32 %v1174, %v1185
    %v1197 = vadd.f32 %v1175, %v1185
    %v1198 = vadd.f32 %v1176, %v1185
    %v1199 = vadd.f32 %v1177, %v1185
    %v1200 = vadd.f32 %v1178, %v1185
    %v1201 = vadd.f32 %v1179, %v1185
    %v1202 = vmax.f32 %v1187, 0.0
    %v1203 = vmax.f32 %v1188, 0.0
    %v1204 = vmax.f32 %v1189, 0.0
    %v1205 = vmax.f32 %v1190, 0.0
    %v1206 = vmax.f32 %v1191, 0.0
    %v1207 = vmax.f32 %v1192, 0.0
    %v1208 = vmax.f32 %v1193, 0.0
    %v1209 = vmax.f32 %v1194, 0.0
    %v1210 = vmax.f32 %v1195, 0.0
    %v1211 = vmax.f32 %v1196, 0.0
    %v1212 = vmax.f32 %v1197, 0.0
    %v1213 = vmax.f32 %v1198, 0.0
    %v1214 = vmax.f32 %v1199, 0.0
    %v1215 = vmax.f32 %v1200, 0.0
    %v1216 = vmax.f32 %v1201, 0.0
    %v1217 = vld [vmem:[%s1] sm:$0xff]
    %v1218 = vld [vmem:[%s1 + $0x8] sm:$0xff]
    %v1219 = vld [vmem:[%s1 + $0x10] sm:$0xff]
    %v1220 = vld [vmem:[%s1 + $0x18] sm:$0xff]
    %v1221 = vld [vmem:[%s1 + $0x20] sm:$0xff]
    %v1222 = vld [vmem:[%s1 + $0x28] sm:$0xff]
    %v1223 = vld [vmem:[%s1 + $0x30] sm:$0xff]
    %v1224 = vld [vmem:[%s1 + $0x38] sm:$0xff]
    %v1225 = vld [vmem:[%s1 + $0x40] sm:$0xff]
    %v1226 = vld [vmem:[%s1 + $0x48] sm:$0xff]
    %v1227 = vld [vmem:[%s1 + $0x50] sm:$0xff]
    %v1228 = vld [vmem:[%s1 + $0x58] sm:$0xff]
    %v1229 = vld [vmem:[%s1 + $0x60] sm:$0xff]
    %v1230 = vld [vmem:[%s1 + $0x68] sm:$0xff]
    %v1231 = vld [vmem:[%s1 + $0x70] sm:$0x3f]
    %1233 = vset.pattern.permute.xlu0 0
    %1234 = vperm.xlu0 %1233, %v1217
    %v1235 = vpop.permute.xlu0 %1234
    %1238 = vset.pattern.permute.xlu0 0
    %1239 = vperm.xlu0 %1238, %v1218
    %v1240 = vpop.permute.xlu0 %1239
    %1243 = vset.pattern.permute.xlu0 0
    %1244 = vperm.xlu0 %1243, %v1219
    %v1245 = vpop.permute.xlu0 %1244
    %1248 = vset.pattern.permute.xlu0 0
    %1249 = vperm.xlu0 %1248, %v1220
    %v1250 = vpop.permute.xlu0 %1249
    %1253 = vset.pattern.permute.xlu0 0
    %1254 = vperm.xlu0 %1253, %v1221
    %v1255 = vpop.permute.xlu0 %1254
    %1258 = vset.pattern.permute.xlu0 0
    %1259 = vperm.xlu0 %1258, %v1222
    %v1260 = vpop.permute.xlu0 %1259
    %1263 = vset.pattern.permute.xlu0 0
    %1264 = vperm.xlu0 %1263, %v1223
    %v1265 = vpop.permute.xlu0 %1264
    %1268 = vset.pattern.permute.xlu0 0
    %1269 = vperm.xlu0 %1268, %v1224
    %v1270 = vpop.permute.xlu0 %1269
    %1273 = vset.pattern.permute.xlu0 0
    %1274 = vperm.xlu0 %1273, %v1225
    %v1275 = vpop.permute.xlu0 %1274
    %1278 = vset.pattern.permute.xlu0 0
    %1279 = vperm.xlu0 %1278, %v1226
    %v1280 = vpop.permute.xlu0 %1279
    %1283 = vset.pattern.permute.xlu0 0
    %1284 = vperm.xlu0 %1283, %v1227
    %v1285 = vpop.permute.xlu0 %1284
    %1288 = vset.pattern.permute.xlu0 0
    %1289 = vperm.xlu0 %1288, %v1228
    %v1290 = vpop.permute.xlu0 %1289
    %1293 = vset.pattern.permute.xlu0 0
    %1294 = vperm.xlu0 %1293, %v1229
    %v1295 = vpop.permute.xlu0 %1294
    %1298 = vset.pattern.permute.xlu0 0
    %1299 = vperm.xlu0 %1298, %v1230
    %v1300 = vpop.permute.xlu0 %1299
    %1303 = vset.pattern.permute.xlu0 0
    %1304 = vperm.xlu0 %1303, %v1231
    %v1305 = vpop.permute.xlu0 %1304
    %v1307 = vmul.f32 %v1202, %v1235
    %v1308 = vmul.f32 %v1203, %v1240
    %v1309 = vmul.f32 %v1204, %v1245
    %v1310 = vmul.f32 %v1205, %v1250
    %v1311 = vmul.f32 %v1206, %v1255
    %v1312 = vmul.f32 %v1207, %v1260
    %v1313 = vmul.f32 %v1208, %v1265
    %v1314 = vmul.f32 %v1209, %v1270
    %v1315 = vmul.f32 %v1210, %v1275
    %v1316 = vmul.f32 %v1211, %v1280
    %v1317 = vmul.f32 %v1212, %v1285
    %v1318 = vmul.f32 %v1213, %v1290
    %v1319 = vmul.f32 %v1214, %v1295
    %v1320 = vmul.f32 %v1215, %v1300
    %v1321 = vmul.f32 %v1216, %v1305
    %1322 = vst [vmem:[#allocation2] sm:$0xff] 0.0
    %1323 = vst [vmem:[#allocation2 + $0x8] sm:$0xff] 0.0
    %1324 = vst [vmem:[#allocation2 + $0x10] sm:$0xff] 0.0
    %1325 = vst [vmem:[#allocation2 + $0x18] sm:$0xff] 0.0
    %1326 = vst [vmem:[#allocation2 + $0x20] sm:$0xff] 0.0
    %1327 = vst [vmem:[#allocation2 + $0x28] sm:$0xff] 0.0
    %1328 = vst [vmem:[#allocation2 + $0x30] sm:$0xff] 0.0
    %1329 = vst [vmem:[#allocation2 + $0x38] sm:$0xff] 0.0
    %1330 = vst [vmem:[#allocation2 + $0x40] sm:$0xff] 0.0
    %1331 = vst [vmem:[#allocation2 + $0x48] sm:$0xff] 0.0
    %1332 = vst [vmem:[#allocation2 + $0x50] sm:$0xff] 0.0
    %1333 = vst [vmem:[#allocation2 + $0x58] sm:$0xff] 0.0
    %1334 = vst [vmem:[#allocation2 + $0x60] sm:$0xff] 0.0
    %1335 = vst [vmem:[#allocation2 + $0x68] sm:$0xff] 0.0
    %1336 = vst [vmem:[#allocation2 + $0x70] sm:$0xff] 0.0
    %1337 = vst [vmem:[#allocation2 + $0x78] sm:$0xff] 0.0
    %1338 = vst [vmem:[#allocation2 + $0x80] sm:$0xff] 0.0
    %1339 = vst [vmem:[#allocation2 + $0x88] sm:$0xff] 0.0
    %1340 = vst [vmem:[#allocation2 + $0xd] sm:$0xff] %v1307
    %1341 = vst [vmem:[#allocation2 + $0x15] sm:$0xff] %v1308
    %1342 = vst [vmem:[#allocation2 + $0x1d] sm:$0xff] %v1309
    %1343 = vst [vmem:[#allocation2 + $0x25] sm:$0xff] %v1310
    %1344 = vst [vmem:[#allocation2 + $0x2d] sm:$0xff] %v1311
    %1345 = vst [vmem:[#allocation2 + $0x35] sm:$0xff] %v1312
    %1346 = vst [vmem:[#allocation2 + $0x3d] sm:$0xff] %v1313
    %1347 = vst [vmem:[#allocation2 + $0x45] sm:$0xff] %v1314
    %1348 = vst [vmem:[#allocation2 + $0x4d] sm:$0xff] %v1315
    %1349 = vst [vmem:[#allocation2 + $0x55] sm:$0xff] %v1316
    %1350 = vst [vmem:[#allocation2 + $0x5d] sm:$0xff] %v1317
    %1351 = vst [vmem:[#allocation2 + $0x65] sm:$0xff] %v1318
    %1352 = vst [vmem:[#allocation2 + $0x6d] sm:$0xff] %v1319
    %1353 = vst [vmem:[#allocation2 + $0x75] sm:$0xff] %v1320
    %1354 = vst [vmem:[#allocation2 + $0x7d] sm:$0x3f] %v1321
    %v1355 = vld [vmem:[#allocation2] sm:$0xff]
    %v1356 = vld [vmem:[#allocation2 + $0x8] sm:$0xff]
    %v1357 = vld [vmem:[#allocation2 + $0x10] sm:$0xff]
    %v1358 = vld [vmem:[#allocation2 + $0x18] sm:$0xff]
    %v1359 = vld [vmem:[#allocation2 + $0x20] sm:$0xff]
    %v1360 = vld [vmem:[#allocation2 + $0x28] sm:$0xff]
    %v1361 = vld [vmem:[#allocation2 + $0x30] sm:$0xff]
    %v1362 = vld [vmem:[#allocation2 + $0x38] sm:$0xff]
    %v1363 = vld [vmem:[#allocation2 + $0x40] sm:$0xff]
    %v1364 = vld [vmem:[#allocation2 + $0x48] sm:$0xff]
    %v1365 = vld [vmem:[#allocation2 + $0x50] sm:$0xff]
    %v1366 = vld [vmem:[#allocation2 + $0x58] sm:$0xff]
    %v1367 = vld [vmem:[#allocation2 + $0x60] sm:$0xff]
    %v1368 = vld [vmem:[#allocation2 + $0x68] sm:$0xff]
    %v1369 = vld [vmem:[#allocation2 + $0x70] sm:$0x3f]
    %v1370 = vld [vmem:[#allocation4] sm:$0xff]
    %v1371 = vld [vmem:[#allocation4 + $0x8] sm:$0xff]
    %v1372 = vld [vmem:[#allocation4 + $0x10] sm:$0xff]
    %v1373 = vld [vmem:[#allocation4 + $0x18] sm:$0xff]
    %v1374 = vld [vmem:[#allocation4 + $0x20] sm:$0xff]
    %v1375 = vld [vmem:[#allocation4 + $0x28] sm:$0xff]
    %v1376 = vld [vmem:[#allocation4 + $0x30] sm:$0xff]
    %v1377 = vld [vmem:[#allocation4 + $0x38] sm:$0xff]
    %v1378 = vld [vmem:[#allocation4 + $0x40] sm:$0xff]
    %v1379 = vld [vmem:[#allocation4 + $0x48] sm:$0xff]
    %v1380 = vld [vmem:[#allocation4 + $0x50] sm:$0xff]
    %v1381 = vld [vmem:[#allocation4 + $0x58] sm:$0xff]
    %v1382 = vld [vmem:[#allocation4 + $0x60] sm:$0xff]
    %v1383 = vld [vmem:[#allocation4 + $0x68] sm:$0xff]
    %v1384 = vld [vmem:[#allocation4 + $0x70] sm:$0xff]
    %v1385 = vld [vmem:[#allocation4 + $0x78] sm:$0xff]
    %v1386 = vld [vmem:[#allocation2 + $0x1] sm:$0xff]
    %v1387 = vld [vmem:[#allocation2 + $0x9] sm:$0xff]
    %v1388 = vld [vmem:[#allocation2 + $0x11] sm:$0xff]
    %v1389 = vld [vmem:[#allocation2 + $0x19] sm:$0xff]
    %v1390 = vld [vmem:[#allocation2 + $0x21] sm:$0xff]
    %v1391 = vld [vmem:[#allocation2 + $0x29] sm:$0xff]
    %v1392 = vld [vmem:[#allocation2 + $0x31] sm:$0xff]
    %v1393 = vld [vmem:[#allocation2 + $0x39] sm:$0xff]
    %v1394 = vld [vmem:[#allocation2 + $0x41] sm:$0xff]
    %v1395 = vld [vmem:[#allocation2 + $0x49] sm:$0xff]
    %v1396 = vld [vmem:[#allocation2 + $0x51] sm:$0xff]
    %v1397 = vld [vmem:[#allocation2 + $0x59] sm:$0xff]
    %v1398 = vld [vmem:[#allocation2 + $0x61] sm:$0xff]
    %v1399 = vld [vmem:[#allocation2 + $0x69] sm:$0xff]
    %v1400 = vld [vmem:[#allocation2 + $0x71] sm:$0x3f]
    %s1401 = scalar_lea.vmem [#allocation4], 128
    %v1402 = vld [vmem:[%s1401] sm:$0xff]
    %v1403 = vld [vmem:[%s1401 + $0x8] sm:$0xff]
    %v1404 = vld [vmem:[%s1401 + $0x10] sm:$0xff]
    %v1405 = vld [vmem:[%s1401 + $0x18] sm:$0xff]
    %v1406 = vld [vmem:[%s1401 + $0x20] sm:$0xff]
    %v1407 = vld [vmem:[%s1401 + $0x28] sm:$0xff]
    %v1408 = vld [vmem:[%s1401 + $0x30] sm:$0xff]
    %v1409 = vld [vmem:[%s1401 + $0x38] sm:$0xff]
    %v1410 = vld [vmem:[%s1401 + $0x40] sm:$0xff]
    %v1411 = vld [vmem:[%s1401 + $0x48] sm:$0xff]
    %v1412 = vld [vmem:[%s1401 + $0x50] sm:$0xff]
    %v1413 = vld [vmem:[%s1401 + $0x58] sm:$0xff]
    %v1414 = vld [vmem:[%s1401 + $0x60] sm:$0xff]
    %v1415 = vld [vmem:[%s1401 + $0x68] sm:$0xff]
    %v1416 = vld [vmem:[%s1401 + $0x70] sm:$0xff]
    %v1417 = vld [vmem:[%s1401 + $0x78] sm:$0xff]
    %1418 = vmatprep.subr.mxu0 0.0
    %1419 = vmatpush1.msra.mxu0 %v1402
    %1420 = vmatprep.subr.mxu0 0.0
    %1421 = vmatpush1.msra.mxu0 %v1403
    %1422 = vmatprep.subr.mxu0 0.0
    %1423 = vmatpush1.msra.mxu0 %v1404
    %1424 = vmatprep.subr.mxu0 0.0
    %1425 = vmatpush1.msra.mxu0 %v1405
    %1426 = vmatprep.subr.mxu0 0.0
    %1427 = vmatpush1.msra.mxu0 %v1406
    %1428 = vmatprep.subr.mxu0 0.0
    %1429 = vmatpush1.msra.mxu0 %v1407
    %1430 = vmatprep.subr.mxu0 0.0
    %1431 = vmatpush1.msra.mxu0 %v1408
    %1432 = vmatprep.subr.mxu0 0.0
    %1433 = vmatpush1.msra.mxu0 %v1409
    %1434 = vmatprep.subr.mxu0 0.0
    %1435 = vmatpush1.msra.mxu0 %v1410
    %1436 = vmatprep.subr.mxu0 0.0
    %1437 = vmatpush1.msra.mxu0 %v1411
    %1438 = vmatprep.subr.mxu0 0.0
    %1439 = vmatpush1.msra.mxu0 %v1412
    %1440 = vmatprep.subr.mxu0 0.0
    %1441 = vmatpush1.msra.mxu0 %v1413
    %1442 = vmatprep.subr.mxu0 0.0
    %1443 = vmatpush1.msra.mxu0 %v1414
    %1444 = vmatprep.subr.mxu0 0.0
    %1445 = vmatpush1.msra.mxu0 %v1415
    %1446 = vmatprep.subr.mxu0 0.0
    %1447 = vmatpush1.msra.mxu0 %v1416
    %1448 = vmatprep.subr.mxu0 0.0
    %1449 = vmatpush1.msra.mxu0 %v1417
    %1450 = vmatprep.subr.mxu0 0.0
    %1451 = vmatpush1.msra.mxu0 0.0
    %1452 = vmatprep.subr.mxu0 0.0
    %1453 = vmatpush1.msra.mxu0 0.0
    %1454 = vmatprep.subr.mxu0 0.0
    %1455 = vmatpush1.msra.mxu0 0.0
    %1456 = vmatprep.subr.mxu0 0.0
    %1457 = vmatpush1.msra.mxu0 0.0
    %1458 = vmatprep.subr.mxu0 0.0
    %1459 = vmatpush1.msra.mxu0 0.0
    %1460 = vmatprep.subr.mxu0 0.0
    %1461 = vmatpush1.msra.mxu0 0.0
    %1462 = vmatprep.subr.mxu0 0.0
    %1463 = vmatpush1.msra.mxu0 0.0
    %1464 = vmatprep.subr.mxu0 0.0
    %1465 = vmatpush1.msra.mxu0 0.0
    %1466 = vmatprep.subr.mxu0 0.0
    %1467 = vmatpush1.msra.mxu0 0.0
    %1468 = vmatprep.subr.mxu0 0.0
    %1469 = vmatpush1.msra.mxu0 0.0
    %1470 = vmatprep.subr.mxu0 0.0
    %1471 = vmatpush1.msra.mxu0 0.0
    %1472 = vmatprep.subr.mxu0 0.0
    %1473 = vmatpush1.msra.mxu0 0.0
    %1474 = vmatprep.subr.mxu0 0.0
    %1475 = vmatpush1.msra.mxu0 0.0
    %1476 = vmatprep.subr.mxu0 0.0
    %1477 = vmatpush1.msra.mxu0 0.0
    %1478 = vmatprep.subr.mxu0 0.0
    %1479 = vmatpush1.msra.mxu0 0.0
    %1480 = vmatprep.subr.mxu0 0.0
    %1481 = vmatpush1.msra.mxu0 0.0
    %1482 = vmatprep.mubr.f32.mxu0 0.0
    %1483 = vmatmul.mubr.f32.gmra.mrb[0].mxu0 %v1386
    %v1484 = vpop.f32.mrb[0].mxu0
    %v1485 = vadd.f32 0.0, %v1484
    %v1486 = vpop.f32.mrb[0].mxu0
    %1487 = vmatprep.mubr.f32.mxu0 0.0
    %1488 = vmatmul.mubr.f32.gmra.mrb[0].mxu0 %v1387
    %v1489 = vpop.f32.mrb[0].mxu0
    %v1490 = vadd.f32 0.0, %v1489
    %v1491 = vpop.f32.mrb[0].mxu0
    %1492 = vmatprep.mubr.f32.mxu0 0.0
    %1493 = vmatmul.mubr.f32.gmra.mrb[0].mxu0 %v1388
    %v1494 = vpop.f32.mrb[0].mxu0
    %v1495 = vadd.f32 0.0, %v1494
    %v1496 = vpop.f32.mrb[0].mxu0
    %1497 = vmatprep.mubr.f32.mxu0 0.0
    %1498 = vmatmul.mubr.f32.gmra.mrb[0].mxu0 %v1389
    %v1499 = vpop.f32.mrb[0].mxu0
    %v1500 = vadd.f32 0.0, %v1499
    %v1501 = vpop.f32.mrb[0].mxu0
    %1502 = vmatprep.mubr.f32.mxu0 0.0
    %1503 = vmatmul.mubr.f32.gmra.mrb[0].mxu0 %v1390
    %v1504 = vpop.f32.mrb[0].mxu0
    %v1505 = vadd.f32 0.0, %v1504
    %v1506 = vpop.f32.mrb[0].mxu0
    %1507 = vmatprep.mubr.f32.mxu0 0.0
    %1508 = vmatmul.mubr.f32.gmra.mrb[0].mxu0 %v1391
    %v1509 = vpop.f32.mrb[0].mxu0
    %v1510 = vadd.f32 0.0, %v1509
    %v1511 = vpop.f32.mrb[0].mxu0
    %1512 = vmatprep.mubr.f32.mxu0 0.0
    %1513 = vmatmul.mubr.f32.gmra.mrb[0].mxu0 %v1392
    %v1514 = vpop.f32.mrb[0].mxu0
    %v1515 = vadd.f32 0.0, %v1514
    %v1516 = vpop.f32.mrb[0].mxu0
    %1517 = vmatprep.mubr.f32.mxu0 0.0
    %1518 = vmatmul.mubr.f32.gmra.mrb[0].mxu0 %v1393
    %v1519 = vpop.f32.mrb[0].mxu0
    %v1520 = vadd.f32 0.0, %v1519
    %v1521 = vpop.f32.mrb[0].mxu0
    %1522 = vmatprep.mubr.f32.mxu0 0.0
    %1523 = vmatmul.mubr.f32.gmra.mrb[0].mxu0 %v1394
    %v1524 = vpop.f32.mrb[0].mxu0
    %v1525 = vadd.f32 0.0, %v1524
    %v1526 = vpop.f32.mrb[0].mxu0
    %1527 = vmatprep.mubr.f32.mxu0 0.0
    %1528 = vmatmul.mubr.f32.gmra.mrb[0].mxu0 %v1395
    %v1529 = vpop.f32.mrb[0].mxu0
    %v1530 = vadd.f32 0.0, %v1529
    %v1531 = vpop.f32.mrb[0].mxu0
    %1532 = vmatprep.mubr.f32.mxu0 0.0
    %1533 = vmatmul.mubr.f32.gmra.mrb[0].mxu0 %v1396
    %v1534 = vpop.f32.mrb[0].mxu0
    %v1535 = vadd.f32 0.0, %v1534
    %v1536 = vpop.f32.mrb[0].mxu0
    %1537 = vmatprep.mubr.f32.mxu0 0.0
    %1538 = vmatmul.mubr.f32.gmra.mrb[0].mxu0 %v1397
    %v1539 = vpop.f32.mrb[0].mxu0
    %v1540 = vadd.f32 0.0, %v1539
    %v1541 = vpop.f32.mrb[0].mxu0
    %1542 = vmatprep.mubr.f32.mxu0 0.0
    %1543 = vmatmul.mubr.f32.gmra.mrb[0].mxu0 %v1398
    %v1544 = vpop.f32.mrb[0].mxu0
    %v1545 = vadd.f32 0.0, %v1544
    %v1546 = vpop.f32.mrb[0].mxu0
    %1547 = vmatprep.mubr.f32.mxu0 0.0
    %1548 = vmatmul.mubr.f32.gmra.mrb[0].mxu0 %v1399
    %v1549 = vpop.f32.mrb[0].mxu0
    %v1550 = vadd.f32 0.0, %v1549
    %v1551 = vpop.f32.mrb[0].mxu0
    %1552 = vmatprep.mubr.f32.mxu0 0.0
    %1553 = vmatmul.mubr.f32.gmra.mrb[0].mxu0 %v1400
    %v1554 = vpop.f32.mrb[0].mxu0
    %v1555 = vadd.f32 0.0, %v1554
    %v1556 = vpop.f32.mrb[0].mxu0
    %1557 = vdwg.mxu0
    %1558 = vmatprep.subr.mxu0 0.0
    %1559 = vmatpush1.msra.mxu0 %v1370
    %1560 = vmatprep.subr.mxu0 0.0
    %1561 = vmatpush1.msra.mxu0 %v1371
    %1562 = vmatprep.subr.mxu0 0.0
    %1563 = vmatpush1.msra.mxu0 %v1372
    %1564 = vmatprep.subr.mxu0 0.0
    %1565 = vmatpush1.msra.mxu0 %v1373
    %1566 = vmatprep.subr.mxu0 0.0
    %1567 = vmatpush1.msra.mxu0 %v1374
    %1568 = vmatprep.subr.mxu0 0.0
    %1569 = vmatpush1.msra.mxu0 %v1375
    %1570 = vmatprep.subr.mxu0 0.0
    %1571 = vmatpush1.msra.mxu0 %v1376
    %1572 = vmatprep.subr.mxu0 0.0
    %1573 = vmatpush1.msra.mxu0 %v1377
    %1574 = vmatprep.subr.mxu0 0.0
    %1575 = vmatpush1.msra.mxu0 %v1378
    %1576 = vmatprep.subr.mxu0 0.0
    %1577 = vmatpush1.msra.mxu0 %v1379
    %1578 = vmatprep.subr.mxu0 0.0
    %1579 = vmatpush1.msra.mxu0 %v1380
    %1580 = vmatprep.subr.mxu0 0.0
    %1581 = vmatpush1.msra.mxu0 %v1381
    %1582 = vmatprep.subr.mxu0 0.0
    %1583 = vmatpush1.msra.mxu0 %v1382
    %1584 = vmatprep.subr.mxu0 0.0
    %1585 = vmatpush1.msra.mxu0 %v1383
    %1586 = vmatprep.subr.mxu0 0.0
    %1587 = vmatpush1.msra.mxu0 %v1384
    %1588 = vmatprep.subr.mxu0 0.0
    %1589 = vmatpush1.msra.mxu0 %v1385
    %1590 = vmatprep.subr.mxu0 0.0
    %1591 = vmatpush1.msra.mxu0 0.0
    %1592 = vmatprep.subr.mxu0 0.0
    %1593 = vmatpush1.msra.mxu0 0.0
    %1594 = vmatprep.subr.mxu0 0.0
    %1595 = vmatpush1.msra.mxu0 0.0
    %1596 = vmatprep.subr.mxu0 0.0
    %1597 = vmatpush1.msra.mxu0 0.0
    %1598 = vmatprep.subr.mxu0 0.0
    %1599 = vmatpush1.msra.mxu0 0.0
    %1600 = vmatprep.subr.mxu0 0.0
    %1601 = vmatpush1.msra.mxu0 0.0
    %1602 = vmatprep.subr.mxu0 0.0
    %1603 = vmatpush1.msra.mxu0 0.0
    %1604 = vmatprep.subr.mxu0 0.0
    %1605 = vmatpush1.msra.mxu0 0.0
    %1606 = vmatprep.subr.mxu0 0.0
    %1607 = vmatpush1.msra.mxu0 0.0
    %1608 = vmatprep.subr.mxu0 0.0
    %1609 = vmatpush1.msra.mxu0 0.0
    %1610 = vmatprep.subr.mxu0 0.0
    %1611 = vmatpush1.msra.mxu0 0.0
    %1612 = vmatprep.subr.mxu0 0.0
    %1613 = vmatpush1.msra.mxu0 0.0
    %1614 = vmatprep.subr.mxu0 0.0
    %1615 = vmatpush1.msra.mxu0 0.0
    %1616 = vmatprep.subr.mxu0 0.0
    %1617 = vmatpush1.msra.mxu0 0.0
    %1618 = vmatprep.subr.mxu0 0.0
    %1619 = vmatpush1.msra.mxu0 0.0
    %1620 = vmatprep.subr.mxu0 0.0
    %1621 = vmatpush1.msra.mxu0 0.0
    %1622 = vmatprep.mubr.f32.mxu0 0.0
    %1623 = vmatmul.mubr.f32.gmra.mrb[0].mxu0 %v1355
    %v1624 = vpop.f32.mrb[0].mxu0
    %v1625 = vadd.f32 %v1485, %v1624
    %v1626 = vpop.f32.mrb[0].mxu0
    %1627 = vmatprep.mubr.f32.mxu0 0.0
    %1628 = vmatmul.mubr.f32.gmra.mrb[0].mxu0 %v1356
    %v1629 = vpop.f32.mrb[0].mxu0
    %v1630 = vadd.f32 %v1490, %v1629
    %v1631 = vpop.f32.mrb[0].mxu0
    %1632 = vmatprep.mubr.f32.mxu0 0.0
    %1633 = vmatmul.mubr.f32.gmra.mrb[0].mxu0 %v1357
    %v1634 = vpop.f32.mrb[0].mxu0
    %v1635 = vadd.f32 %v1495, %v1634
    %v1636 = vpop.f32.mrb[0].mxu0
    %1637 = vmatprep.mubr.f32.mxu0 0.0
    %1638 = vmatmul.mubr.f32.gmra.mrb[0].mxu0 %v1358
    %v1639 = vpop.f32.mrb[0].mxu0
    %v1640 = vadd.f32 %v1500, %v1639
    %v1641 = vpop.f32.mrb[0].mxu0
    %1642 = vmatprep.mubr.f32.mxu0 0.0
    %1643 = vmatmul.mubr.f32.gmra.mrb[0].mxu0 %v1359
    %v1644 = vpop.f32.mrb[0].mxu0
    %v1645 = vadd.f32 %v1505, %v1644
    %v1646 = vpop.f32.mrb[0].mxu0
    %1647 = vmatprep.mubr.f32.mxu0 0.0
    %1648 = vmatmul.mubr.f32.gmra.mrb[0].mxu0 %v1360
    %v1649 = vpop.f32.mrb[0].mxu0
    %v1650 = vadd.f32 %v1510, %v1649
    %v1651 = vpop.f32.mrb[0].mxu0
    %1652 = vmatprep.mubr.f32.mxu0 0.0
    %1653 = vmatmul.mubr.f32.gmra.mrb[0].mxu0 %v1361
    %v1654 = vpop.f32.mrb[0].mxu0
    %v1655 = vadd.f32 %v1515, %v1654
    %v1656 = vpop.f32.mrb[0].mxu0
    %1657 = vmatprep.mubr.f32.mxu0 0.0
    %1658 = vmatmul.mubr.f32.gmra.mrb[0].mxu0 %v1362
    %v1659 = vpop.f32.mrb[0].mxu0
    %v1660 = vadd.f32 %v1520, %v1659
    %v1661 = vpop.f32.mrb[0].mxu0
    %1662 = vmatprep.mubr.f32.mxu0 0.0
    %1663 = vmatmul.mubr.f32.gmra.mrb[0].mxu0 %v1363
    %v1664 = vpop.f32.mrb[0].mxu0
    %v1665 = vadd.f32 %v1525, %v1664
    %v1666 = vpop.f32.mrb[0].mxu0
    %1667 = vmatprep.mubr.f32.mxu0 0.0
    %1668 = vmatmul.mubr.f32.gmra.mrb[0].mxu0 %v1364
    %v1669 = vpop.f32.mrb[0].mxu0
    %v1670 = vadd.f32 %v1530, %v1669
    %v1671 = vpop.f32.mrb[0].mxu0
    %1672 = vmatprep.mubr.f32.mxu0 0.0
    %1673 = vmatmul.mubr.f32.gmra.mrb[0].mxu0 %v1365
    %v1674 = vpop.f32.mrb[0].mxu0
    %v1675 = vadd.f32 %v1535, %v1674
    %v1676 = vpop.f32.mrb[0].mxu0
    %1677 = vmatprep.mubr.f32.mxu0 0.0
    %1678 = vmatmul.mubr.f32.gmra.mrb[0].mxu0 %v1366
    %v1679 = vpop.f32.mrb[0].mxu0
    %v1680 = vadd.f32 %v1540, %v1679
    %v1681 = vpop.f32.mrb[0].mxu0
    %1682 = vmatprep.mubr.f32.mxu0 0.0
    %1683 = vmatmul.mubr.f32.gmra.mrb[0].mxu0 %v1367
    %v1684 = vpop.f32.mrb[0].mxu0
    %v1685 = vadd.f32 %v1545, %v1684
    %v1686 = vpop.f32.mrb[0].mxu0
    %1687 = vmatprep.mubr.f32.mxu0 0.0
    %1688 = vmatmul.mubr.f32.gmra.mrb[0].mxu0 %v1368
    %v1689 = vpop.f32.mrb[0].mxu0
    %v1690 = vadd.f32 %v1550, %v1689
    %v1691 = vpop.f32.mrb[0].mxu0
    %1692 = vmatprep.mubr.f32.mxu0 0.0
    %1693 = vmatmul.mubr.f32.gmra.mrb[0].mxu0 %v1369
    %v1694 = vpop.f32.mrb[0].mxu0
    %v1695 = vadd.f32 %v1555, %v1694
    %v1696 = vpop.f32.mrb[0].mxu0
    %1697 = vdwg.mxu0
    %v1698 = vld [vmem:[#allocation2 + $0x2] sm:$0xff]
    %v1699 = vld [vmem:[#allocation2 + $0xa] sm:$0xff]
    %v1700 = vld [vmem:[#allocation2 + $0x12] sm:$0xff]
    %v1701 = vld [vmem:[#allocation2 + $0x1a] sm:$0xff]
    %v1702 = vld [vmem:[#allocation2 + $0x22] sm:$0xff]
    %v1703 = vld [vmem:[#allocation2 + $0x2a] sm:$0xff]
    %v1704 = vld [vmem:[#allocation2 + $0x32] sm:$0xff]
    %v1705 = vld [vmem:[#allocation2 + $0x3a] sm:$0xff]
    %v1706 = vld [vmem:[#allocation2 + $0x42] sm:$0xff]
    %v1707 = vld [vmem:[#allocation2 + $0x4a] sm:$0xff]
    %v1708 = vld [vmem:[#allocation2 + $0x52] sm:$0xff]
    %v1709 = vld [vmem:[#allocation2 + $0x5a] sm:$0xff]
    %v1710 = vld [vmem:[#allocation2 + $0x62] sm:$0xff]
    %v1711 = vld [vmem:[#allocation2 + $0x6a] sm:$0xff]
    %v1712 = vld [vmem:[#allocation2 + $0x72] sm:$0x3f]
    %s1713 = scalar_lea.vmem [#allocation4], 256
    %v1714 = vld [vmem:[%s1713] sm:$0xff]
    %v1715 = vld [vmem:[%s1713 + $0x8] sm:$0xff]
    %v1716 = vld [vmem:[%s1713 + $0x10] sm:$0xff]
    %v1717 = vld [vmem:[%s1713 + $0x18] sm:$0xff]
    %v1718 = vld [vmem:[%s1713 + $0x20] sm:$0xff]
    %v1719 = vld [vmem:[%s1713 + $0x28] sm:$0xff]
    %v1720 = vld [vmem:[%s1713 + $0x30] sm:$0xff]
    %v1721 = vld [vmem:[%s1713 + $0x38] sm:$0xff]
    %v1722 = vld [vmem:[%s1713 + $0x40] sm:$0xff]
    %v1723 = vld [vmem:[%s1713 + $0x48] sm:$0xff]
    %v1724 = vld [vmem:[%s1713 + $0x50] sm:$0xff]
    %v1725 = vld [vmem:[%s1713 + $0x58] sm:$0xff]
    %v1726 = vld [vmem:[%s1713 + $0x60] sm:$0xff]
    %v1727 = vld [vmem:[%s1713 + $0x68] sm:$0xff]
    %v1728 = vld [vmem:[%s1713 + $0x70] sm:$0xff]
    %v1729 = vld [vmem:[%s1713 + $0x78] sm:$0xff]
    %1730 = vmatprep.subr.mxu0 0.0
    %1731 = vmatpush1.msra.mxu0 %v1714
    %1732 = vmatprep.subr.mxu0 0.0
    %1733 = vmatpush1.msra.mxu0 %v1715
    %1734 = vmatprep.subr.mxu0 0.0
    %1735 = vmatpush1.msra.mxu0 %v1716
    %1736 = vmatprep.subr.mxu0 0.0
    %1737 = vmatpush1.msra.mxu0 %v1717
    %1738 = vmatprep.subr.mxu0 0.0
    %1739 = vmatpush1.msra.mxu0 %v1718
    %1740 = vmatprep.subr.mxu0 0.0
    %1741 = vmatpush1.msra.mxu0 %v1719
    %1742 = vmatprep.subr.mxu0 0.0
    %1743 = vmatpush1.msra.mxu0 %v1720
    %1744 = vmatprep.subr.mxu0 0.0
    %1745 = vmatpush1.msra.mxu0 %v1721
    %1746 = vmatprep.subr.mxu0 0.0
    %1747 = vmatpush1.msra.mxu0 %v1722
    %1748 = vmatprep.subr.mxu0 0.0
    %1749 = vmatpush1.msra.mxu0 %v1723
    %1750 = vmatprep.subr.mxu0 0.0
    %1751 = vmatpush1.msra.mxu0 %v1724
    %1752 = vmatprep.subr.mxu0 0.0
    %1753 = vmatpush1.msra.mxu0 %v1725
    %1754 = vmatprep.subr.mxu0 0.0
    %1755 = vmatpush1.msra.mxu0 %v1726
    %1756 = vmatprep.subr.mxu0 0.0
    %1757 = vmatpush1.msra.mxu0 %v1727
    %1758 = vmatprep.subr.mxu0 0.0
    %1759 = vmatpush1.msra.mxu0 %v1728
    %1760 = vmatprep.subr.mxu0 0.0
    %1761 = vmatpush1.msra.mxu0 %v1729
    %1762 = vmatprep.subr.mxu0 0.0
    %1763 = vmatpush1.msra.mxu0 0.0
    %1764 = vmatprep.subr.mxu0 0.0
    %1765 = vmatpush1.msra.mxu0 0.0
    %1766 = vmatprep.subr.mxu0 0.0
    %1767 = vmatpush1.msra.mxu0 0.0
    %1768 = vmatprep.subr.mxu0 0.0
    %1769 = vmatpush1.msra.mxu0 0.0
    %1770 = vmatprep.subr.mxu0 0.0
    %1771 = vmatpush1.msra.mxu0 0.0
    %1772 = vmatprep.subr.mxu0 0.0
    %1773 = vmatpush1.msra.mxu0 0.0
    %1774 = vmatprep.subr.mxu0 0.0
    %1775 = vmatpush1.msra.mxu0 0.0
    %1776 = vmatprep.subr.mxu0 0.0
    %1777 = vmatpush1.msra.mxu0 0.0
    %1778 = vmatprep.subr.mxu0 0.0
    %1779 = vmatpush1.msra.mxu0 0.0
    %1780 = vmatprep.subr.mxu0 0.0
    %1781 = vmatpush1.msra.mxu0 0.0
    %1782 = vmatprep.subr.mxu0 0.0
    %1783 = vmatpush1.msra.mxu0 0.0
    %1784 = vmatprep.subr.mxu0 0.0
    %1785 = vmatpush1.msra.mxu0 0.0
    %1786 = vmatprep.subr.mxu0 0.0
    %1787 = vmatpush1.msra.mxu0 0.0
    %1788 = vmatprep.subr.mxu0 0.0
    %1789 = vmatpush1.msra.mxu0 0.0
    %1790 = vmatprep.subr.mxu0 0.0
    %1791 = vmatpush1.msra.mxu0 0.0
    %1792 = vmatprep.subr.mxu0 0.0
    %1793 = vmatpush1.msra.mxu0 0.0
    %1794 = vmatprep.mubr.f32.mxu0 0.0
    %1795 = vmatmul.mubr.f32.gmra.mrb[0].mxu0 %v1698
    %v1796 = vpop.f32.mrb[0].mxu0
    %v1797 = vadd.f32 0.0, %v1796
    %v1798 = vpop.f32.mrb[0].mxu0
    %1799 = vmatprep.mubr.f32.mxu0 0.0
    %1800 = vmatmul.mubr.f32.gmra.mrb[0].mxu0 %v1699
    %v1801 = vpop.f32.mrb[0].mxu0
    %v1802 = vadd.f32 0.0, %v1801
    %v1803 = vpop.f32.mrb[0].mxu0
    %1804 = vmatprep.mubr.f32.mxu0 0.0
    %1805 = vmatmul.mubr.f32.gmra.mrb[0].mxu0 %v1700
    %v1806 = vpop.f32.mrb[0].mxu0
    %v1807 = vadd.f32 0.0, %v1806
    %v1808 = vpop.f32.mrb[0].mxu0
    %1809 = vmatprep.mubr.f32.mxu0 0.0
    %1810 = vmatmul.mubr.f32.gmra.mrb[0].mxu0 %v1701
    %v1811 = vpop.f32.mrb[0].mxu0
    %v1812 = vadd.f32 0.0, %v1811
    %v1813 = vpop.f32.mrb[0].mxu0
    %1814 = vmatprep.mubr.f32.mxu0 0.0
    %1815 = vmatmul.mubr.f32.gmra.mrb[0].mxu0 %v1702
    %v1816 = vpop.f32.mrb[0].mxu0
    %v1817 = vadd.f32 0.0, %v1816
    %v1818 = vpop.f32.mrb[0].mxu0
    %1819 = vmatprep.mubr.f32.mxu0 0.0
    %1820 = vmatmul.mubr.f32.gmra.mrb[0].mxu0 %v1703
    %v1821 = vpop.f32.mrb[0].mxu0
    %v1822 = vadd.f32 0.0, %v1821
    %v1823 = vpop.f32.mrb[0].mxu0
    %1824 = vmatprep.mubr.f32.mxu0 0.0
    %1825 = vmatmul.mubr.f32.gmra.mrb[0].mxu0 %v1704
    %v1826 = vpop.f32.mrb[0].mxu0
    %v1827 = vadd.f32 0.0, %v1826
    %v1828 = vpop.f32.mrb[0].mxu0
    %1829 = vmatprep.mubr.f32.mxu0 0.0
    %1830 = vmatmul.mubr.f32.gmra.mrb[0].mxu0 %v1705
    %v1831 = vpop.f32.mrb[0].mxu0
    %v1832 = vadd.f32 0.0, %v1831
    %v1833 = vpop.f32.mrb[0].mxu0
    %1834 = vmatprep.mubr.f32.mxu0 0.0
    %1835 = vmatmul.mubr.f32.gmra.mrb[0].mxu0 %v1706
    %v1836 = vpop.f32.mrb[0].mxu0
    %v1837 = vadd.f32 0.0, %v1836
    %v1838 = vpop.f32.mrb[0].mxu0
    %1839 = vmatprep.mubr.f32.mxu0 0.0
    %1840 = vmatmul.mubr.f32.gmra.mrb[0].mxu0 %v1707
    %v1841 = vpop.f32.mrb[0].mxu0
    %v1842 = vadd.f32 0.0, %v1841
    %v1843 = vpop.f32.mrb[0].mxu0
    %1844 = vmatprep.mubr.f32.mxu0 0.0
    %1845 = vmatmul.mubr.f32.gmra.mrb[0].mxu0 %v1708
    %v1846 = vpop.f32.mrb[0].mxu0
    %v1847 = vadd.f32 0.0, %v1846
    %v1848 = vpop.f32.mrb[0].mxu0
    %1849 = vmatprep.mubr.f32.mxu0 0.0
    %1850 = vmatmul.mubr.f32.gmra.mrb[0].mxu0 %v1709
    %v1851 = vpop.f32.mrb[0].mxu0
    %v1852 = vadd.f32 0.0, %v1851
    %v1853 = vpop.f32.mrb[0].mxu0
    %1854 = vmatprep.mubr.f32.mxu0 0.0
    %1855 = vmatmul.mubr.f32.gmra.mrb[0].mxu0 %v1710
    %v1856 = vpop.f32.mrb[0].mxu0
    %v1857 = vadd.f32 0.0, %v1856
    %v1858 = vpop.f32.mrb[0].mxu0
    %1859 = vmatprep.mubr.f32.mxu0 0.0
    %1860 = vmatmul.mubr.f32.gmra.mrb[0].mxu0 %v1711
    %v1861 = vpop.f32.mrb[0].mxu0
    %v1862 = vadd.f32 0.0, %v1861
    %v1863 = vpop.f32.mrb[0].mxu0
    %1864 = vmatprep.mubr.f32.mxu0 0.0
    %1865 = vmatmul.mubr.f32.gmra.mrb[0].mxu0 %v1712
    %v1866 = vpop.f32.mrb[0].mxu0
    %v1867 = vadd.f32 0.0, %v1866
    %v1868 = vpop.f32.mrb[0].mxu0
    %1869 = vdwg.mxu0
    %v1870 = vadd.f32 %v1625, %v1797
    %v1871 = vadd.f32 %v1630, %v1802
    %v1872 = vadd.f32 %v1635, %v1807
    %v1873 = vadd.f32 %v1640, %v1812
    %v1874 = vadd.f32 %v1645, %v1817
    %v1875 = vadd.f32 %v1650, %v1822
    %v1876 = vadd.f32 %v1655, %v1827
    %v1877 = vadd.f32 %v1660, %v1832
    %v1878 = vadd.f32 %v1665, %v1837
    %v1879 = vadd.f32 %v1670, %v1842
    %v1880 = vadd.f32 %v1675, %v1847
    %v1881 = vadd.f32 %v1680, %v1852
    %v1882 = vadd.f32 %v1685, %v1857
    %v1883 = vadd.f32 %v1690, %v1862
    %v1884 = vadd.f32 %v1695, %v1867
    %v1885 = vld [vmem:[#allocation2 + $0xc] sm:$0xff]
    %v1886 = vld [vmem:[#allocation2 + $0x14] sm:$0xff]
    %v1887 = vld [vmem:[#allocation2 + $0x1c] sm:$0xff]
    %v1888 = vld [vmem:[#allocation2 + $0x24] sm:$0xff]
    %v1889 = vld [vmem:[#allocation2 + $0x2c] sm:$0xff]
    %v1890 = vld [vmem:[#allocation2 + $0x34] sm:$0xff]
    %v1891 = vld [vmem:[#allocation2 + $0x3c] sm:$0xff]
    %v1892 = vld [vmem:[#allocation2 + $0x44] sm:$0xff]
    %v1893 = vld [vmem:[#allocation2 + $0x4c] sm:$0xff]
    %v1894 = vld [vmem:[#allocation2 + $0x54] sm:$0xff]
    %v1895 = vld [vmem:[#allocation2 + $0x5c] sm:$0xff]
    %v1896 = vld [vmem:[#allocation2 + $0x64] sm:$0xff]
    %v1897 = vld [vmem:[#allocation2 + $0x6c] sm:$0xff]
    %v1898 = vld [vmem:[#allocation2 + $0x74] sm:$0xff]
    %v1899 = vld [vmem:[#allocation2 + $0x7c] sm:$0x3f]
    %s1900 = scalar_lea.vmem [#allocation4], 384
    %v1901 = vld [vmem:[%s1900] sm:$0xff]
    %v1902 = vld [vmem:[%s1900 + $0x8] sm:$0xff]
    %v1903 = vld [vmem:[%s1900 + $0x10] sm:$0xff]
    %v1904 = vld [vmem:[%s1900 + $0x18] sm:$0xff]
    %v1905 = vld [vmem:[%s1900 + $0x20] sm:$0xff]
    %v1906 = vld [vmem:[%s1900 + $0x28] sm:$0xff]
    %v1907 = vld [vmem:[%s1900 + $0x30] sm:$0xff]
    %v1908 = vld [vmem:[%s1900 + $0x38] sm:$0xff]
    %v1909 = vld [vmem:[%s1900 + $0x40] sm:$0xff]
    %v1910 = vld [vmem:[%s1900 + $0x48] sm:$0xff]
    %v1911 = vld [vmem:[%s1900 + $0x50] sm:$0xff]
    %v1912 = vld [vmem:[%s1900 + $0x58] sm:$0xff]
    %v1913 = vld [vmem:[%s1900 + $0x60] sm:$0xff]
    %v1914 = vld [vmem:[%s1900 + $0x68] sm:$0xff]
    %v1915 = vld [vmem:[%s1900 + $0x70] sm:$0xff]
    %v1916 = vld [vmem:[%s1900 + $0x78] sm:$0xff]
    %1917 = vmatprep.subr.mxu0 0.0
    %1918 = vmatpush1.msra.mxu0 %v1901
    %1919 = vmatprep.subr.mxu0 0.0
    %1920 = vmatpush1.msra.mxu0 %v1902
    %1921 = vmatprep.subr.mxu0 0.0
    %1922 = vmatpush1.msra.mxu0 %v1903
    %1923 = vmatprep.subr.mxu0 0.0
    %1924 = vmatpush1.msra.mxu0 %v1904
    %1925 = vmatprep.subr.mxu0 0.0
    %1926 = vmatpush1.msra.mxu0 %v1905
    %1927 = vmatprep.subr.mxu0 0.0
    %1928 = vmatpush1.msra.mxu0 %v1906
    %1929 = vmatprep.subr.mxu0 0.0
    %1930 = vmatpush1.msra.mxu0 %v1907
    %1931 = vmatprep.subr.mxu0 0.0
    %1932 = vmatpush1.msra.mxu0 %v1908
    %1933 = vmatprep.subr.mxu0 0.0
    %1934 = vmatpush1.msra.mxu0 %v1909
    %1935 = vmatprep.subr.mxu0 0.0
    %1936 = vmatpush1.msra.mxu0 %v1910
    %1937 = vmatprep.subr.mxu0 0.0
    %1938 = vmatpush1.msra.mxu0 %v1911
    %1939 = vmatprep.subr.mxu0 0.0
    %1940 = vmatpush1.msra.mxu0 %v1912
    %1941 = vmatprep.subr.mxu0 0.0
    %1942 = vmatpush1.msra.mxu0 %v1913
    %1943 = vmatprep.subr.mxu0 0.0
    %1944 = vmatpush1.msra.mxu0 %v1914
    %1945 = vmatprep.subr.mxu0 0.0
    %1946 = vmatpush1.msra.mxu0 %v1915
    %1947 = vmatprep.subr.mxu0 0.0
    %1948 = vmatpush1.msra.mxu0 %v1916
    %1949 = vmatprep.subr.mxu0 0.0
    %1950 = vmatpush1.msra.mxu0 0.0
    %1951 = vmatprep.subr.mxu0 0.0
    %1952 = vmatpush1.msra.mxu0 0.0
    %1953 = vmatprep.subr.mxu0 0.0
    %1954 = vmatpush1.msra.mxu0 0.0
    %1955 = vmatprep.subr.mxu0 0.0
    %1956 = vmatpush1.msra.mxu0 0.0
    %1957 = vmatprep.subr.mxu0 0.0
    %1958 = vmatpush1.msra.mxu0 0.0
    %1959 = vmatprep.subr.mxu0 0.0
    %1960 = vmatpush1.msra.mxu0 0.0
    %1961 = vmatprep.subr.mxu0 0.0
    %1962 = vmatpush1.msra.mxu0 0.0
    %1963 = vmatprep.subr.mxu0 0.0
    %1964 = vmatpush1.msra.mxu0 0.0
    %1965 = vmatprep.subr.mxu0 0.0
    %1966 = vmatpush1.msra.mxu0 0.0
    %1967 = vmatprep.subr.mxu0 0.0
    %1968 = vmatpush1.msra.mxu0 0.0
    %1969 = vmatprep.subr.mxu0 0.0
    %1970 = vmatpush1.msra.mxu0 0.0
    %1971 = vmatprep.subr.mxu0 0.0
    %1972 = vmatpush1.msra.mxu0 0.0
    %1973 = vmatprep.subr.mxu0 0.0
    %1974 = vmatpush1.msra.mxu0 0.0
    %1975 = vmatprep.subr.mxu0 0.0
    %1976 = vmatpush1.msra.mxu0 0.0
    %1977 = vmatprep.subr.mxu0 0.0
    %1978 = vmatpush1.msra.mxu0 0.0
    %1979 = vmatprep.subr.mxu0 0.0
    %1980 = vmatpush1.msra.mxu0 0.0
    %1981 = vmatprep.mubr.f32.mxu0 0.0
    %1982 = vmatmul.mubr.f32.gmra.mrb[0].mxu0 %v1885
    %v1983 = vpop.f32.mrb[0].mxu0
    %v1984 = vadd.f32 0.0, %v1983
    %v1985 = vpop.f32.mrb[0].mxu0
    %1986 = vmatprep.mubr.f32.mxu0 0.0
    %1987 = vmatmul.mubr.f32.gmra.mrb[0].mxu0 %v1886
    %v1988 = vpop.f32.mrb[0].mxu0
    %v1989 = vadd.f32 0.0, %v1988
    %v1990 = vpop.f32.mrb[0].mxu0
    %1991 = vmatprep.mubr.f32.mxu0 0.0
    %1992 = vmatmul.mubr.f32.gmra.mrb[0].mxu0 %v1887
    %v1993 = vpop.f32.mrb[0].mxu0
    %v1994 = vadd.f32 0.0, %v1993
    %v1995 = vpop.f32.mrb[0].mxu0
    %1996 = vmatprep.mubr.f32.mxu0 0.0
    %1997 = vmatmul.mubr.f32.gmra.mrb[0].mxu0 %v1888
    %v1998 = vpop.f32.mrb[0].mxu0
    %v1999 = vadd.f32 0.0, %v1998
    %v2000 = vpop.f32.mrb[0].mxu0
    %2001 = vmatprep.mubr.f32.mxu0 0.0
    %2002 = vmatmul.mubr.f32.gmra.mrb[0].mxu0 %v1889
    %v2003 = vpop.f32.mrb[0].mxu0
    %v2004 = vadd.f32 0.0, %v2003
    %v2005 = vpop.f32.mrb[0].mxu0
    %2006 = vmatprep.mubr.f32.mxu0 0.0
    %2007 = vmatmul.mubr.f32.gmra.mrb[0].mxu0 %v1890
    %v2008 = vpop.f32.mrb[0].mxu0
    %v2009 = vadd.f32 0.0, %v2008
    %v2010 = vpop.f32.mrb[0].mxu0
    %2011 = vmatprep.mubr.f32.mxu0 0.0
    %2012 = vmatmul.mubr.f32.gmra.mrb[0].mxu0 %v1891
    %v2013 = vpop.f32.mrb[0].mxu0
    %v2014 = vadd.f32 0.0, %v2013
    %v2015 = vpop.f32.mrb[0].mxu0
    %2016 = vmatprep.mubr.f32.mxu0 0.0
    %2017 = vmatmul.mubr.f32.gmra.mrb[0].mxu0 %v1892
    %v2018 = vpop.f32.mrb[0].mxu0
    %v2019 = vadd.f32 0.0, %v2018
    %v2020 = vpop.f32.mrb[0].mxu0
    %2021 = vmatprep.mubr.f32.mxu0 0.0
    %2022 = vmatmul.mubr.f32.gmra.mrb[0].mxu0 %v1893
    %v2023 = vpop.f32.mrb[0].mxu0
    %v2024 = vadd.f32 0.0, %v2023
    %v2025 = vpop.f32.mrb[0].mxu0
    %2026 = vmatprep.mubr.f32.mxu0 0.0
    %2027 = vmatmul.mubr.f32.gmra.mrb[0].mxu0 %v1894
    %v2028 = vpop.f32.mrb[0].mxu0
    %v2029 = vadd.f32 0.0, %v2028
    %v2030 = vpop.f32.mrb[0].mxu0
    %2031 = vmatprep.mubr.f32.mxu0 0.0
    %2032 = vmatmul.mubr.f32.gmra.mrb[0].mxu0 %v1895
    %v2033 = vpop.f32.mrb[0].mxu0
    %v2034 = vadd.f32 0.0, %v2033
    %v2035 = vpop.f32.mrb[0].mxu0
    %2036 = vmatprep.mubr.f32.mxu0 0.0
    %2037 = vmatmul.mubr.f32.gmra.mrb[0].mxu0 %v1896
    %v2038 = vpop.f32.mrb[0].mxu0
    %v2039 = vadd.f32 0.0, %v2038
    %v2040 = vpop.f32.mrb[0].mxu0
    %2041 = vmatprep.mubr.f32.mxu0 0.0
    %2042 = vmatmul.mubr.f32.gmra.mrb[0].mxu0 %v1897
    %v2043 = vpop.f32.mrb[0].mxu0
    %v2044 = vadd.f32 0.0, %v2043
    %v2045 = vpop.f32.mrb[0].mxu0
    %2046 = vmatprep.mubr.f32.mxu0 0.0
    %2047 = vmatmul.mubr.f32.gmra.mrb[0].mxu0 %v1898
    %v2048 = vpop.f32.mrb[0].mxu0
    %v2049 = vadd.f32 0.0, %v2048
    %v2050 = vpop.f32.mrb[0].mxu0
    %2051 = vmatprep.mubr.f32.mxu0 0.0
    %2052 = vmatmul.mubr.f32.gmra.mrb[0].mxu0 %v1899
    %v2053 = vpop.f32.mrb[0].mxu0
    %v2054 = vadd.f32 0.0, %v2053
    %v2055 = vpop.f32.mrb[0].mxu0
    %2056 = vdwg.mxu0
    %v2057 = vadd.f32 %v1870, %v1984
    %v2058 = vadd.f32 %v1871, %v1989
    %v2059 = vadd.f32 %v1872, %v1994
    %v2060 = vadd.f32 %v1873, %v1999
    %v2061 = vadd.f32 %v1874, %v2004
    %v2062 = vadd.f32 %v1875, %v2009
    %v2063 = vadd.f32 %v1876, %v2014
    %v2064 = vadd.f32 %v1877, %v2019
    %v2065 = vadd.f32 %v1878, %v2024
    %v2066 = vadd.f32 %v1879, %v2029
    %v2067 = vadd.f32 %v1880, %v2034
    %v2068 = vadd.f32 %v1881, %v2039
    %v2069 = vadd.f32 %v1882, %v2044
    %v2070 = vadd.f32 %v1883, %v2049
    %v2071 = vadd.f32 %v1884, %v2054
    %v2072 = vld [vmem:[#allocation2 + $0xd] sm:$0xff]
    %v2073 = vld [vmem:[#allocation2 + $0x15] sm:$0xff]
    %v2074 = vld [vmem:[#allocation2 + $0x1d] sm:$0xff]
    %v2075 = vld [vmem:[#allocation2 + $0x25] sm:$0xff]
    %v2076 = vld [vmem:[#allocation2 + $0x2d] sm:$0xff]
    %v2077 = vld [vmem:[#allocation2 + $0x35] sm:$0xff]
    %v2078 = vld [vmem:[#allocation2 + $0x3d] sm:$0xff]
    %v2079 = vld [vmem:[#allocation2 + $0x45] sm:$0xff]
    %v2080 = vld [vmem:[#allocation2 + $0x4d] sm:$0xff]
    %v2081 = vld [vmem:[#allocation2 + $0x55] sm:$0xff]
    %v2082 = vld [vmem:[#allocation2 + $0x5d] sm:$0xff]
    %v2083 = vld [vmem:[#allocation2 + $0x65] sm:$0xff]
    %v2084 = vld [vmem:[#allocation2 + $0x6d] sm:$0xff]
    %v2085 = vld [vmem:[#allocation2 + $0x75] sm:$0xff]
    %v2086 = vld [vmem:[#allocation2 + $0x7d] sm:$0x3f]
    %s2087 = scalar_lea.vmem [#allocation4], 512
    %v2088 = vld [vmem:[%s2087] sm:$0xff]
    %v2089 = vld [vmem:[%s2087 + $0x8] sm:$0xff]
    %v2090 = vld [vmem:[%s2087 + $0x10] sm:$0xff]
    %v2091 = vld [vmem:[%s2087 + $0x18] sm:$0xff]
    %v2092 = vld [vmem:[%s2087 + $0x20] sm:$0xff]
    %v2093 = vld [vmem:[%s2087 + $0x28] sm:$0xff]
    %v2094 = vld [vmem:[%s2087 + $0x30] sm:$0xff]
    %v2095 = vld [vmem:[%s2087 + $0x38] sm:$0xff]
    %v2096 = vld [vmem:[%s2087 + $0x40] sm:$0xff]
    %v2097 = vld [vmem:[%s2087 + $0x48] sm:$0xff]
    %v2098 = vld [vmem:[%s2087 + $0x50] sm:$0xff]
    %v2099 = vld [vmem:[%s2087 + $0x58] sm:$0xff]
    %v2100 = vld [vmem:[%s2087 + $0x60] sm:$0xff]
    %v2101 = vld [vmem:[%s2087 + $0x68] sm:$0xff]
    %v2102 = vld [vmem:[%s2087 + $0x70] sm:$0xff]
    %v2103 = vld [vmem:[%s2087 + $0x78] sm:$0xff]
    %2104 = vmatprep.subr.mxu0 0.0
    %2105 = vmatpush1.msra.mxu0 %v2088
    %2106 = vmatprep.subr.mxu0 0.0
    %2107 = vmatpush1.msra.mxu0 %v2089
    %2108 = vmatprep.subr.mxu0 0.0
    %2109 = vmatpush1.msra.mxu0 %v2090
    %2110 = vmatprep.subr.mxu0 0.0
    %2111 = vmatpush1.msra.mxu0 %v2091
    %2112 = vmatprep.subr.mxu0 0.0
    %2113 = vmatpush1.msra.mxu0 %v2092
    %2114 = vmatprep.subr.mxu0 0.0
    %2115 = vmatpush1.msra.mxu0 %v2093
    %2116 = vmatprep.subr.mxu0 0.0
    %2117 = vmatpush1.msra.mxu0 %v2094
    %2118 = vmatprep.subr.mxu0 0.0
    %2119 = vmatpush1.msra.mxu0 %v2095
    %2120 = vmatprep.subr.mxu0 0.0
    %2121 = vmatpush1.msra.mxu0 %v2096
    %2122 = vmatprep.subr.mxu0 0.0
    %2123 = vmatpush1.msra.mxu0 %v2097
    %2124 = vmatprep.subr.mxu0 0.0
    %2125 = vmatpush1.msra.mxu0 %v2098
    %2126 = vmatprep.subr.mxu0 0.0
    %2127 = vmatpush1.msra.mxu0 %v2099
    %2128 = vmatprep.subr.mxu0 0.0
    %2129 = vmatpush1.msra.mxu0 %v2100
    %2130 = vmatprep.subr.mxu0 0.0
    %2131 = vmatpush1.msra.mxu0 %v2101
    %2132 = vmatprep.subr.mxu0 0.0
    %2133 = vmatpush1.msra.mxu0 %v2102
    %2134 = vmatprep.subr.mxu0 0.0
    %2135 = vmatpush1.msra.mxu0 %v2103
    %2136 = vmatprep.subr.mxu0 0.0
    %2137 = vmatpush1.msra.mxu0 0.0
    %2138 = vmatprep.subr.mxu0 0.0
    %2139 = vmatpush1.msra.mxu0 0.0
    %2140 = vmatprep.subr.mxu0 0.0
    %2141 = vmatpush1.msra.mxu0 0.0
    %2142 = vmatprep.subr.mxu0 0.0
    %2143 = vmatpush1.msra.mxu0 0.0
    %2144 = vmatprep.subr.mxu0 0.0
    %2145 = vmatpush1.msra.mxu0 0.0
    %2146 = vmatprep.subr.mxu0 0.0
    %2147 = vmatpush1.msra.mxu0 0.0
    %2148 = vmatprep.subr.mxu0 0.0
    %2149 = vmatpush1.msra.mxu0 0.0
    %2150 = vmatprep.subr.mxu0 0.0
    %2151 = vmatpush1.msra.mxu0 0.0
    %2152 = vmatprep.subr.mxu0 0.0
    %2153 = vmatpush1.msra.mxu0 0.0
    %2154 = vmatprep.subr.mxu0 0.0
    %2155 = vmatpush1.msra.mxu0 0.0
    %2156 = vmatprep.subr.mxu0 0.0
    %2157 = vmatpush1.msra.mxu0 0.0
    %2158 = vmatprep.subr.mxu0 0.0
    %2159 = vmatpush1.msra.mxu0 0.0
    %2160 = vmatprep.subr.mxu0 0.0
    %2161 = vmatpush1.msra.mxu0 0.0
    %2162 = vmatprep.subr.mxu0 0.0
    %2163 = vmatpush1.msra.mxu0 0.0
    %2164 = vmatprep.subr.mxu0 0.0
    %2165 = vmatpush1.msra.mxu0 0.0
    %2166 = vmatprep.subr.mxu0 0.0
    %2167 = vmatpush1.msra.mxu0 0.0
    %2168 = vmatprep.mubr.f32.mxu0 0.0
    %2169 = vmatmul.mubr.f32.gmra.mrb[0].mxu0 %v2072
    %v2170 = vpop.f32.mrb[0].mxu0
    %v2171 = vadd.f32 0.0, %v2170
    %v2172 = vpop.f32.mrb[0].mxu0
    %2173 = vmatprep.mubr.f32.mxu0 0.0
    %2174 = vmatmul.mubr.f32.gmra.mrb[0].mxu0 %v2073
    %v2175 = vpop.f32.mrb[0].mxu0
    %v2176 = vadd.f32 0.0, %v2175
    %v2177 = vpop.f32.mrb[0].mxu0
    %2178 = vmatprep.mubr.f32.mxu0 0.0
    %2179 = vmatmul.mubr.f32.gmra.mrb[0].mxu0 %v2074
    %v2180 = vpop.f32.mrb[0].mxu0
    %v2181 = vadd.f32 0.0, %v2180
    %v2182 = vpop.f32.mrb[0].mxu0
    %2183 = vmatprep.mubr.f32.mxu0 0.0
    %2184 = vmatmul.mubr.f32.gmra.mrb[0].mxu0 %v2075
    %v2185 = vpop.f32.mrb[0].mxu0
    %v2186 = vadd.f32 0.0, %v2185
    %v2187 = vpop.f32.mrb[0].mxu0
    %2188 = vmatprep.mubr.f32.mxu0 0.0
    %2189 = vmatmul.mubr.f32.gmra.mrb[0].mxu0 %v2076
    %v2190 = vpop.f32.mrb[0].mxu0
    %v2191 = vadd.f32 0.0, %v2190
    %v2192 = vpop.f32.mrb[0].mxu0
    %2193 = vmatprep.mubr.f32.mxu0 0.0
    %2194 = vmatmul.mubr.f32.gmra.mrb[0].mxu0 %v2077
    %v2195 = vpop.f32.mrb[0].mxu0
    %v2196 = vadd.f32 0.0, %v2195
    %v2197 = vpop.f32.mrb[0].mxu0
    %2198 = vmatprep.mubr.f32.mxu0 0.0
    %2199 = vmatmul.mubr.f32.gmra.mrb[0].mxu0 %v2078
    %v2200 = vpop.f32.mrb[0].mxu0
    %v2201 = vadd.f32 0.0, %v2200
    %v2202 = vpop.f32.mrb[0].mxu0
    %2203 = vmatprep.mubr.f32.mxu0 0.0
    %2204 = vmatmul.mubr.f32.gmra.mrb[0].mxu0 %v2079
    %v2205 = vpop.f32.mrb[0].mxu0
    %v2206 = vadd.f32 0.0, %v2205
    %v2207 = vpop.f32.mrb[0].mxu0
    %2208 = vmatprep.mubr.f32.mxu0 0.0
    %2209 = vmatmul.mubr.f32.gmra.mrb[0].mxu0 %v2080
    %v2210 = vpop.f32.mrb[0].mxu0
    %v2211 = vadd.f32 0.0, %v2210
    %v2212 = vpop.f32.mrb[0].mxu0
    %2213 = vmatprep.mubr.f32.mxu0 0.0
    %2214 = vmatmul.mubr.f32.gmra.mrb[0].mxu0 %v2081
    %v2215 = vpop.f32.mrb[0].mxu0
    %v2216 = vadd.f32 0.0, %v2215
    %v2217 = vpop.f32.mrb[0].mxu0
    %2218 = vmatprep.mubr.f32.mxu0 0.0
    %2219 = vmatmul.mubr.f32.gmra.mrb[0].mxu0 %v2082
    %v2220 = vpop.f32.mrb[0].mxu0
    %v2221 = vadd.f32 0.0, %v2220
    %v2222 = vpop.f32.mrb[0].mxu0
    %2223 = vmatprep.mubr.f32.mxu0 0.0
    %2224 = vmatmul.mubr.f32.gmra.mrb[0].mxu0 %v2083
    %v2225 = vpop.f32.mrb[0].mxu0
    %v2226 = vadd.f32 0.0, %v2225
    %v2227 = vpop.f32.mrb[0].mxu0
    %2228 = vmatprep.mubr.f32.mxu0 0.0
    %2229 = vmatmul.mubr.f32.gmra.mrb[0].mxu0 %v2084
    %v2230 = vpop.f32.mrb[0].mxu0
    %v2231 = vadd.f32 0.0, %v2230
    %v2232 = vpop.f32.mrb[0].mxu0
    %2233 = vmatprep.mubr.f32.mxu0 0.0
    %2234 = vmatmul.mubr.f32.gmra.mrb[0].mxu0 %v2085
    %v2235 = vpop.f32.mrb[0].mxu0
    %v2236 = vadd.f32 0.0, %v2235
    %v2237 = vpop.f32.mrb[0].mxu0
    %2238 = vmatprep.mubr.f32.mxu0 0.0
    %2239 = vmatmul.mubr.f32.gmra.mrb[0].mxu0 %v2086
    %v2240 = vpop.f32.mrb[0].mxu0
    %v2241 = vadd.f32 0.0, %v2240
    %v2242 = vpop.f32.mrb[0].mxu0
    %2243 = vdwg.mxu0
    %v2244 = vadd.f32 %v2057, %v2171
    %v2245 = vadd.f32 %v2058, %v2176
    %v2246 = vadd.f32 %v2059, %v2181
    %v2247 = vadd.f32 %v2060, %v2186
    %v2248 = vadd.f32 %v2061, %v2191
    %v2249 = vadd.f32 %v2062, %v2196
    %v2250 = vadd.f32 %v2063, %v2201
    %v2251 = vadd.f32 %v2064, %v2206
    %v2252 = vadd.f32 %v2065, %v2211
    %v2253 = vadd.f32 %v2066, %v2216
    %v2254 = vadd.f32 %v2067, %v2221
    %v2255 = vadd.f32 %v2068, %v2226
    %v2256 = vadd.f32 %v2069, %v2231
    %v2257 = vadd.f32 %v2070, %v2236
    %v2258 = vadd.f32 %v2071, %v2241
    %v2259 = vld [vmem:[#allocation2 + $0xe] sm:$0xff]
    %v2260 = vld [vmem:[#allocation2 + $0x16] sm:$0xff]
    %v2261 = vld [vmem:[#allocation2 + $0x1e] sm:$0xff]
    %v2262 = vld [vmem:[#allocation2 + $0x26] sm:$0xff]
    %v2263 = vld [vmem:[#allocation2 + $0x2e] sm:$0xff]
    %v2264 = vld [vmem:[#allocation2 + $0x36] sm:$0xff]
    %v2265 = vld [vmem:[#allocation2 + $0x3e] sm:$0xff]
    %v2266 = vld [vmem:[#allocation2 + $0x46] sm:$0xff]
    %v2267 = vld [vmem:[#allocation2 + $0x4e] sm:$0xff]
    %v2268 = vld [vmem:[#allocation2 + $0x56] sm:$0xff]
    %v2269 = vld [vmem:[#allocation2 + $0x5e] sm:$0xff]
    %v2270 = vld [vmem:[#allocation2 + $0x66] sm:$0xff]
    %v2271 = vld [vmem:[#allocation2 + $0x6e] sm:$0xff]
    %v2272 = vld [vmem:[#allocation2 + $0x76] sm:$0xff]
    %v2273 = vld [vmem:[#allocation2 + $0x7e] sm:$0x3f]
    %s2274 = scalar_lea.vmem [#allocation4], 640
    %v2275 = vld [vmem:[%s2274] sm:$0xff]
    %v2276 = vld [vmem:[%s2274 + $0x8] sm:$0xff]
    %v2277 = vld [vmem:[%s2274 + $0x10] sm:$0xff]
    %v2278 = vld [vmem:[%s2274 + $0x18] sm:$0xff]
    %v2279 = vld [vmem:[%s2274 + $0x20] sm:$0xff]
    %v2280 = vld [vmem:[%s2274 + $0x28] sm:$0xff]
    %v2281 = vld [vmem:[%s2274 + $0x30] sm:$0xff]
    %v2282 = vld [vmem:[%s2274 + $0x38] sm:$0xff]
    %v2283 = vld [vmem:[%s2274 + $0x40] sm:$0xff]
    %v2284 = vld [vmem:[%s2274 + $0x48] sm:$0xff]
    %v2285 = vld [vmem:[%s2274 + $0x50] sm:$0xff]
    %v2286 = vld [vmem:[%s2274 + $0x58] sm:$0xff]
    %v2287 = vld [vmem:[%s2274 + $0x60] sm:$0xff]
    %v2288 = vld [vmem:[%s2274 + $0x68] sm:$0xff]
    %v2289 = vld [vmem:[%s2274 + $0x70] sm:$0xff]
    %v2290 = vld [vmem:[%s2274 + $0x78] sm:$0xff]
    %2291 = vmatprep.subr.mxu0 0.0
    %2292 = vmatpush1.msra.mxu0 %v2275
    %2293 = vmatprep.subr.mxu0 0.0
    %2294 = vmatpush1.msra.mxu0 %v2276
    %2295 = vmatprep.subr.mxu0 0.0
    %2296 = vmatpush1.msra.mxu0 %v2277
    %2297 = vmatprep.subr.mxu0 0.0
    %2298 = vmatpush1.msra.mxu0 %v2278
    %2299 = vmatprep.subr.mxu0 0.0
    %2300 = vmatpush1.msra.mxu0 %v2279
    %2301 = vmatprep.subr.mxu0 0.0
    %2302 = vmatpush1.msra.mxu0 %v2280
    %2303 = vmatprep.subr.mxu0 0.0
    %2304 = vmatpush1.msra.mxu0 %v2281
    %2305 = vmatprep.subr.mxu0 0.0
    %2306 = vmatpush1.msra.mxu0 %v2282
    %2307 = vmatprep.subr.mxu0 0.0
    %2308 = vmatpush1.msra.mxu0 %v2283
    %2309 = vmatprep.subr.mxu0 0.0
    %2310 = vmatpush1.msra.mxu0 %v2284
    %2311 = vmatprep.subr.mxu0 0.0
    %2312 = vmatpush1.msra.mxu0 %v2285
    %2313 = vmatprep.subr.mxu0 0.0
    %2314 = vmatpush1.msra.mxu0 %v2286
    %2315 = vmatprep.subr.mxu0 0.0
    %2316 = vmatpush1.msra.mxu0 %v2287
    %2317 = vmatprep.subr.mxu0 0.0
    %2318 = vmatpush1.msra.mxu0 %v2288
    %2319 = vmatprep.subr.mxu0 0.0
    %2320 = vmatpush1.msra.mxu0 %v2289
    %2321 = vmatprep.subr.mxu0 0.0
    %2322 = vmatpush1.msra.mxu0 %v2290
    %2323 = vmatprep.subr.mxu0 0.0
    %2324 = vmatpush1.msra.mxu0 0.0
    %2325 = vmatprep.subr.mxu0 0.0
    %2326 = vmatpush1.msra.mxu0 0.0
    %2327 = vmatprep.subr.mxu0 0.0
    %2328 = vmatpush1.msra.mxu0 0.0
    %2329 = vmatprep.subr.mxu0 0.0
    %2330 = vmatpush1.msra.mxu0 0.0
    %2331 = vmatprep.subr.mxu0 0.0
    %2332 = vmatpush1.msra.mxu0 0.0
    %2333 = vmatprep.subr.mxu0 0.0
    %2334 = vmatpush1.msra.mxu0 0.0
    %2335 = vmatprep.subr.mxu0 0.0
    %2336 = vmatpush1.msra.mxu0 0.0
    %2337 = vmatprep.subr.mxu0 0.0
    %2338 = vmatpush1.msra.mxu0 0.0
    %2339 = vmatprep.subr.mxu0 0.0
    %2340 = vmatpush1.msra.mxu0 0.0
    %2341 = vmatprep.subr.mxu0 0.0
    %2342 = vmatpush1.msra.mxu0 0.0
    %2343 = vmatprep.subr.mxu0 0.0
    %2344 = vmatpush1.msra.mxu0 0.0
    %2345 = vmatprep.subr.mxu0 0.0
    %2346 = vmatpush1.msra.mxu0 0.0
    %2347 = vmatprep.subr.mxu0 0.0
    %2348 = vmatpush1.msra.mxu0 0.0
    %2349 = vmatprep.subr.mxu0 0.0
    %2350 = vmatpush1.msra.mxu0 0.0
    %2351 = vmatprep.subr.mxu0 0.0
    %2352 = vmatpush1.msra.mxu0 0.0
    %2353 = vmatprep.subr.mxu0 0.0
    %2354 = vmatpush1.msra.mxu0 0.0
    %2355 = vmatprep.mubr.f32.mxu0 0.0
    %2356 = vmatmul.mubr.f32.gmra.mrb[0].mxu0 %v2259
    %v2357 = vpop.f32.mrb[0].mxu0
    %v2358 = vadd.f32 0.0, %v2357
    %v2359 = vpop.f32.mrb[0].mxu0
    %2360 = vmatprep.mubr.f32.mxu0 0.0
    %2361 = vmatmul.mubr.f32.gmra.mrb[0].mxu0 %v2260
    %v2362 = vpop.f32.mrb[0].mxu0
    %v2363 = vadd.f32 0.0, %v2362
    %v2364 = vpop.f32.mrb[0].mxu0
    %2365 = vmatprep.mubr.f32.mxu0 0.0
    %2366 = vmatmul.mubr.f32.gmra.mrb[0].mxu0 %v2261
    %v2367 = vpop.f32.mrb[0].mxu0
    %v2368 = vadd.f32 0.0, %v2367
    %v2369 = vpop.f32.mrb[0].mxu0
    %2370 = vmatprep.mubr.f32.mxu0 0.0
    %2371 = vmatmul.mubr.f32.gmra.mrb[0].mxu0 %v2262
    %v2372 = vpop.f32.mrb[0].mxu0
    %v2373 = vadd.f32 0.0, %v2372
    %v2374 = vpop.f32.mrb[0].mxu0
    %2375 = vmatprep.mubr.f32.mxu0 0.0
    %2376 = vmatmul.mubr.f32.gmra.mrb[0].mxu0 %v2263
    %v2377 = vpop.f32.mrb[0].mxu0
    %v2378 = vadd.f32 0.0, %v2377
    %v2379 = vpop.f32.mrb[0].mxu0
    %2380 = vmatprep.mubr.f32.mxu0 0.0
    %2381 = vmatmul.mubr.f32.gmra.mrb[0].mxu0 %v2264
    %v2382 = vpop.f32.mrb[0].mxu0
    %v2383 = vadd.f32 0.0, %v2382
    %v2384 = vpop.f32.mrb[0].mxu0
    %2385 = vmatprep.mubr.f32.mxu0 0.0
    %2386 = vmatmul.mubr.f32.gmra.mrb[0].mxu0 %v2265
    %v2387 = vpop.f32.mrb[0].mxu0
    %v2388 = vadd.f32 0.0, %v2387
    %v2389 = vpop.f32.mrb[0].mxu0
    %2390 = vmatprep.mubr.f32.mxu0 0.0
    %2391 = vmatmul.mubr.f32.gmra.mrb[0].mxu0 %v2266
    %v2392 = vpop.f32.mrb[0].mxu0
    %v2393 = vadd.f32 0.0, %v2392
    %v2394 = vpop.f32.mrb[0].mxu0
    %2395 = vmatprep.mubr.f32.mxu0 0.0
    %2396 = vmatmul.mubr.f32.gmra.mrb[0].mxu0 %v2267
    %v2397 = vpop.f32.mrb[0].mxu0
    %v2398 = vadd.f32 0.0, %v2397
    %v2399 = vpop.f32.mrb[0].mxu0
    %2400 = vmatprep.mubr.f32.mxu0 0.0
    %2401 = vmatmul.mubr.f32.gmra.mrb[0].mxu0 %v2268
    %v2402 = vpop.f32.mrb[0].mxu0
    %v2403 = vadd.f32 0.0, %v2402
    %v2404 = vpop.f32.mrb[0].mxu0
    %2405 = vmatprep.mubr.f32.mxu0 0.0
    %2406 = vmatmul.mubr.f32.gmra.mrb[0].mxu0 %v2269
    %v2407 = vpop.f32.mrb[0].mxu0
    %v2408 = vadd.f32 0.0, %v2407
    %v2409 = vpop.f32.mrb[0].mxu0
    %2410 = vmatprep.mubr.f32.mxu0 0.0
    %2411 = vmatmul.mubr.f32.gmra.mrb[0].mxu0 %v2270
    %v2412 = vpop.f32.mrb[0].mxu0
    %v2413 = vadd.f32 0.0, %v2412
    %v2414 = vpop.f32.mrb[0].mxu0
    %2415 = vmatprep.mubr.f32.mxu0 0.0
    %2416 = vmatmul.mubr.f32.gmra.mrb[0].mxu0 %v2271
    %v2417 = vpop.f32.mrb[0].mxu0
    %v2418 = vadd.f32 0.0, %v2417
    %v2419 = vpop.f32.mrb[0].mxu0
    %2420 = vmatprep.mubr.f32.mxu0 0.0
    %2421 = vmatmul.mubr.f32.gmra.mrb[0].mxu0 %v2272
    %v2422 = vpop.f32.mrb[0].mxu0
    %v2423 = vadd.f32 0.0, %v2422
    %v2424 = vpop.f32.mrb[0].mxu0
    %2425 = vmatprep.mubr.f32.mxu0 0.0
    %2426 = vmatmul.mubr.f32.gmra.mrb[0].mxu0 %v2273
    %v2427 = vpop.f32.mrb[0].mxu0
    %v2428 = vadd.f32 0.0, %v2427
    %v2429 = vpop.f32.mrb[0].mxu0
    %2430 = vdwg.mxu0
    %v2431 = vadd.f32 %v2244, %v2358
    %v2432 = vadd.f32 %v2245, %v2363
    %v2433 = vadd.f32 %v2246, %v2368
    %v2434 = vadd.f32 %v2247, %v2373
    %v2435 = vadd.f32 %v2248, %v2378
    %v2436 = vadd.f32 %v2249, %v2383
    %v2437 = vadd.f32 %v2250, %v2388
    %v2438 = vadd.f32 %v2251, %v2393
    %v2439 = vadd.f32 %v2252, %v2398
    %v2440 = vadd.f32 %v2253, %v2403
    %v2441 = vadd.f32 %v2254, %v2408
    %v2442 = vadd.f32 %v2255, %v2413
    %v2443 = vadd.f32 %v2256, %v2418
    %v2444 = vadd.f32 %v2257, %v2423
    %v2445 = vadd.f32 %v2258, %v2428
    %v2446 = vld [vmem:[#allocation2 + $0x18] sm:$0xff]
    %v2447 = vld [vmem:[#allocation2 + $0x20] sm:$0xff]
    %v2448 = vld [vmem:[#allocation2 + $0x28] sm:$0xff]
    %v2449 = vld [vmem:[#allocation2 + $0x30] sm:$0xff]
    %v2450 = vld [vmem:[#allocation2 + $0x38] sm:$0xff]
    %v2451 = vld [vmem:[#allocation2 + $0x40] sm:$0xff]
    %v2452 = vld [vmem:[#allocation2 + $0x48] sm:$0xff]
    %v2453 = vld [vmem:[#allocation2 + $0x50] sm:$0xff]
    %v2454 = vld [vmem:[#allocation2 + $0x58] sm:$0xff]
    %v2455 = vld [vmem:[#allocation2 + $0x60] sm:$0xff]
    %v2456 = vld [vmem:[#allocation2 + $0x68] sm:$0xff]
    %v2457 = vld [vmem:[#allocation2 + $0x70] sm:$0xff]
    %v2458 = vld [vmem:[#allocation2 + $0x78] sm:$0xff]
    %v2459 = vld [vmem:[#allocation2 + $0x80] sm:$0xff]
    %v2460 = vld [vmem:[#allocation2 + $0x88] sm:$0x3f]
    %s2461 = scalar_lea.vmem [#allocation4], 768
    %v2462 = vld [vmem:[%s2461] sm:$0xff]
    %v2463 = vld [vmem:[%s2461 + $0x8] sm:$0xff]
    %v2464 = vld [vmem:[%s2461 + $0x10] sm:$0xff]
    %v2465 = vld [vmem:[%s2461 + $0x18] sm:$0xff]
    %v2466 = vld [vmem:[%s2461 + $0x20] sm:$0xff]
    %v2467 = vld [vmem:[%s2461 + $0x28] sm:$0xff]
    %v2468 = vld [vmem:[%s2461 + $0x30] sm:$0xff]
    %v2469 = vld [vmem:[%s2461 + $0x38] sm:$0xff]
    %v2470 = vld [vmem:[%s2461 + $0x40] sm:$0xff]
    %v2471 = vld [vmem:[%s2461 + $0x48] sm:$0xff]
    %v2472 = vld [vmem:[%s2461 + $0x50] sm:$0xff]
    %v2473 = vld [vmem:[%s2461 + $0x58] sm:$0xff]
    %v2474 = vld [vmem:[%s2461 + $0x60] sm:$0xff]
    %v2475 = vld [vmem:[%s2461 + $0x68] sm:$0xff]
    %v2476 = vld [vmem:[%s2461 + $0x70] sm:$0xff]
    %v2477 = vld [vmem:[%s2461 + $0x78] sm:$0xff]
    %2478 = vmatprep.subr.mxu0 0.0
    %2479 = vmatpush1.msra.mxu0 %v2462
    %2480 = vmatprep.subr.mxu0 0.0
    %2481 = vmatpush1.msra.mxu0 %v2463
    %2482 = vmatprep.subr.mxu0 0.0
    %2483 = vmatpush1.msra.mxu0 %v2464
    %2484 = vmatprep.subr.mxu0 0.0
    %2485 = vmatpush1.msra.mxu0 %v2465
    %2486 = vmatprep.subr.mxu0 0.0
    %2487 = vmatpush1.msra.mxu0 %v2466
    %2488 = vmatprep.subr.mxu0 0.0
    %2489 = vmatpush1.msra.mxu0 %v2467
    %2490 = vmatprep.subr.mxu0 0.0
    %2491 = vmatpush1.msra.mxu0 %v2468
    %2492 = vmatprep.subr.mxu0 0.0
    %2493 = vmatpush1.msra.mxu0 %v2469
    %2494 = vmatprep.subr.mxu0 0.0
    %2495 = vmatpush1.msra.mxu0 %v2470
    %2496 = vmatprep.subr.mxu0 0.0
    %2497 = vmatpush1.msra.mxu0 %v2471
    %2498 = vmatprep.subr.mxu0 0.0
    %2499 = vmatpush1.msra.mxu0 %v2472
    %2500 = vmatprep.subr.mxu0 0.0
    %2501 = vmatpush1.msra.mxu0 %v2473
    %2502 = vmatprep.subr.mxu0 0.0
    %2503 = vmatpush1.msra.mxu0 %v2474
    %2504 = vmatprep.subr.mxu0 0.0
    %2505 = vmatpush1.msra.mxu0 %v2475
    %2506 = vmatprep.subr.mxu0 0.0
    %2507 = vmatpush1.msra.mxu0 %v2476
    %2508 = vmatprep.subr.mxu0 0.0
    %2509 = vmatpush1.msra.mxu0 %v2477
    %2510 = vmatprep.subr.mxu0 0.0
    %2511 = vmatpush1.msra.mxu0 0.0
    %2512 = vmatprep.subr.mxu0 0.0
    %2513 = vmatpush1.msra.mxu0 0.0
    %2514 = vmatprep.subr.mxu0 0.0
    %2515 = vmatpush1.msra.mxu0 0.0
    %2516 = vmatprep.subr.mxu0 0.0
    %2517 = vmatpush1.msra.mxu0 0.0
    %2518 = vmatprep.subr.mxu0 0.0
    %2519 = vmatpush1.msra.mxu0 0.0
    %2520 = vmatprep.subr.mxu0 0.0
    %2521 = vmatpush1.msra.mxu0 0.0
    %2522 = vmatprep.subr.mxu0 0.0
    %2523 = vmatpush1.msra.mxu0 0.0
    %2524 = vmatprep.subr.mxu0 0.0
    %2525 = vmatpush1.msra.mxu0 0.0
    %2526 = vmatprep.subr.mxu0 0.0
    %2527 = vmatpush1.msra.mxu0 0.0
    %2528 = vmatprep.subr.mxu0 0.0
    %2529 = vmatpush1.msra.mxu0 0.0
    %2530 = vmatprep.subr.mxu0 0.0
    %2531 = vmatpush1.msra.mxu0 0.0
    %2532 = vmatprep.subr.mxu0 0.0
    %2533 = vmatpush1.msra.mxu0 0.0
    %2534 = vmatprep.subr.mxu0 0.0
    %2535 = vmatpush1.msra.mxu0 0.0
    %2536 = vmatprep.subr.mxu0 0.0
    %2537 = vmatpush1.msra.mxu0 0.0
    %2538 = vmatprep.subr.mxu0 0.0
    %2539 = vmatpush1.msra.mxu0 0.0
    %2540 = vmatprep.subr.mxu0 0.0
    %2541 = vmatpush1.msra.mxu0 0.0
    %2542 = vmatprep.mubr.f32.mxu0 0.0
    %2543 = vmatmul.mubr.f32.gmra.mrb[0].mxu0 %v2446
    %v2544 = vpop.f32.mrb[0].mxu0
    %v2545 = vadd.f32 0.0, %v2544
    %v2546 = vpop.f32.mrb[0].mxu0
    %2547 = vmatprep.mubr.f32.mxu0 0.0
    %2548 = vmatmul.mubr.f32.gmra.mrb[0].mxu0 %v2447
    %v2549 = vpop.f32.mrb[0].mxu0
    %v2550 = vadd.f32 0.0, %v2549
    %v2551 = vpop.f32.mrb[0].mxu0
    %2552 = vmatprep.mubr.f32.mxu0 0.0
    %2553 = vmatmul.mubr.f32.gmra.mrb[0].mxu0 %v2448
    %v2554 = vpop.f32.mrb[0].mxu0
    %v2555 = vadd.f32 0.0, %v2554
    %v2556 = vpop.f32.mrb[0].mxu0
    %2557 = vmatprep.mubr.f32.mxu0 0.0
    %2558 = vmatmul.mubr.f32.gmra.mrb[0].mxu0 %v2449
    %v2559 = vpop.f32.mrb[0].mxu0
    %v2560 = vadd.f32 0.0, %v2559
    %v2561 = vpop.f32.mrb[0].mxu0
    %2562 = vmatprep.mubr.f32.mxu0 0.0
    %2563 = vmatmul.mubr.f32.gmra.mrb[0].mxu0 %v2450
    %v2564 = vpop.f32.mrb[0].mxu0
    %v2565 = vadd.f32 0.0, %v2564
    %v2566 = vpop.f32.mrb[0].mxu0
    %2567 = vmatprep.mubr.f32.mxu0 0.0
    %2568 = vmatmul.mubr.f32.gmra.mrb[0].mxu0 %v2451
    %v2569 = vpop.f32.mrb[0].mxu0
    %v2570 = vadd.f32 0.0, %v2569
    %v2571 = vpop.f32.mrb[0].mxu0
    %2572 = vmatprep.mubr.f32.mxu0 0.0
    %2573 = vmatmul.mubr.f32.gmra.mrb[0].mxu0 %v2452
    %v2574 = vpop.f32.mrb[0].mxu0
    %v2575 = vadd.f32 0.0, %v2574
    %v2576 = vpop.f32.mrb[0].mxu0
    %2577 = vmatprep.mubr.f32.mxu0 0.0
    %2578 = vmatmul.mubr.f32.gmra.mrb[0].mxu0 %v2453
    %v2579 = vpop.f32.mrb[0].mxu0
    %v2580 = vadd.f32 0.0, %v2579
    %v2581 = vpop.f32.mrb[0].mxu0
    %2582 = vmatprep.mubr.f32.mxu0 0.0
    %2583 = vmatmul.mubr.f32.gmra.mrb[0].mxu0 %v2454
    %v2584 = vpop.f32.mrb[0].mxu0
    %v2585 = vadd.f32 0.0, %v2584
    %v2586 = vpop.f32.mrb[0].mxu0
    %2587 = vmatprep.mubr.f32.mxu0 0.0
    %2588 = vmatmul.mubr.f32.gmra.mrb[0].mxu0 %v2455
    %v2589 = vpop.f32.mrb[0].mxu0
    %v2590 = vadd.f32 0.0, %v2589
    %v2591 = vpop.f32.mrb[0].mxu0
    %2592 = vmatprep.mubr.f32.mxu0 0.0
    %2593 = vmatmul.mubr.f32.gmra.mrb[0].mxu0 %v2456
    %v2594 = vpop.f32.mrb[0].mxu0
    %v2595 = vadd.f32 0.0, %v2594
    %v2596 = vpop.f32.mrb[0].mxu0
    %2597 = vmatprep.mubr.f32.mxu0 0.0
    %2598 = vmatmul.mubr.f32.gmra.mrb[0].mxu0 %v2457
    %v2599 = vpop.f32.mrb[0].mxu0
    %v2600 = vadd.f32 0.0, %v2599
    %v2601 = vpop.f32.mrb[0].mxu0
    %2602 = vmatprep.mubr.f32.mxu0 0.0
    %2603 = vmatmul.mubr.f32.gmra.mrb[0].mxu0 %v2458
    %v2604 = vpop.f32.mrb[0].mxu0
    %v2605 = vadd.f32 0.0, %v2604
    %v2606 = vpop.f32.mrb[0].mxu0
    %2607 = vmatprep.mubr.f32.mxu0 0.0
    %2608 = vmatmul.mubr.f32.gmra.mrb[0].mxu0 %v2459
    %v2609 = vpop.f32.mrb[0].mxu0
    %v2610 = vadd.f32 0.0, %v2609
    %v2611 = vpop.f32.mrb[0].mxu0
    %2612 = vmatprep.mubr.f32.mxu0 0.0
    %2613 = vmatmul.mubr.f32.gmra.mrb[0].mxu0 %v2460
    %v2614 = vpop.f32.mrb[0].mxu0
    %v2615 = vadd.f32 0.0, %v2614
    %v2616 = vpop.f32.mrb[0].mxu0
    %2617 = vdwg.mxu0
    %v2618 = vadd.f32 %v2431, %v2545
    %v2619 = vadd.f32 %v2432, %v2550
    %v2620 = vadd.f32 %v2433, %v2555
    %v2621 = vadd.f32 %v2434, %v2560
    %v2622 = vadd.f32 %v2435, %v2565
    %v2623 = vadd.f32 %v2436, %v2570
    %v2624 = vadd.f32 %v2437, %v2575
    %v2625 = vadd.f32 %v2438, %v2580
    %v2626 = vadd.f32 %v2439, %v2585
    %v2627 = vadd.f32 %v2440, %v2590
    %v2628 = vadd.f32 %v2441, %v2595
    %v2629 = vadd.f32 %v2442, %v2600
    %v2630 = vadd.f32 %v2443, %v2605
    %v2631 = vadd.f32 %v2444, %v2610
    %v2632 = vadd.f32 %v2445, %v2615
    %v2633 = vld [vmem:[#allocation2 + $0x19] sm:$0xff]
    %v2634 = vld [vmem:[#allocation2 + $0x21] sm:$0xff]
    %v2635 = vld [vmem:[#allocation2 + $0x29] sm:$0xff]
    %v2636 = vld [vmem:[#allocation2 + $0x31] sm:$0xff]
    %v2637 = vld [vmem:[#allocation2 + $0x39] sm:$0xff]
    %v2638 = vld [vmem:[#allocation2 + $0x41] sm:$0xff]
    %v2639 = vld [vmem:[#allocation2 + $0x49] sm:$0xff]
    %v2640 = vld [vmem:[#allocation2 + $0x51] sm:$0xff]
    %v2641 = vld [vmem:[#allocation2 + $0x59] sm:$0xff]
    %v2642 = vld [vmem:[#allocation2 + $0x61] sm:$0xff]
    %v2643 = vld [vmem:[#allocation2 + $0x69] sm:$0xff]
    %v2644 = vld [vmem:[#allocation2 + $0x71] sm:$0xff]
    %v2645 = vld [vmem:[#allocation2 + $0x79] sm:$0xff]
    %v2646 = vld [vmem:[#allocation2 + $0x81] sm:$0xff]
    %v2647 = vld [vmem:[#allocation2 + $0x89] sm:$0x3f]
    %s2648 = scalar_lea.vmem [#allocation4], 896
    %v2649 = vld [vmem:[%s2648] sm:$0xff]
    %v2650 = vld [vmem:[%s2648 + $0x8] sm:$0xff]
    %v2651 = vld [vmem:[%s2648 + $0x10] sm:$0xff]
    %v2652 = vld [vmem:[%s2648 + $0x18] sm:$0xff]
    %v2653 = vld [vmem:[%s2648 + $0x20] sm:$0xff]
    %v2654 = vld [vmem:[%s2648 + $0x28] sm:$0xff]
    %v2655 = vld [vmem:[%s2648 + $0x30] sm:$0xff]
    %v2656 = vld [vmem:[%s2648 + $0x38] sm:$0xff]
    %v2657 = vld [vmem:[%s2648 + $0x40] sm:$0xff]
    %v2658 = vld [vmem:[%s2648 + $0x48] sm:$0xff]
    %v2659 = vld [vmem:[%s2648 + $0x50] sm:$0xff]
    %v2660 = vld [vmem:[%s2648 + $0x58] sm:$0xff]
    %v2661 = vld [vmem:[%s2648 + $0x60] sm:$0xff]
    %v2662 = vld [vmem:[%s2648 + $0x68] sm:$0xff]
    %v2663 = vld [vmem:[%s2648 + $0x70] sm:$0xff]
    %v2664 = vld [vmem:[%s2648 + $0x78] sm:$0xff]
    %2665 = vmatprep.subr.mxu0 0.0
    %2666 = vmatpush1.msra.mxu0 %v2649
    %2667 = vmatprep.subr.mxu0 0.0
    %2668 = vmatpush1.msra.mxu0 %v2650
    %2669 = vmatprep.subr.mxu0 0.0
    %2670 = vmatpush1.msra.mxu0 %v2651
    %2671 = vmatprep.subr.mxu0 0.0
    %2672 = vmatpush1.msra.mxu0 %v2652
    %2673 = vmatprep.subr.mxu0 0.0
    %2674 = vmatpush1.msra.mxu0 %v2653
    %2675 = vmatprep.subr.mxu0 0.0
    %2676 = vmatpush1.msra.mxu0 %v2654
    %2677 = vmatprep.subr.mxu0 0.0
    %2678 = vmatpush1.msra.mxu0 %v2655
    %2679 = vmatprep.subr.mxu0 0.0
    %2680 = vmatpush1.msra.mxu0 %v2656
    %2681 = vmatprep.subr.mxu0 0.0
    %2682 = vmatpush1.msra.mxu0 %v2657
    %2683 = vmatprep.subr.mxu0 0.0
    %2684 = vmatpush1.msra.mxu0 %v2658
    %2685 = vmatprep.subr.mxu0 0.0
    %2686 = vmatpush1.msra.mxu0 %v2659
    %2687 = vmatprep.subr.mxu0 0.0
    %2688 = vmatpush1.msra.mxu0 %v2660
    %2689 = vmatprep.subr.mxu0 0.0
    %2690 = vmatpush1.msra.mxu0 %v2661
    %2691 = vmatprep.subr.mxu0 0.0
    %2692 = vmatpush1.msra.mxu0 %v2662
    %2693 = vmatprep.subr.mxu0 0.0
    %2694 = vmatpush1.msra.mxu0 %v2663
    %2695 = vmatprep.subr.mxu0 0.0
    %2696 = vmatpush1.msra.mxu0 %v2664
    %2697 = vmatprep.subr.mxu0 0.0
    %2698 = vmatpush1.msra.mxu0 0.0
    %2699 = vmatprep.subr.mxu0 0.0
    %2700 = vmatpush1.msra.mxu0 0.0
    %2701 = vmatprep.subr.mxu0 0.0
    %2702 = vmatpush1.msra.mxu0 0.0
    %2703 = vmatprep.subr.mxu0 0.0
    %2704 = vmatpush1.msra.mxu0 0.0
    %2705 = vmatprep.subr.mxu0 0.0
    %2706 = vmatpush1.msra.mxu0 0.0
    %2707 = vmatprep.subr.mxu0 0.0
    %2708 = vmatpush1.msra.mxu0 0.0
    %2709 = vmatprep.subr.mxu0 0.0
    %2710 = vmatpush1.msra.mxu0 0.0
    %2711 = vmatprep.subr.mxu0 0.0
    %2712 = vmatpush1.msra.mxu0 0.0
    %2713 = vmatprep.subr.mxu0 0.0
    %2714 = vmatpush1.msra.mxu0 0.0
    %2715 = vmatprep.subr.mxu0 0.0
    %2716 = vmatpush1.msra.mxu0 0.0
    %2717 = vmatprep.subr.mxu0 0.0
    %2718 = vmatpush1.msra.mxu0 0.0
    %2719 = vmatprep.subr.mxu0 0.0
    %2720 = vmatpush1.msra.mxu0 0.0
    %2721 = vmatprep.subr.mxu0 0.0
    %2722 = vmatpush1.msra.mxu0 0.0
    %2723 = vmatprep.subr.mxu0 0.0
    %2724 = vmatpush1.msra.mxu0 0.0
    %2725 = vmatprep.subr.mxu0 0.0
    %2726 = vmatpush1.msra.mxu0 0.0
    %2727 = vmatprep.subr.mxu0 0.0
    %2728 = vmatpush1.msra.mxu0 0.0
    %2729 = vmatprep.mubr.f32.mxu0 0.0
    %2730 = vmatmul.mubr.f32.gmra.mrb[0].mxu0 %v2633
    %v2731 = vpop.f32.mrb[0].mxu0
    %v2732 = vadd.f32 0.0, %v2731
    %v2733 = vpop.f32.mrb[0].mxu0
    %2734 = vmatprep.mubr.f32.mxu0 0.0
    %2735 = vmatmul.mubr.f32.gmra.mrb[0].mxu0 %v2634
    %v2736 = vpop.f32.mrb[0].mxu0
    %v2737 = vadd.f32 0.0, %v2736
    %v2738 = vpop.f32.mrb[0].mxu0
    %2739 = vmatprep.mubr.f32.mxu0 0.0
    %2740 = vmatmul.mubr.f32.gmra.mrb[0].mxu0 %v2635
    %v2741 = vpop.f32.mrb[0].mxu0
    %v2742 = vadd.f32 0.0, %v2741
    %v2743 = vpop.f32.mrb[0].mxu0
    %2744 = vmatprep.mubr.f32.mxu0 0.0
    %2745 = vmatmul.mubr.f32.gmra.mrb[0].mxu0 %v2636
    %v2746 = vpop.f32.mrb[0].mxu0
    %v2747 = vadd.f32 0.0, %v2746
    %v2748 = vpop.f32.mrb[0].mxu0
    %2749 = vmatprep.mubr.f32.mxu0 0.0
    %2750 = vmatmul.mubr.f32.gmra.mrb[0].mxu0 %v2637
    %v2751 = vpop.f32.mrb[0].mxu0
    %v2752 = vadd.f32 0.0, %v2751
    %v2753 = vpop.f32.mrb[0].mxu0
    %2754 = vmatprep.mubr.f32.mxu0 0.0
    %2755 = vmatmul.mubr.f32.gmra.mrb[0].mxu0 %v2638
    %v2756 = vpop.f32.mrb[0].mxu0
    %v2757 = vadd.f32 0.0, %v2756
    %v2758 = vpop.f32.mrb[0].mxu0
    %2759 = vmatprep.mubr.f32.mxu0 0.0
    %2760 = vmatmul.mubr.f32.gmra.mrb[0].mxu0 %v2639
    %v2761 = vpop.f32.mrb[0].mxu0
    %v2762 = vadd.f32 0.0, %v2761
    %v2763 = vpop.f32.mrb[0].mxu0
    %2764 = vmatprep.mubr.f32.mxu0 0.0
    %2765 = vmatmul.mubr.f32.gmra.mrb[0].mxu0 %v2640
    %v2766 = vpop.f32.mrb[0].mxu0
    %v2767 = vadd.f32 0.0, %v2766
    %v2768 = vpop.f32.mrb[0].mxu0
    %2769 = vmatprep.mubr.f32.mxu0 0.0
    %2770 = vmatmul.mubr.f32.gmra.mrb[0].mxu0 %v2641
    %v2771 = vpop.f32.mrb[0].mxu0
    %v2772 = vadd.f32 0.0, %v2771
    %v2773 = vpop.f32.mrb[0].mxu0
    %2774 = vmatprep.mubr.f32.mxu0 0.0
    %2775 = vmatmul.mubr.f32.gmra.mrb[0].mxu0 %v2642
    %v2776 = vpop.f32.mrb[0].mxu0
    %v2777 = vadd.f32 0.0, %v2776
    %v2778 = vpop.f32.mrb[0].mxu0
    %2779 = vmatprep.mubr.f32.mxu0 0.0
    %2780 = vmatmul.mubr.f32.gmra.mrb[0].mxu0 %v2643
    %v2781 = vpop.f32.mrb[0].mxu0
    %v2782 = vadd.f32 0.0, %v2781
    %v2783 = vpop.f32.mrb[0].mxu0
    %2784 = vmatprep.mubr.f32.mxu0 0.0
    %2785 = vmatmul.mubr.f32.gmra.mrb[0].mxu0 %v2644
    %v2786 = vpop.f32.mrb[0].mxu0
    %v2787 = vadd.f32 0.0, %v2786
    %v2788 = vpop.f32.mrb[0].mxu0
    %2789 = vmatprep.mubr.f32.mxu0 0.0
    %2790 = vmatmul.mubr.f32.gmra.mrb[0].mxu0 %v2645
    %v2791 = vpop.f32.mrb[0].mxu0
    %v2792 = vadd.f32 0.0, %v2791
    %v2793 = vpop.f32.mrb[0].mxu0
    %2794 = vmatprep.mubr.f32.mxu0 0.0
    %2795 = vmatmul.mubr.f32.gmra.mrb[0].mxu0 %v2646
    %v2796 = vpop.f32.mrb[0].mxu0
    %v2797 = vadd.f32 0.0, %v2796
    %v2798 = vpop.f32.mrb[0].mxu0
    %2799 = vmatprep.mubr.f32.mxu0 0.0
    %2800 = vmatmul.mubr.f32.gmra.mrb[0].mxu0 %v2647
    %v2801 = vpop.f32.mrb[0].mxu0
    %v2802 = vadd.f32 0.0, %v2801
    %v2803 = vpop.f32.mrb[0].mxu0
    %2804 = vdwg.mxu0
    %v2805 = vadd.f32 %v2618, %v2732
    %v2806 = vadd.f32 %v2619, %v2737
    %v2807 = vadd.f32 %v2620, %v2742
    %v2808 = vadd.f32 %v2621, %v2747
    %v2809 = vadd.f32 %v2622, %v2752
    %v2810 = vadd.f32 %v2623, %v2757
    %v2811 = vadd.f32 %v2624, %v2762
    %v2812 = vadd.f32 %v2625, %v2767
    %v2813 = vadd.f32 %v2626, %v2772
    %v2814 = vadd.f32 %v2627, %v2777
    %v2815 = vadd.f32 %v2628, %v2782
    %v2816 = vadd.f32 %v2629, %v2787
    %v2817 = vadd.f32 %v2630, %v2792
    %v2818 = vadd.f32 %v2631, %v2797
    %v2819 = vadd.f32 %v2632, %v2802
    %v2820 = vld [vmem:[#allocation2 + $0x1a] sm:$0xff]
    %v2821 = vld [vmem:[#allocation2 + $0x22] sm:$0xff]
    %v2822 = vld [vmem:[#allocation2 + $0x2a] sm:$0xff]
    %v2823 = vld [vmem:[#allocation2 + $0x32] sm:$0xff]
    %v2824 = vld [vmem:[#allocation2 + $0x3a] sm:$0xff]
    %v2825 = vld [vmem:[#allocation2 + $0x42] sm:$0xff]
    %v2826 = vld [vmem:[#allocation2 + $0x4a] sm:$0xff]
    %v2827 = vld [vmem:[#allocation2 + $0x52] sm:$0xff]
    %v2828 = vld [vmem:[#allocation2 + $0x5a] sm:$0xff]
    %v2829 = vld [vmem:[#allocation2 + $0x62] sm:$0xff]
    %v2830 = vld [vmem:[#allocation2 + $0x6a] sm:$0xff]
    %v2831 = vld [vmem:[#allocation2 + $0x72] sm:$0xff]
    %v2832 = vld [vmem:[#allocation2 + $0x7a] sm:$0xff]
    %v2833 = vld [vmem:[#allocation2 + $0x82] sm:$0xff]
    %v2834 = vld [vmem:[#allocation2 + $0x8a] sm:$0x3f]
    %s2835 = scalar_lea.vmem [#allocation4], 1024
    %v2836 = vld [vmem:[%s2835] sm:$0xff]
    %v2837 = vld [vmem:[%s2835 + $0x8] sm:$0xff]
    %v2838 = vld [vmem:[%s2835 + $0x10] sm:$0xff]
    %v2839 = vld [vmem:[%s2835 + $0x18] sm:$0xff]
    %v2840 = vld [vmem:[%s2835 + $0x20] sm:$0xff]
    %v2841 = vld [vmem:[%s2835 + $0x28] sm:$0xff]
    %v2842 = vld [vmem:[%s2835 + $0x30] sm:$0xff]
    %v2843 = vld [vmem:[%s2835 + $0x38] sm:$0xff]
    %v2844 = vld [vmem:[%s2835 + $0x40] sm:$0xff]
    %v2845 = vld [vmem:[%s2835 + $0x48] sm:$0xff]
    %v2846 = vld [vmem:[%s2835 + $0x50] sm:$0xff]
    %v2847 = vld [vmem:[%s2835 + $0x58] sm:$0xff]
    %v2848 = vld [vmem:[%s2835 + $0x60] sm:$0xff]
    %v2849 = vld [vmem:[%s2835 + $0x68] sm:$0xff]
    %v2850 = vld [vmem:[%s2835 + $0x70] sm:$0xff]
    %v2851 = vld [vmem:[%s2835 + $0x78] sm:$0xff]
    %2852 = vmatprep.subr.mxu0 0.0
    %2853 = vmatpush1.msra.mxu0 %v2836
    %2854 = vmatprep.subr.mxu0 0.0
    %2855 = vmatpush1.msra.mxu0 %v2837
    %2856 = vmatprep.subr.mxu0 0.0
    %2857 = vmatpush1.msra.mxu0 %v2838
    %2858 = vmatprep.subr.mxu0 0.0
    %2859 = vmatpush1.msra.mxu0 %v2839
    %2860 = vmatprep.subr.mxu0 0.0
    %2861 = vmatpush1.msra.mxu0 %v2840
    %2862 = vmatprep.subr.mxu0 0.0
    %2863 = vmatpush1.msra.mxu0 %v2841
    %2864 = vmatprep.subr.mxu0 0.0
    %2865 = vmatpush1.msra.mxu0 %v2842
    %2866 = vmatprep.subr.mxu0 0.0
    %2867 = vmatpush1.msra.mxu0 %v2843
    %2868 = vmatprep.subr.mxu0 0.0
    %2869 = vmatpush1.msra.mxu0 %v2844
    %2870 = vmatprep.subr.mxu0 0.0
    %2871 = vmatpush1.msra.mxu0 %v2845
    %2872 = vmatprep.subr.mxu0 0.0
    %2873 = vmatpush1.msra.mxu0 %v2846
    %2874 = vmatprep.subr.mxu0 0.0
    %2875 = vmatpush1.msra.mxu0 %v2847
    %2876 = vmatprep.subr.mxu0 0.0
    %2877 = vmatpush1.msra.mxu0 %v2848
    %2878 = vmatprep.subr.mxu0 0.0
    %2879 = vmatpush1.msra.mxu0 %v2849
    %2880 = vmatprep.subr.mxu0 0.0
    %2881 = vmatpush1.msra.mxu0 %v2850
    %2882 = vmatprep.subr.mxu0 0.0
    %2883 = vmatpush1.msra.mxu0 %v2851
    %2884 = vmatprep.subr.mxu0 0.0
    %2885 = vmatpush1.msra.mxu0 0.0
    %2886 = vmatprep.subr.mxu0 0.0
    %2887 = vmatpush1.msra.mxu0 0.0
    %2888 = vmatprep.subr.mxu0 0.0
    %2889 = vmatpush1.msra.mxu0 0.0
    %2890 = vmatprep.subr.mxu0 0.0
    %2891 = vmatpush1.msra.mxu0 0.0
    %2892 = vmatprep.subr.mxu0 0.0
    %2893 = vmatpush1.msra.mxu0 0.0
    %2894 = vmatprep.subr.mxu0 0.0
    %2895 = vmatpush1.msra.mxu0 0.0
    %2896 = vmatprep.subr.mxu0 0.0
    %2897 = vmatpush1.msra.mxu0 0.0
    %2898 = vmatprep.subr.mxu0 0.0
    %2899 = vmatpush1.msra.mxu0 0.0
    %2900 = vmatprep.subr.mxu0 0.0
    %2901 = vmatpush1.msra.mxu0 0.0
    %2902 = vmatprep.subr.mxu0 0.0
    %2903 = vmatpush1.msra.mxu0 0.0
    %2904 = vmatprep.subr.mxu0 0.0
    %2905 = vmatpush1.msra.mxu0 0.0
    %2906 = vmatprep.subr.mxu0 0.0
    %2907 = vmatpush1.msra.mxu0 0.0
    %2908 = vmatprep.subr.mxu0 0.0
    %2909 = vmatpush1.msra.mxu0 0.0
    %2910 = vmatprep.subr.mxu0 0.0
    %2911 = vmatpush1.msra.mxu0 0.0
    %2912 = vmatprep.subr.mxu0 0.0
    %2913 = vmatpush1.msra.mxu0 0.0
    %2914 = vmatprep.subr.mxu0 0.0
    %2915 = vmatpush1.msra.mxu0 0.0
    %2916 = vmatprep.mubr.f32.mxu0 0.0
    %2917 = vmatmul.mubr.f32.gmra.mrb[0].mxu0 %v2820
    %v2918 = vpop.f32.mrb[0].mxu0
    %v2919 = vadd.f32 0.0, %v2918
    %v2920 = vpop.f32.mrb[0].mxu0
    %2921 = vmatprep.mubr.f32.mxu0 0.0
    %2922 = vmatmul.mubr.f32.gmra.mrb[0].mxu0 %v2821
    %v2923 = vpop.f32.mrb[0].mxu0
    %v2924 = vadd.f32 0.0, %v2923
    %v2925 = vpop.f32.mrb[0].mxu0
    %2926 = vmatprep.mubr.f32.mxu0 0.0
    %2927 = vmatmul.mubr.f32.gmra.mrb[0].mxu0 %v2822
    %v2928 = vpop.f32.mrb[0].mxu0
    %v2929 = vadd.f32 0.0, %v2928
    %v2930 = vpop.f32.mrb[0].mxu0
    %2931 = vmatprep.mubr.f32.mxu0 0.0
    %2932 = vmatmul.mubr.f32.gmra.mrb[0].mxu0 %v2823
    %v2933 = vpop.f32.mrb[0].mxu0
    %v2934 = vadd.f32 0.0, %v2933
    %v2935 = vpop.f32.mrb[0].mxu0
    %2936 = vmatprep.mubr.f32.mxu0 0.0
    %2937 = vmatmul.mubr.f32.gmra.mrb[0].mxu0 %v2824
    %v2938 = vpop.f32.mrb[0].mxu0
    %v2939 = vadd.f32 0.0, %v2938
    %v2940 = vpop.f32.mrb[0].mxu0
    %2941 = vmatprep.mubr.f32.mxu0 0.0
    %2942 = vmatmul.mubr.f32.gmra.mrb[0].mxu0 %v2825
    %v2943 = vpop.f32.mrb[0].mxu0
    %v2944 = vadd.f32 0.0, %v2943
    %v2945 = vpop.f32.mrb[0].mxu0
    %2946 = vmatprep.mubr.f32.mxu0 0.0
    %2947 = vmatmul.mubr.f32.gmra.mrb[0].mxu0 %v2826
    %v2948 = vpop.f32.mrb[0].mxu0
    %v2949 = vadd.f32 0.0, %v2948
    %v2950 = vpop.f32.mrb[0].mxu0
    %2951 = vmatprep.mubr.f32.mxu0 0.0
    %2952 = vmatmul.mubr.f32.gmra.mrb[0].mxu0 %v2827
    %v2953 = vpop.f32.mrb[0].mxu0
    %v2954 = vadd.f32 0.0, %v2953
    %v2955 = vpop.f32.mrb[0].mxu0
    %2956 = vmatprep.mubr.f32.mxu0 0.0
    %2957 = vmatmul.mubr.f32.gmra.mrb[0].mxu0 %v2828
    %v2958 = vpop.f32.mrb[0].mxu0
    %v2959 = vadd.f32 0.0, %v2958
    %v2960 = vpop.f32.mrb[0].mxu0
    %2961 = vmatprep.mubr.f32.mxu0 0.0
    %2962 = vmatmul.mubr.f32.gmra.mrb[0].mxu0 %v2829
    %v2963 = vpop.f32.mrb[0].mxu0
    %v2964 = vadd.f32 0.0, %v2963
    %v2965 = vpop.f32.mrb[0].mxu0
    %2966 = vmatprep.mubr.f32.mxu0 0.0
    %2967 = vmatmul.mubr.f32.gmra.mrb[0].mxu0 %v2830
    %v2968 = vpop.f32.mrb[0].mxu0
    %v2969 = vadd.f32 0.0, %v2968
    %v2970 = vpop.f32.mrb[0].mxu0
    %2971 = vmatprep.mubr.f32.mxu0 0.0
    %2972 = vmatmul.mubr.f32.gmra.mrb[0].mxu0 %v2831
    %v2973 = vpop.f32.mrb[0].mxu0
    %v2974 = vadd.f32 0.0, %v2973
    %v2975 = vpop.f32.mrb[0].mxu0
    %2976 = vmatprep.mubr.f32.mxu0 0.0
    %2977 = vmatmul.mubr.f32.gmra.mrb[0].mxu0 %v2832
    %v2978 = vpop.f32.mrb[0].mxu0
    %v2979 = vadd.f32 0.0, %v2978
    %v2980 = vpop.f32.mrb[0].mxu0
    %2981 = vmatprep.mubr.f32.mxu0 0.0
    %2982 = vmatmul.mubr.f32.gmra.mrb[0].mxu0 %v2833
    %v2983 = vpop.f32.mrb[0].mxu0
    %v2984 = vadd.f32 0.0, %v2983
    %v2985 = vpop.f32.mrb[0].mxu0
    %2986 = vmatprep.mubr.f32.mxu0 0.0
    %2987 = vmatmul.mubr.f32.gmra.mrb[0].mxu0 %v2834
    %v2988 = vpop.f32.mrb[0].mxu0
    %v2989 = vadd.f32 0.0, %v2988
    %v2990 = vpop.f32.mrb[0].mxu0
    %2991 = vdwg.mxu0
    %v2992 = vadd.f32 %v2805, %v2919
    %v2993 = vadd.f32 %v2806, %v2924
    %v2994 = vadd.f32 %v2807, %v2929
    %v2995 = vadd.f32 %v2808, %v2934
    %v2996 = vadd.f32 %v2809, %v2939
    %v2997 = vadd.f32 %v2810, %v2944
    %v2998 = vadd.f32 %v2811, %v2949
    %v2999 = vadd.f32 %v2812, %v2954
    %v3000 = vadd.f32 %v2813, %v2959
    %v3001 = vadd.f32 %v2814, %v2964
    %v3002 = vadd.f32 %v2815, %v2969
    %v3003 = vadd.f32 %v2816, %v2974
    %v3004 = vadd.f32 %v2817, %v2979
    %v3005 = vadd.f32 %v2818, %v2984
    %v3006 = vadd.f32 %v2819, %v2989
    %v3007 = vld [vmem:[%s5] sm:$0x1]
    %v3009 = vlaneseq
    %v3010 = vshrl.u32 %v3009, 7
    %v3011 = vsub.s32 0, %v3010
    %v3012 = vrot.slane %v3007, %v3011
    %v3014 = vadd.f32 %v2992, %v3012
    %v3015 = vadd.f32 %v2993, %v3012
    %v3016 = vadd.f32 %v2994, %v3012
    %v3017 = vadd.f32 %v2995, %v3012
    %v3018 = vadd.f32 %v2996, %v3012
    %v3019 = vadd.f32 %v2997, %v3012
    %v3020 = vadd.f32 %v2998, %v3012
    %v3021 = vadd.f32 %v2999, %v3012
    %v3022 = vadd.f32 %v3000, %v3012
    %v3023 = vadd.f32 %v3001, %v3012
    %v3024 = vadd.f32 %v3002, %v3012
    %v3025 = vadd.f32 %v3003, %v3012
    %v3026 = vadd.f32 %v3004, %v3012
    %v3027 = vadd.f32 %v3005, %v3012
    %v3028 = vadd.f32 %v3006, %v3012
    %v3029 = vmax.f32 %v3014, 0.0
    %v3030 = vmax.f32 %v3015, 0.0
    %v3031 = vmax.f32 %v3016, 0.0
    %v3032 = vmax.f32 %v3017, 0.0
    %v3033 = vmax.f32 %v3018, 0.0
    %v3034 = vmax.f32 %v3019, 0.0
    %v3035 = vmax.f32 %v3020, 0.0
    %v3036 = vmax.f32 %v3021, 0.0
    %v3037 = vmax.f32 %v3022, 0.0
    %v3038 = vmax.f32 %v3023, 0.0
    %v3039 = vmax.f32 %v3024, 0.0
    %v3040 = vmax.f32 %v3025, 0.0
    %v3041 = vmax.f32 %v3026, 0.0
    %v3042 = vmax.f32 %v3027, 0.0
    %v3043 = vmax.f32 %v3028, 0.0
    %3044 = vst [vmem:[#allocation3] sm:$0xff] %v3029
    %3045 = vst [vmem:[#allocation3 + $0x8] sm:$0xff] %v3030
    %3046 = vst [vmem:[#allocation3 + $0x10] sm:$0xff] %v3031
    %3047 = vst [vmem:[#allocation3 + $0x18] sm:$0xff] %v3032
    %3048 = vst [vmem:[#allocation3 + $0x20] sm:$0xff] %v3033
    %3049 = vst [vmem:[#allocation3 + $0x28] sm:$0xff] %v3034
    %3050 = vst [vmem:[#allocation3 + $0x30] sm:$0xff] %v3035
    %3051 = vst [vmem:[#allocation3 + $0x38] sm:$0xff] %v3036
    %3052 = vst [vmem:[#allocation3 + $0x40] sm:$0xff] %v3037
    %3053 = vst [vmem:[#allocation3 + $0x48] sm:$0xff] %v3038
    %3054 = vst [vmem:[#allocation3 + $0x50] sm:$0xff] %v3039
    %3055 = vst [vmem:[#allocation3 + $0x58] sm:$0xff] %v3040
    %3056 = vst [vmem:[#allocation3 + $0x60] sm:$0xff] %v3041
    %3057 = vst [vmem:[#allocation3 + $0x68] sm:$0xff] %v3042
    %3058 = vst [vmem:[#allocation3 + $0x70] sm:$0x3f] %v3043
    %v3059 = vld [vmem:[#allocation3] sm:$0xff]
    %v3060 = vld [vmem:[#allocation3 + $0x8] sm:$0xff]
    %v3061 = vld [vmem:[#allocation3 + $0x10] sm:$0xff]
    %v3062 = vld [vmem:[#allocation3 + $0x18] sm:$0xff]
    %v3063 = vld [vmem:[#allocation3 + $0x20] sm:$0xff]
    %v3064 = vld [vmem:[#allocation3 + $0x28] sm:$0xff]
    %v3065 = vld [vmem:[#allocation3 + $0x30] sm:$0xff]
    %v3066 = vld [vmem:[#allocation3 + $0x38] sm:$0xff]
    %v3067 = vld [vmem:[#allocation3 + $0x40] sm:$0xff]
    %v3068 = vld [vmem:[#allocation3 + $0x48] sm:$0xff]
    %v3069 = vld [vmem:[#allocation3 + $0x50] sm:$0xff]
    %v3070 = vld [vmem:[#allocation3 + $0x58] sm:$0xff]
    %v3071 = vld [vmem:[#allocation3 + $0x60] sm:$0xff]
    %v3072 = vld [vmem:[#allocation3 + $0x68] sm:$0x1]
    %v3073 = vld [vmem:[#allocation3 + $0x1] sm:$0xff]
    %v3074 = vld [vmem:[#allocation3 + $0x9] sm:$0xff]
    %v3075 = vld [vmem:[#allocation3 + $0x11] sm:$0xff]
    %v3076 = vld [vmem:[#allocation3 + $0x19] sm:$0xff]
    %v3077 = vld [vmem:[#allocation3 + $0x21] sm:$0xff]
    %v3078 = vld [vmem:[#allocation3 + $0x29] sm:$0xff]
    %v3079 = vld [vmem:[#allocation3 + $0x31] sm:$0xff]
    %v3080 = vld [vmem:[#allocation3 + $0x39] sm:$0xff]
    %v3081 = vld [vmem:[#allocation3 + $0x41] sm:$0xff]
    %v3082 = vld [vmem:[#allocation3 + $0x49] sm:$0xff]
    %v3083 = vld [vmem:[#allocation3 + $0x51] sm:$0xff]
    %v3084 = vld [vmem:[#allocation3 + $0x59] sm:$0xff]
    %v3085 = vld [vmem:[#allocation3 + $0x61] sm:$0xff]
    %v3086 = vld [vmem:[#allocation3 + $0x69] sm:$0x1]
    %v3087 = vmax.f32 %v3059, %v3073
    %v3088 = vmax.f32 %v3060, %v3074
    %v3089 = vmax.f32 %v3061, %v3075
    %v3090 = vmax.f32 %v3062, %v3076
    %v3091 = vmax.f32 %v3063, %v3077
    %v3092 = vmax.f32 %v3064, %v3078
    %v3093 = vmax.f32 %v3065, %v3079
    %v3094 = vmax.f32 %v3066, %v3080
    %v3095 = vmax.f32 %v3067, %v3081
    %v3096 = vmax.f32 %v3068, %v3082
    %v3097 = vmax.f32 %v3069, %v3083
    %v3098 = vmax.f32 %v3070, %v3084
    %v3099 = vmax.f32 %v3071, %v3085
    %v3100 = vmax.f32 %v3072, %v3086
    %v3101 = vld [vmem:[#allocation3 + $0xc] sm:$0xff]
    %v3102 = vld [vmem:[#allocation3 + $0x14] sm:$0xff]
    %v3103 = vld [vmem:[#allocation3 + $0x1c] sm:$0xff]
    %v3104 = vld [vmem:[#allocation3 + $0x24] sm:$0xff]
    %v3105 = vld [vmem:[#allocation3 + $0x2c] sm:$0xff]
    %v3106 = vld [vmem:[#allocation3 + $0x34] sm:$0xff]
    %v3107 = vld [vmem:[#allocation3 + $0x3c] sm:$0xff]
    %v3108 = vld [vmem:[#allocation3 + $0x44] sm:$0xff]
    %v3109 = vld [vmem:[#allocation3 + $0x4c] sm:$0xff]
    %v3110 = vld [vmem:[#allocation3 + $0x54] sm:$0xff]
    %v3111 = vld [vmem:[#allocation3 + $0x5c] sm:$0xff]
    %v3112 = vld [vmem:[#allocation3 + $0x64] sm:$0xff]
    %v3113 = vld [vmem:[#allocation3 + $0x6c] sm:$0xff]
    %v3114 = vld [vmem:[#allocation3 + $0x74] sm:$0x1]
    %v3115 = vld [vmem:[#allocation3 + $0xd] sm:$0xff]
    %v3116 = vld [vmem:[#allocation3 + $0x15] sm:$0xff]
    %v3117 = vld [vmem:[#allocation3 + $0x1d] sm:$0xff]
    %v3118 = vld [vmem:[#allocation3 + $0x25] sm:$0xff]
    %v3119 = vld [vmem:[#allocation3 + $0x2d] sm:$0xff]
    %v3120 = vld [vmem:[#allocation3 + $0x35] sm:$0xff]
    %v3121 = vld [vmem:[#allocation3 + $0x3d] sm:$0xff]
    %v3122 = vld [vmem:[#allocation3 + $0x45] sm:$0xff]
    %v3123 = vld [vmem:[#allocation3 + $0x4d] sm:$0xff]
    %v3124 = vld [vmem:[#allocation3 + $0x55] sm:$0xff]
    %v3125 = vld [vmem:[#allocation3 + $0x5d] sm:$0xff]
    %v3126 = vld [vmem:[#allocation3 + $0x65] sm:$0xff]
    %v3127 = vld [vmem:[#allocation3 + $0x6d] sm:$0xff]
    %v3128 = vld [vmem:[#allocation3 + $0x75] sm:$0x1]
    %v3129 = vmax.f32 %v3101, %v3115
    %v3130 = vmax.f32 %v3102, %v3116
    %v3131 = vmax.f32 %v3103, %v3117
    %v3132 = vmax.f32 %v3104, %v3118
    %v3133 = vmax.f32 %v3105, %v3119
    %v3134 = vmax.f32 %v3106, %v3120
    %v3135 = vmax.f32 %v3107, %v3121
    %v3136 = vmax.f32 %v3108, %v3122
    %v3137 = vmax.f32 %v3109, %v3123
    %v3138 = vmax.f32 %v3110, %v3124
    %v3139 = vmax.f32 %v3111, %v3125
    %v3140 = vmax.f32 %v3112, %v3126
    %v3141 = vmax.f32 %v3113, %v3127
    %v3142 = vmax.f32 %v3114, %v3128
    %v3143 = vmax.f32 %v3087, %v3129
    %v3144 = vmax.f32 %v3088, %v3130
    %v3145 = vmax.f32 %v3089, %v3131
    %v3146 = vmax.f32 %v3090, %v3132
    %v3147 = vmax.f32 %v3091, %v3133
    %v3148 = vmax.f32 %v3092, %v3134
    %v3149 = vmax.f32 %v3093, %v3135
    %v3150 = vmax.f32 %v3094, %v3136
    %v3151 = vmax.f32 %v3095, %v3137
    %v3152 = vmax.f32 %v3096, %v3138
    %v3153 = vmax.f32 %v3097, %v3139
    %v3154 = vmax.f32 %v3098, %v3140
    %v3155 = vmax.f32 %v3099, %v3141
    %v3156 = vmax.f32 %v3100, %v3142
    %v3157 = vld [vmem:[%s6] sm:$0xff]
    %v3158 = vld [vmem:[%s6 + $0x8] sm:$0xff]
    %v3159 = vld [vmem:[%s6 + $0x10] sm:$0xff]
    %v3160 = vld [vmem:[%s6 + $0x18] sm:$0x1]
    %vm3161 = vcmask 859136
    %v3163 = vsel %vm3161, %v3157, 0
    %v3166 = vsel %vm3161, %v3158, 0
    %v3169 = vsel %vm3161, %v3159, 0
    %v3172 = vsel %vm3161, %v3160, 0
    %vm3174 = vcmask 1040384
    %v3176 = vsel %vm3174, %v3156, 0
    %3178 = vmatprep.subr.mxu0 0.0
    %3179 = vmatpush1.msra.mxu0 %v3143
    %3180 = vmatprep.subr.mxu0 0.0
    %3181 = vmatpush1.msra.mxu0 %v3144
    %3182 = vmatprep.subr.mxu0 0.0
    %3183 = vmatpush1.msra.mxu0 %v3145
    %3184 = vmatprep.subr.mxu0 0.0
    %3185 = vmatpush1.msra.mxu0 %v3146
    %3186 = vmatprep.subr.mxu0 0.0
    %3187 = vmatpush1.msra.mxu0 %v3147
    %3188 = vmatprep.subr.mxu0 0.0
    %3189 = vmatpush1.msra.mxu0 %v3148
    %3190 = vmatprep.subr.mxu0 0.0
    %3191 = vmatpush1.msra.mxu0 %v3149
    %3192 = vmatprep.subr.mxu0 0.0
    %3193 = vmatpush1.msra.mxu0 %v3150
    %3194 = vmatprep.subr.mxu0 0.0
    %3195 = vmatpush1.msra.mxu0 %v3151
    %3196 = vmatprep.subr.mxu0 0.0
    %3197 = vmatpush1.msra.mxu0 %v3152
    %3198 = vmatprep.subr.mxu0 0.0
    %3199 = vmatpush1.msra.mxu0 %v3153
    %3200 = vmatprep.subr.mxu0 0.0
    %3201 = vmatpush1.msra.mxu0 %v3154
    %3202 = vmatprep.subr.mxu0 0.0
    %3203 = vmatpush1.msra.mxu0 %v3155
    %3204 = vmatprep.subr.mxu0 0.0
    %3205 = vmatpush1.msra.mxu0 %v3176
    %3206 = vmatprep.subr.mxu0 0.0
    %3207 = vmatpush1.msra.mxu0 0.0
    %3208 = vmatprep.subr.mxu0 0.0
    %3209 = vmatpush1.msra.mxu0 0.0
    %3210 = vmatprep.subr.mxu0 0.0
    %3211 = vmatpush1.msra.mxu0 0.0
    %3212 = vmatprep.subr.mxu0 0.0
    %3213 = vmatpush1.msra.mxu0 0.0
    %3214 = vmatprep.subr.mxu0 0.0
    %3215 = vmatpush1.msra.mxu0 0.0
    %3216 = vmatprep.subr.mxu0 0.0
    %3217 = vmatpush1.msra.mxu0 0.0
    %3218 = vmatprep.subr.mxu0 0.0
    %3219 = vmatpush1.msra.mxu0 0.0
    %3220 = vmatprep.subr.mxu0 0.0
    %3221 = vmatpush1.msra.mxu0 0.0
    %3222 = vmatprep.subr.mxu0 0.0
    %3223 = vmatpush1.msra.mxu0 0.0
    %3224 = vmatprep.subr.mxu0 0.0
    %3225 = vmatpush1.msra.mxu0 0.0
    %3226 = vmatprep.subr.mxu0 0.0
    %3227 = vmatpush1.msra.mxu0 0.0
    %3228 = vmatprep.subr.mxu0 0.0
    %3229 = vmatpush1.msra.mxu0 0.0
    %3230 = vmatprep.subr.mxu0 0.0
    %3231 = vmatpush1.msra.mxu0 0.0
    %3232 = vmatprep.subr.mxu0 0.0
    %3233 = vmatpush1.msra.mxu0 0.0
    %3234 = vmatprep.subr.mxu0 0.0
    %3235 = vmatpush1.msra.mxu0 0.0
    %3236 = vmatprep.subr.mxu0 0.0
    %3237 = vmatpush1.msra.mxu0 0.0
    %3238 = vmatprep.subr.mxu0 0.0
    %3239 = vmatpush1.msra.mxu0 0.0
    %3240 = vmatprep.subr.mxu0 0.0
    %3241 = vmatpush1.msra.mxu0 0.0
    %3242 = vmatprep.mubr.f32.mxu0 0.0
    %3243 = vmatmul.mubr.f32.gmra.mrb[0].mxu0 %v3163
    %v3244 = vpop.f32.mrb[0].mxu0
    %v3245 = vadd.f32 0.0, %v3244
    %v3246 = vpop.f32.mrb[0].mxu0
    %3247 = vmatprep.mubr.f32.mxu0 0.0
    %3248 = vmatmul.mubr.f32.gmra.mrb[0].mxu0 %v3166
    %v3249 = vpop.f32.mrb[0].mxu0
    %v3250 = vadd.f32 0.0, %v3249
    %v3251 = vpop.f32.mrb[0].mxu0
    %3252 = vmatprep.mubr.f32.mxu0 0.0
    %3253 = vmatmul.mubr.f32.gmra.mrb[0].mxu0 %v3169
    %v3254 = vpop.f32.mrb[0].mxu0
    %v3255 = vadd.f32 0.0, %v3254
    %v3256 = vpop.f32.mrb[0].mxu0
    %3257 = vmatprep.mubr.f32.mxu0 0.0
    %3258 = vmatmul.mubr.f32.gmra.mrb[0].mxu0 %v3172
    %v3259 = vpop.f32.mrb[0].mxu0
    %v3260 = vadd.f32 0.0, %v3259
    %v3261 = vpop.f32.mrb[0].mxu0
    %3262 = vdwg.mxu0
    %v3263 = vld [vmem:[%s7] sm:$0xff]
    %v3264 = vld [vmem:[%s7 + $0x8] sm:$0xff]
    %v3265 = vld [vmem:[%s7 + $0x10] sm:$0xff]
    %v3266 = vld [vmem:[%s7 + $0x18] sm:$0xff]
    %v3267 = vld [vmem:[%s7 + $0x20] sm:$0xff]
    %v3268 = vld [vmem:[%s7 + $0x28] sm:$0xff]
    %v3269 = vld [vmem:[%s7 + $0x30] sm:$0xff]
    %v3270 = vld [vmem:[%s7 + $0x38] sm:$0xff]
    %v3271 = vld [vmem:[%s7 + $0x40] sm:$0xff]
    %v3272 = vld [vmem:[%s7 + $0x48] sm:$0xff]
    %v3273 = vld [vmem:[%s7 + $0x50] sm:$0xff]
    %v3274 = vld [vmem:[%s7 + $0x58] sm:$0xff]
    %v3275 = vld [vmem:[%s7 + $0x60] sm:$0xff]
    %v3276 = vld [vmem:[%s7 + $0x68] sm:$0xff]
    %v3277 = vld [vmem:[%s7 + $0x70] sm:$0xff]
    %v3278 = vld [vmem:[%s7 + $0x78] sm:$0xff]
    %3279 = vmatprep.subr.mxu0 0.0
    %3280 = vmatpush1.msra.mxu0 %v3263
    %3281 = vmatprep.subr.mxu0 0.0
    %3282 = vmatpush1.msra.mxu0 %v3264
    %3283 = vmatprep.subr.mxu0 0.0
    %3284 = vmatpush1.msra.mxu0 %v3265
    %3285 = vmatprep.subr.mxu0 0.0
    %3286 = vmatpush1.msra.mxu0 %v3266
    %3287 = vmatprep.subr.mxu0 0.0
    %3288 = vmatpush1.msra.mxu0 %v3267
    %3289 = vmatprep.subr.mxu0 0.0
    %3290 = vmatpush1.msra.mxu0 %v3268
    %3291 = vmatprep.subr.mxu0 0.0
    %3292 = vmatpush1.msra.mxu0 %v3269
    %3293 = vmatprep.subr.mxu0 0.0
    %3294 = vmatpush1.msra.mxu0 %v3270
    %3295 = vmatprep.subr.mxu0 0.0
    %3296 = vmatpush1.msra.mxu0 %v3271
    %3297 = vmatprep.subr.mxu0 0.0
    %3298 = vmatpush1.msra.mxu0 %v3272
    %3299 = vmatprep.subr.mxu0 0.0
    %3300 = vmatpush1.msra.mxu0 %v3273
    %3301 = vmatprep.subr.mxu0 0.0
    %3302 = vmatpush1.msra.mxu0 %v3274
    %3303 = vmatprep.subr.mxu0 0.0
    %3304 = vmatpush1.msra.mxu0 %v3275
    %3305 = vmatprep.subr.mxu0 0.0
    %3306 = vmatpush1.msra.mxu0 %v3276
    %3307 = vmatprep.subr.mxu0 0.0
    %3308 = vmatpush1.msra.mxu0 %v3277
    %3309 = vmatprep.subr.mxu0 0.0
    %3310 = vmatpush1.msra.mxu0 %v3278
    %3311 = vmatprep.subr.mxu0 0.0
    %3312 = vmatpush1.msra.mxu0 0.0
    %3313 = vmatprep.subr.mxu0 0.0
    %3314 = vmatpush1.msra.mxu0 0.0
    %3315 = vmatprep.subr.mxu0 0.0
    %3316 = vmatpush1.msra.mxu0 0.0
    %3317 = vmatprep.subr.mxu0 0.0
    %3318 = vmatpush1.msra.mxu0 0.0
    %3319 = vmatprep.subr.mxu0 0.0
    %3320 = vmatpush1.msra.mxu0 0.0
    %3321 = vmatprep.subr.mxu0 0.0
    %3322 = vmatpush1.msra.mxu0 0.0
    %3323 = vmatprep.subr.mxu0 0.0
    %3324 = vmatpush1.msra.mxu0 0.0
    %3325 = vmatprep.subr.mxu0 0.0
    %3326 = vmatpush1.msra.mxu0 0.0
    %3327 = vmatprep.subr.mxu0 0.0
    %3328 = vmatpush1.msra.mxu0 0.0
    %3329 = vmatprep.subr.mxu0 0.0
    %3330 = vmatpush1.msra.mxu0 0.0
    %3331 = vmatprep.subr.mxu0 0.0
    %3332 = vmatpush1.msra.mxu0 0.0
    %3333 = vmatprep.subr.mxu0 0.0
    %3334 = vmatpush1.msra.mxu0 0.0
    %3335 = vmatprep.subr.mxu0 0.0
    %3336 = vmatpush1.msra.mxu0 0.0
    %3337 = vmatprep.subr.mxu0 0.0
    %3338 = vmatpush1.msra.mxu0 0.0
    %3339 = vmatprep.subr.mxu0 0.0
    %3340 = vmatpush1.msra.mxu0 0.0
    %3341 = vmatprep.subr.mxu0 0.0
    %3342 = vmatpush1.msra.mxu0 0.0
    %3343 = vmatprep.mubr.f32.mxu0 0.0
    %3344 = vmatmul.mubr.f32.gmra.mrb[0].mxu0 %v3245
    %v3345 = vpop.f32.mrb[0].mxu0
    %v3346 = vadd.f32 0.0, %v3345
    %v3347 = vpop.f32.mrb[0].mxu0
    %3348 = vmatprep.mubr.f32.mxu0 0.0
    %3349 = vmatmul.mubr.f32.gmra.mrb[0].mxu0 %v3250
    %v3350 = vpop.f32.mrb[0].mxu0
    %v3351 = vadd.f32 0.0, %v3350
    %v3352 = vpop.f32.mrb[0].mxu0
    %3353 = vmatprep.mubr.f32.mxu0 0.0
    %3354 = vmatmul.mubr.f32.gmra.mrb[0].mxu0 %v3255
    %v3355 = vpop.f32.mrb[0].mxu0
    %v3356 = vadd.f32 0.0, %v3355
    %v3357 = vpop.f32.mrb[0].mxu0
    %3358 = vmatprep.mubr.f32.mxu0 0.0
    %3359 = vmatmul.mubr.f32.gmra.mrb[0].mxu0 %v3260
    %v3360 = vpop.f32.mrb[0].mxu0
    %v3361 = vadd.f32 0.0, %v3360
    %v3362 = vpop.f32.mrb[0].mxu0
    %3363 = vdwg.mxu0
    %v3364 = vld [vmem:[%s8] sm:$0xff]
    %v3365 = vld [vmem:[%s8 + $0x8] sm:$0xff]
    %v3366 = vld [vmem:[%s8 + $0x10] sm:$0xff]
    %v3367 = vld [vmem:[%s8 + $0x18] sm:$0xff]
    %v3368 = vld [vmem:[%s8 + $0x20] sm:$0xff]
    %v3369 = vld [vmem:[%s8 + $0x28] sm:$0xff]
    %v3370 = vld [vmem:[%s8 + $0x30] sm:$0xff]
    %v3371 = vld [vmem:[%s8 + $0x38] sm:$0xff]
    %v3372 = vld [vmem:[%s8 + $0x40] sm:$0xff]
    %v3373 = vld [vmem:[%s8 + $0x48] sm:$0xff]
    %v3374 = vld [vmem:[%s8 + $0x50] sm:$0xff]
    %v3375 = vld [vmem:[%s8 + $0x58] sm:$0xff]
    %v3376 = vld [vmem:[%s8 + $0x60] sm:$0xf]
    %s3377 = scalar_lea.vmem %s7, 128
    %v3378 = vld [vmem:[%s3377] sm:$0xff]
    %v3379 = vld [vmem:[%s3377 + $0x8] sm:$0xff]
    %v3380 = vld [vmem:[%s3377 + $0x10] sm:$0xff]
    %v3381 = vld [vmem:[%s3377 + $0x18] sm:$0xff]
    %v3382 = vld [vmem:[%s3377 + $0x20] sm:$0xff]
    %v3383 = vld [vmem:[%s3377 + $0x28] sm:$0xff]
    %v3384 = vld [vmem:[%s3377 + $0x30] sm:$0xff]
    %v3385 = vld [vmem:[%s3377 + $0x38] sm:$0xff]
    %v3386 = vld [vmem:[%s3377 + $0x40] sm:$0xff]
    %v3387 = vld [vmem:[%s3377 + $0x48] sm:$0xff]
    %v3388 = vld [vmem:[%s3377 + $0x50] sm:$0xff]
    %v3389 = vld [vmem:[%s3377 + $0x58] sm:$0xff]
    %v3390 = vld [vmem:[%s3377 + $0x60] sm:$0xff]
    %v3391 = vld [vmem:[%s3377 + $0x68] sm:$0xff]
    %v3392 = vld [vmem:[%s3377 + $0x70] sm:$0xff]
    %v3393 = vld [vmem:[%s3377 + $0x78] sm:$0xff]
    %3394 = vmatprep.subr.mxu0 0.0
    %3395 = vmatpush1.msra.mxu0 %v3378
    %3396 = vmatprep.subr.mxu0 0.0
    %3397 = vmatpush1.msra.mxu0 %v3379
    %3398 = vmatprep.subr.mxu0 0.0
    %3399 = vmatpush1.msra.mxu0 %v3380
    %3400 = vmatprep.subr.mxu0 0.0
    %3401 = vmatpush1.msra.mxu0 %v3381
    %3402 = vmatprep.subr.mxu0 0.0
    %3403 = vmatpush1.msra.mxu0 %v3382
    %3404 = vmatprep.subr.mxu0 0.0
    %3405 = vmatpush1.msra.mxu0 %v3383
    %3406 = vmatprep.subr.mxu0 0.0
    %3407 = vmatpush1.msra.mxu0 %v3384
    %3408 = vmatprep.subr.mxu0 0.0
    %3409 = vmatpush1.msra.mxu0 %v3385
    %3410 = vmatprep.subr.mxu0 0.0
    %3411 = vmatpush1.msra.mxu0 %v3386
    %3412 = vmatprep.subr.mxu0 0.0
    %3413 = vmatpush1.msra.mxu0 %v3387
    %3414 = vmatprep.subr.mxu0 0.0
    %3415 = vmatpush1.msra.mxu0 %v3388
    %3416 = vmatprep.subr.mxu0 0.0
    %3417 = vmatpush1.msra.mxu0 %v3389
    %3418 = vmatprep.subr.mxu0 0.0
    %3419 = vmatpush1.msra.mxu0 %v3390
    %3420 = vmatprep.subr.mxu0 0.0
    %3421 = vmatpush1.msra.mxu0 %v3391
    %3422 = vmatprep.subr.mxu0 0.0
    %3423 = vmatpush1.msra.mxu0 %v3392
    %3424 = vmatprep.subr.mxu0 0.0
    %3425 = vmatpush1.msra.mxu0 %v3393
    %3426 = vmatprep.subr.mxu0 0.0
    %3427 = vmatpush1.msra.mxu0 0.0
    %3428 = vmatprep.subr.mxu0 0.0
    %3429 = vmatpush1.msra.mxu0 0.0
    %3430 = vmatprep.subr.mxu0 0.0
    %3431 = vmatpush1.msra.mxu0 0.0
    %3432 = vmatprep.subr.mxu0 0.0
    %3433 = vmatpush1.msra.mxu0 0.0
    %3434 = vmatprep.subr.mxu0 0.0
    %3435 = vmatpush1.msra.mxu0 0.0
    %3436 = vmatprep.subr.mxu0 0.0
    %3437 = vmatpush1.msra.mxu0 0.0
    %3438 = vmatprep.subr.mxu0 0.0
    %3439 = vmatpush1.msra.mxu0 0.0
    %3440 = vmatprep.subr.mxu0 0.0
    %3441 = vmatpush1.msra.mxu0 0.0
    %3442 = vmatprep.subr.mxu0 0.0
    %3443 = vmatpush1.msra.mxu0 0.0
    %3444 = vmatprep.subr.mxu0 0.0
    %3445 = vmatpush1.msra.mxu0 0.0
    %3446 = vmatprep.subr.mxu0 0.0
    %3447 = vmatpush1.msra.mxu0 0.0
    %3448 = vmatprep.subr.mxu0 0.0
    %3449 = vmatpush1.msra.mxu0 0.0
    %3450 = vmatprep.subr.mxu0 0.0
    %3451 = vmatpush1.msra.mxu0 0.0
    %3452 = vmatprep.subr.mxu0 0.0
    %3453 = vmatpush1.msra.mxu0 0.0
    %3454 = vmatprep.subr.mxu0 0.0
    %3455 = vmatpush1.msra.mxu0 0.0
    %3456 = vmatprep.subr.mxu0 0.0
    %3457 = vmatpush1.msra.mxu0 0.0
    %3458 = vmatprep.mubr.f32.mxu0 0.0
    %3459 = vmatmul.mubr.f32.gmra.mrb[0].mxu0 %v3245
    %v3460 = vpop.f32.mrb[0].mxu0
    %v3461 = vadd.f32 0.0, %v3460
    %v3462 = vpop.f32.mrb[0].mxu0
    %3463 = vmatprep.mubr.f32.mxu0 0.0
    %3464 = vmatmul.mubr.f32.gmra.mrb[0].mxu0 %v3250
    %v3465 = vpop.f32.mrb[0].mxu0
    %v3466 = vadd.f32 0.0, %v3465
    %v3467 = vpop.f32.mrb[0].mxu0
    %3468 = vmatprep.mubr.f32.mxu0 0.0
    %3469 = vmatmul.mubr.f32.gmra.mrb[0].mxu0 %v3255
    %v3470 = vpop.f32.mrb[0].mxu0
    %v3471 = vadd.f32 0.0, %v3470
    %v3472 = vpop.f32.mrb[0].mxu0
    %3473 = vmatprep.mubr.f32.mxu0 0.0
    %3474 = vmatmul.mubr.f32.gmra.mrb[0].mxu0 %v3260
    %v3475 = vpop.f32.mrb[0].mxu0
    %v3476 = vadd.f32 0.0, %v3475
    %v3477 = vpop.f32.mrb[0].mxu0
    %3478 = vdwg.mxu0
    %s3479 = scalar_lea.vmem %s8, 104
    %v3480 = vld [vmem:[%s3479] sm:$0xff]
    %v3481 = vld [vmem:[%s3479 + $0x8] sm:$0xff]
    %v3482 = vld [vmem:[%s3479 + $0x10] sm:$0xff]
    %v3483 = vld [vmem:[%s3479 + $0x18] sm:$0xff]
    %v3484 = vld [vmem:[%s3479 + $0x20] sm:$0xff]
    %v3485 = vld [vmem:[%s3479 + $0x28] sm:$0xff]
    %v3486 = vld [vmem:[%s3479 + $0x30] sm:$0xff]
    %v3487 = vld [vmem:[%s3479 + $0x38] sm:$0xff]
    %v3488 = vld [vmem:[%s3479 + $0x40] sm:$0xff]
    %v3489 = vld [vmem:[%s3479 + $0x48] sm:$0xff]
    %v3490 = vld [vmem:[%s3479 + $0x50] sm:$0xff]
    %v3491 = vld [vmem:[%s3479 + $0x58] sm:$0xff]
    %v3492 = vld [vmem:[%s3479 + $0x60] sm:$0xf]
    %vm3493 = vcmask 203776
    %v3495 = vsel %vm3493, %v3480, 0
    %v3498 = vsel %vm3493, %v3481, 0
    %v3501 = vsel %vm3493, %v3482, 0
    %v3504 = vsel %vm3493, %v3483, 0
    %v3507 = vsel %vm3493, %v3484, 0
    %v3510 = vsel %vm3493, %v3485, 0
    %v3513 = vsel %vm3493, %v3486, 0
    %v3516 = vsel %vm3493, %v3487, 0
    %v3519 = vsel %vm3493, %v3488, 0
    %v3522 = vsel %vm3493, %v3489, 0
    %v3525 = vsel %vm3493, %v3490, 0
    %v3528 = vsel %vm3493, %v3491, 0
    %v3531 = vsel %vm3493, %v3492, 0
    %v3534 = vsel %vm3174, %v3476, 0
    %3536 = vmatprep.subr.mxu0 0.0
    %3537 = vmatpush1.msra.mxu0 %v3461
    %3538 = vmatprep.subr.mxu0 0.0
    %3539 = vmatpush1.msra.mxu0 %v3466
    %3540 = vmatprep.subr.mxu0 0.0
    %3541 = vmatpush1.msra.mxu0 %v3471
    %3542 = vmatprep.subr.mxu0 0.0
    %3543 = vmatpush1.msra.mxu0 %v3534
    %3544 = vmatprep.subr.mxu0 0.0
    %3545 = vmatpush1.msra.mxu0 0.0
    %3546 = vmatprep.subr.mxu0 0.0
    %3547 = vmatpush1.msra.mxu0 0.0
    %3548 = vmatprep.subr.mxu0 0.0
    %3549 = vmatpush1.msra.mxu0 0.0
    %3550 = vmatprep.subr.mxu0 0.0
    %3551 = vmatpush1.msra.mxu0 0.0
    %3552 = vmatprep.subr.mxu0 0.0
    %3553 = vmatpush1.msra.mxu0 0.0
    %3554 = vmatprep.subr.mxu0 0.0
    %3555 = vmatpush1.msra.mxu0 0.0
    %3556 = vmatprep.subr.mxu0 0.0
    %3557 = vmatpush1.msra.mxu0 0.0
    %3558 = vmatprep.subr.mxu0 0.0
    %3559 = vmatpush1.msra.mxu0 0.0
    %3560 = vmatprep.subr.mxu0 0.0
    %3561 = vmatpush1.msra.mxu0 0.0
    %3562 = vmatprep.subr.mxu0 0.0
    %3563 = vmatpush1.msra.mxu0 0.0
    %3564 = vmatprep.subr.mxu0 0.0
    %3565 = vmatpush1.msra.mxu0 0.0
    %3566 = vmatprep.subr.mxu0 0.0
    %3567 = vmatpush1.msra.mxu0 0.0
    %3568 = vmatprep.subr.mxu0 0.0
    %3569 = vmatpush1.msra.mxu0 0.0
    %3570 = vmatprep.subr.mxu0 0.0
    %3571 = vmatpush1.msra.mxu0 0.0
    %3572 = vmatprep.subr.mxu0 0.0
    %3573 = vmatpush1.msra.mxu0 0.0
    %3574 = vmatprep.subr.mxu0 0.0
    %3575 = vmatpush1.msra.mxu0 0.0
    %3576 = vmatprep.subr.mxu0 0.0
    %3577 = vmatpush1.msra.mxu0 0.0
    %3578 = vmatprep.subr.mxu0 0.0
    %3579 = vmatpush1.msra.mxu0 0.0
    %3580 = vmatprep.subr.mxu0 0.0
    %3581 = vmatpush1.msra.mxu0 0.0
    %3582 = vmatprep.subr.mxu0 0.0
    %3583 = vmatpush1.msra.mxu0 0.0
    %3584 = vmatprep.subr.mxu0 0.0
    %3585 = vmatpush1.msra.mxu0 0.0
    %3586 = vmatprep.subr.mxu0 0.0
    %3587 = vmatpush1.msra.mxu0 0.0
    %3588 = vmatprep.subr.mxu0 0.0
    %3589 = vmatpush1.msra.mxu0 0.0
    %3590 = vmatprep.subr.mxu0 0.0
    %3591 = vmatpush1.msra.mxu0 0.0
    %3592 = vmatprep.subr.mxu0 0.0
    %3593 = vmatpush1.msra.mxu0 0.0
    %3594 = vmatprep.subr.mxu0 0.0
    %3595 = vmatpush1.msra.mxu0 0.0
    %3596 = vmatprep.subr.mxu0 0.0
    %3597 = vmatpush1.msra.mxu0 0.0
    %3598 = vmatprep.subr.mxu0 0.0
    %3599 = vmatpush1.msra.mxu0 0.0
    %3600 = vmatprep.mubr.f32.mxu0 0.0
    %3601 = vmatmul.mubr.f32.gmra.mrb[0].mxu0 %v3495
    %v3602 = vpop.f32.mrb[0].mxu0
    %v3603 = vadd.f32 0.0, %v3602
    %v3604 = vpop.f32.mrb[0].mxu0
    %3605 = vmatprep.mubr.f32.mxu0 0.0
    %3606 = vmatmul.mubr.f32.gmra.mrb[0].mxu0 %v3498
    %v3607 = vpop.f32.mrb[0].mxu0
    %v3608 = vadd.f32 0.0, %v3607
    %v3609 = vpop.f32.mrb[0].mxu0
    %3610 = vmatprep.mubr.f32.mxu0 0.0
    %3611 = vmatmul.mubr.f32.gmra.mrb[0].mxu0 %v3501
    %v3612 = vpop.f32.mrb[0].mxu0
    %v3613 = vadd.f32 0.0, %v3612
    %v3614 = vpop.f32.mrb[0].mxu0
    %3615 = vmatprep.mubr.f32.mxu0 0.0
    %3616 = vmatmul.mubr.f32.gmra.mrb[0].mxu0 %v3504
    %v3617 = vpop.f32.mrb[0].mxu0
    %v3618 = vadd.f32 0.0, %v3617
    %v3619 = vpop.f32.mrb[0].mxu0
    %3620 = vmatprep.mubr.f32.mxu0 0.0
    %3621 = vmatmul.mubr.f32.gmra.mrb[0].mxu0 %v3507
    %v3622 = vpop.f32.mrb[0].mxu0
    %v3623 = vadd.f32 0.0, %v3622
    %v3624 = vpop.f32.mrb[0].mxu0
    %3625 = vmatprep.mubr.f32.mxu0 0.0
    %3626 = vmatmul.mubr.f32.gmra.mrb[0].mxu0 %v3510
    %v3627 = vpop.f32.mrb[0].mxu0
    %v3628 = vadd.f32 0.0, %v3627
    %v3629 = vpop.f32.mrb[0].mxu0
    %3630 = vmatprep.mubr.f32.mxu0 0.0
    %3631 = vmatmul.mubr.f32.gmra.mrb[0].mxu0 %v3513
    %v3632 = vpop.f32.mrb[0].mxu0
    %v3633 = vadd.f32 0.0, %v3632
    %v3634 = vpop.f32.mrb[0].mxu0
    %3635 = vmatprep.mubr.f32.mxu0 0.0
    %3636 = vmatmul.mubr.f32.gmra.mrb[0].mxu0 %v3516
    %v3637 = vpop.f32.mrb[0].mxu0
    %v3638 = vadd.f32 0.0, %v3637
    %v3639 = vpop.f32.mrb[0].mxu0
    %3640 = vmatprep.mubr.f32.mxu0 0.0
    %3641 = vmatmul.mubr.f32.gmra.mrb[0].mxu0 %v3519
    %v3642 = vpop.f32.mrb[0].mxu0
    %v3643 = vadd.f32 0.0, %v3642
    %v3644 = vpop.f32.mrb[0].mxu0
    %3645 = vmatprep.mubr.f32.mxu0 0.0
    %3646 = vmatmul.mubr.f32.gmra.mrb[0].mxu0 %v3522
    %v3647 = vpop.f32.mrb[0].mxu0
    %v3648 = vadd.f32 0.0, %v3647
    %v3649 = vpop.f32.mrb[0].mxu0
    %3650 = vmatprep.mubr.f32.mxu0 0.0
    %3651 = vmatmul.mubr.f32.gmra.mrb[0].mxu0 %v3525
    %v3652 = vpop.f32.mrb[0].mxu0
    %v3653 = vadd.f32 0.0, %v3652
    %v3654 = vpop.f32.mrb[0].mxu0
    %3655 = vmatprep.mubr.f32.mxu0 0.0
    %3656 = vmatmul.mubr.f32.gmra.mrb[0].mxu0 %v3528
    %v3657 = vpop.f32.mrb[0].mxu0
    %v3658 = vadd.f32 0.0, %v3657
    %v3659 = vpop.f32.mrb[0].mxu0
    %3660 = vmatprep.mubr.f32.mxu0 0.0
    %3661 = vmatmul.mubr.f32.gmra.mrb[0].mxu0 %v3531
    %v3662 = vpop.f32.mrb[0].mxu0
    %v3663 = vadd.f32 0.0, %v3662
    %v3664 = vpop.f32.mrb[0].mxu0
    %3665 = vdwg.mxu0
    %v3667 = vsel %vm3493, %v3364, 0
    %v3670 = vsel %vm3493, %v3365, 0
    %v3673 = vsel %vm3493, %v3366, 0
    %v3676 = vsel %vm3493, %v3367, 0
    %v3679 = vsel %vm3493, %v3368, 0
    %v3682 = vsel %vm3493, %v3369, 0
    %v3685 = vsel %vm3493, %v3370, 0
    %v3688 = vsel %vm3493, %v3371, 0
    %v3691 = vsel %vm3493, %v3372, 0
    %v3694 = vsel %vm3493, %v3373, 0
    %v3697 = vsel %vm3493, %v3374, 0
    %v3700 = vsel %vm3493, %v3375, 0
    %v3703 = vsel %vm3493, %v3376, 0
    %v3706 = vsel %vm3174, %v3361, 0
    %3708 = vmatprep.subr.mxu0 0.0
    %3709 = vmatpush1.msra.mxu0 %v3346
    %3710 = vmatprep.subr.mxu0 0.0
    %3711 = vmatpush1.msra.mxu0 %v3351
    %3712 = vmatprep.subr.mxu0 0.0
    %3713 = vmatpush1.msra.mxu0 %v3356
    %3714 = vmatprep.subr.mxu0 0.0
    %3715 = vmatpush1.msra.mxu0 %v3706
    %3716 = vmatprep.subr.mxu0 0.0
    %3717 = vmatpush1.msra.mxu0 0.0
    %3718 = vmatprep.subr.mxu0 0.0
    %3719 = vmatpush1.msra.mxu0 0.0
    %3720 = vmatprep.subr.mxu0 0.0
    %3721 = vmatpush1.msra.mxu0 0.0
    %3722 = vmatprep.subr.mxu0 0.0
    %3723 = vmatpush1.msra.mxu0 0.0
    %3724 = vmatprep.subr.mxu0 0.0
    %3725 = vmatpush1.msra.mxu0 0.0
    %3726 = vmatprep.subr.mxu0 0.0
    %3727 = vmatpush1.msra.mxu0 0.0
    %3728 = vmatprep.subr.mxu0 0.0
    %3729 = vmatpush1.msra.mxu0 0.0
    %3730 = vmatprep.subr.mxu0 0.0
    %3731 = vmatpush1.msra.mxu0 0.0
    %3732 = vmatprep.subr.mxu0 0.0
    %3733 = vmatpush1.msra.mxu0 0.0
    %3734 = vmatprep.subr.mxu0 0.0
    %3735 = vmatpush1.msra.mxu0 0.0
    %3736 = vmatprep.subr.mxu0 0.0
    %3737 = vmatpush1.msra.mxu0 0.0
    %3738 = vmatprep.subr.mxu0 0.0
    %3739 = vmatpush1.msra.mxu0 0.0
    %3740 = vmatprep.subr.mxu0 0.0
    %3741 = vmatpush1.msra.mxu0 0.0
    %3742 = vmatprep.subr.mxu0 0.0
    %3743 = vmatpush1.msra.mxu0 0.0
    %3744 = vmatprep.subr.mxu0 0.0
    %3745 = vmatpush1.msra.mxu0 0.0
    %3746 = vmatprep.subr.mxu0 0.0
    %3747 = vmatpush1.msra.mxu0 0.0
    %3748 = vmatprep.subr.mxu0 0.0
    %3749 = vmatpush1.msra.mxu0 0.0
    %3750 = vmatprep.subr.mxu0 0.0
    %3751 = vmatpush1.msra.mxu0 0.0
    %3752 = vmatprep.subr.mxu0 0.0
    %3753 = vmatpush1.msra.mxu0 0.0
    %3754 = vmatprep.subr.mxu0 0.0
    %3755 = vmatpush1.msra.mxu0 0.0
    %3756 = vmatprep.subr.mxu0 0.0
    %3757 = vmatpush1.msra.mxu0 0.0
    %3758 = vmatprep.subr.mxu0 0.0
    %3759 = vmatpush1.msra.mxu0 0.0
    %3760 = vmatprep.subr.mxu0 0.0
    %3761 = vmatpush1.msra.mxu0 0.0
    %3762 = vmatprep.subr.mxu0 0.0
    %3763 = vmatpush1.msra.mxu0 0.0
    %3764 = vmatprep.subr.mxu0 0.0
    %3765 = vmatpush1.msra.mxu0 0.0
    %3766 = vmatprep.subr.mxu0 0.0
    %3767 = vmatpush1.msra.mxu0 0.0
    %3768 = vmatprep.subr.mxu0 0.0
    %3769 = vmatpush1.msra.mxu0 0.0
    %3770 = vmatprep.subr.mxu0 0.0
    %3771 = vmatpush1.msra.mxu0 0.0
    %3772 = vmatprep.mubr.f32.mxu0 0.0
    %3773 = vmatmul.mubr.f32.gmra.mrb[0].mxu0 %v3667
    %v3774 = vpop.f32.mrb[0].mxu0
    %v3775 = vadd.f32 %v3603, %v3774
    %v3776 = vpop.f32.mrb[0].mxu0
    %3777 = vmatprep.mubr.f32.mxu0 0.0
    %3778 = vmatmul.mubr.f32.gmra.mrb[0].mxu0 %v3670
    %v3779 = vpop.f32.mrb[0].mxu0
    %v3780 = vadd.f32 %v3608, %v3779
    %v3781 = vpop.f32.mrb[0].mxu0
    %3782 = vmatprep.mubr.f32.mxu0 0.0
    %3783 = vmatmul.mubr.f32.gmra.mrb[0].mxu0 %v3673
    %v3784 = vpop.f32.mrb[0].mxu0
    %v3785 = vadd.f32 %v3613, %v3784
    %v3786 = vpop.f32.mrb[0].mxu0
    %3787 = vmatprep.mubr.f32.mxu0 0.0
    %3788 = vmatmul.mubr.f32.gmra.mrb[0].mxu0 %v3676
    %v3789 = vpop.f32.mrb[0].mxu0
    %v3790 = vadd.f32 %v3618, %v3789
    %v3791 = vpop.f32.mrb[0].mxu0
    %3792 = vmatprep.mubr.f32.mxu0 0.0
    %3793 = vmatmul.mubr.f32.gmra.mrb[0].mxu0 %v3679
    %v3794 = vpop.f32.mrb[0].mxu0
    %v3795 = vadd.f32 %v3623, %v3794
    %v3796 = vpop.f32.mrb[0].mxu0
    %3797 = vmatprep.mubr.f32.mxu0 0.0
    %3798 = vmatmul.mubr.f32.gmra.mrb[0].mxu0 %v3682
    %v3799 = vpop.f32.mrb[0].mxu0
    %v3800 = vadd.f32 %v3628, %v3799
    %v3801 = vpop.f32.mrb[0].mxu0
    %3802 = vmatprep.mubr.f32.mxu0 0.0
    %3803 = vmatmul.mubr.f32.gmra.mrb[0].mxu0 %v3685
    %v3804 = vpop.f32.mrb[0].mxu0
    %v3805 = vadd.f32 %v3633, %v3804
    %v3806 = vpop.f32.mrb[0].mxu0
    %3807 = vmatprep.mubr.f32.mxu0 0.0
    %3808 = vmatmul.mubr.f32.gmra.mrb[0].mxu0 %v3688
    %v3809 = vpop.f32.mrb[0].mxu0
    %v3810 = vadd.f32 %v3638, %v3809
    %v3811 = vpop.f32.mrb[0].mxu0
    %3812 = vmatprep.mubr.f32.mxu0 0.0
    %3813 = vmatmul.mubr.f32.gmra.mrb[0].mxu0 %v3691
    %v3814 = vpop.f32.mrb[0].mxu0
    %v3815 = vadd.f32 %v3643, %v3814
    %v3816 = vpop.f32.mrb[0].mxu0
    %3817 = vmatprep.mubr.f32.mxu0 0.0
    %3818 = vmatmul.mubr.f32.gmra.mrb[0].mxu0 %v3694
    %v3819 = vpop.f32.mrb[0].mxu0
    %v3820 = vadd.f32 %v3648, %v3819
    %v3821 = vpop.f32.mrb[0].mxu0
    %3822 = vmatprep.mubr.f32.mxu0 0.0
    %3823 = vmatmul.mubr.f32.gmra.mrb[0].mxu0 %v3697
    %v3824 = vpop.f32.mrb[0].mxu0
    %v3825 = vadd.f32 %v3653, %v3824
    %v3826 = vpop.f32.mrb[0].mxu0
    %3827 = vmatprep.mubr.f32.mxu0 0.0
    %3828 = vmatmul.mubr.f32.gmra.mrb[0].mxu0 %v3700
    %v3829 = vpop.f32.mrb[0].mxu0
    %v3830 = vadd.f32 %v3658, %v3829
    %v3831 = vpop.f32.mrb[0].mxu0
    %3832 = vmatprep.mubr.f32.mxu0 0.0
    %3833 = vmatmul.mubr.f32.gmra.mrb[0].mxu0 %v3703
    %v3834 = vpop.f32.mrb[0].mxu0
    %v3835 = vadd.f32 %v3663, %v3834
    %v3836 = vpop.f32.mrb[0].mxu0
    %3837 = vdwg.mxu0
    %s3838 = scalar_lea.vmem %s7, 256
    %v3839 = vld [vmem:[%s3838] sm:$0xff]
    %v3840 = vld [vmem:[%s3838 + $0x8] sm:$0xff]
    %v3841 = vld [vmem:[%s3838 + $0x10] sm:$0xff]
    %v3842 = vld [vmem:[%s3838 + $0x18] sm:$0xff]
    %v3843 = vld [vmem:[%s3838 + $0x20] sm:$0xff]
    %v3844 = vld [vmem:[%s3838 + $0x28] sm:$0xff]
    %v3845 = vld [vmem:[%s3838 + $0x30] sm:$0xff]
    %v3846 = vld [vmem:[%s3838 + $0x38] sm:$0xff]
    %v3847 = vld [vmem:[%s3838 + $0x40] sm:$0xff]
    %v3848 = vld [vmem:[%s3838 + $0x48] sm:$0xff]
    %v3849 = vld [vmem:[%s3838 + $0x50] sm:$0xff]
    %v3850 = vld [vmem:[%s3838 + $0x58] sm:$0xff]
    %v3851 = vld [vmem:[%s3838 + $0x60] sm:$0xff]
    %v3852 = vld [vmem:[%s3838 + $0x68] sm:$0xff]
    %v3853 = vld [vmem:[%s3838 + $0x70] sm:$0xff]
    %v3854 = vld [vmem:[%s3838 + $0x78] sm:$0xff]
    %3855 = vmatprep.subr.mxu0 0.0
    %3856 = vmatpush1.msra.mxu0 %v3839
    %3857 = vmatprep.subr.mxu0 0.0
    %3858 = vmatpush1.msra.mxu0 %v3840
    %3859 = vmatprep.subr.mxu0 0.0
    %3860 = vmatpush1.msra.mxu0 %v3841
    %3861 = vmatprep.subr.mxu0 0.0
    %3862 = vmatpush1.msra.mxu0 %v3842
    %3863 = vmatprep.subr.mxu0 0.0
    %3864 = vmatpush1.msra.mxu0 %v3843
    %3865 = vmatprep.subr.mxu0 0.0
    %3866 = vmatpush1.msra.mxu0 %v3844
    %3867 = vmatprep.subr.mxu0 0.0
    %3868 = vmatpush1.msra.mxu0 %v3845
    %3869 = vmatprep.subr.mxu0 0.0
    %3870 = vmatpush1.msra.mxu0 %v3846
    %3871 = vmatprep.subr.mxu0 0.0
    %3872 = vmatpush1.msra.mxu0 %v3847
    %3873 = vmatprep.subr.mxu0 0.0
    %3874 = vmatpush1.msra.mxu0 %v3848
    %3875 = vmatprep.subr.mxu0 0.0
    %3876 = vmatpush1.msra.mxu0 %v3849
    %3877 = vmatprep.subr.mxu0 0.0
    %3878 = vmatpush1.msra.mxu0 %v3850
    %3879 = vmatprep.subr.mxu0 0.0
    %3880 = vmatpush1.msra.mxu0 %v3851
    %3881 = vmatprep.subr.mxu0 0.0
    %3882 = vmatpush1.msra.mxu0 %v3852
    %3883 = vmatprep.subr.mxu0 0.0
    %3884 = vmatpush1.msra.mxu0 %v3853
    %3885 = vmatprep.subr.mxu0 0.0
    %3886 = vmatpush1.msra.mxu0 %v3854
    %3887 = vmatprep.subr.mxu0 0.0
    %3888 = vmatpush1.msra.mxu0 0.0
    %3889 = vmatprep.subr.mxu0 0.0
    %3890 = vmatpush1.msra.mxu0 0.0
    %3891 = vmatprep.subr.mxu0 0.0
    %3892 = vmatpush1.msra.mxu0 0.0
    %3893 = vmatprep.subr.mxu0 0.0
    %3894 = vmatpush1.msra.mxu0 0.0
    %3895 = vmatprep.subr.mxu0 0.0
    %3896 = vmatpush1.msra.mxu0 0.0
    %3897 = vmatprep.subr.mxu0 0.0
    %3898 = vmatpush1.msra.mxu0 0.0
    %3899 = vmatprep.subr.mxu0 0.0
    %3900 = vmatpush1.msra.mxu0 0.0
    %3901 = vmatprep.subr.mxu0 0.0
    %3902 = vmatpush1.msra.mxu0 0.0
    %3903 = vmatprep.subr.mxu0 0.0
    %3904 = vmatpush1.msra.mxu0 0.0
    %3905 = vmatprep.subr.mxu0 0.0
    %3906 = vmatpush1.msra.mxu0 0.0
    %3907 = vmatprep.subr.mxu0 0.0
    %3908 = vmatpush1.msra.mxu0 0.0
    %3909 = vmatprep.subr.mxu0 0.0
    %3910 = vmatpush1.msra.mxu0 0.0
    %3911 = vmatprep.subr.mxu0 0.0
    %3912 = vmatpush1.msra.mxu0 0.0
    %3913 = vmatprep.subr.mxu0 0.0
    %3914 = vmatpush1.msra.mxu0 0.0
    %3915 = vmatprep.subr.mxu0 0.0
    %3916 = vmatpush1.msra.mxu0 0.0
    %3917 = vmatprep.subr.mxu0 0.0
    %3918 = vmatpush1.msra.mxu0 0.0
    %3919 = vmatprep.mubr.f32.mxu0 0.0
    %3920 = vmatmul.mubr.f32.gmra.mrb[0].mxu0 %v3245
    %v3921 = vpop.f32.mrb[0].mxu0
    %v3922 = vadd.f32 0.0, %v3921
    %v3923 = vpop.f32.mrb[0].mxu0
    %3924 = vmatprep.mubr.f32.mxu0 0.0
    %3925 = vmatmul.mubr.f32.gmra.mrb[0].mxu0 %v3250
    %v3926 = vpop.f32.mrb[0].mxu0
    %v3927 = vadd.f32 0.0, %v3926
    %v3928 = vpop.f32.mrb[0].mxu0
    %3929 = vmatprep.mubr.f32.mxu0 0.0
    %3930 = vmatmul.mubr.f32.gmra.mrb[0].mxu0 %v3255
    %v3931 = vpop.f32.mrb[0].mxu0
    %v3932 = vadd.f32 0.0, %v3931
    %v3933 = vpop.f32.mrb[0].mxu0
    %3934 = vmatprep.mubr.f32.mxu0 0.0
    %3935 = vmatmul.mubr.f32.gmra.mrb[0].mxu0 %v3260
    %v3936 = vpop.f32.mrb[0].mxu0
    %v3937 = vadd.f32 0.0, %v3936
    %v3938 = vpop.f32.mrb[0].mxu0
    %3939 = vdwg.mxu0
    %s3940 = scalar_lea.vmem %s8, 208
    %v3941 = vld [vmem:[%s3940] sm:$0xff]
    %v3942 = vld [vmem:[%s3940 + $0x8] sm:$0xff]
    %v3943 = vld [vmem:[%s3940 + $0x10] sm:$0xff]
    %v3944 = vld [vmem:[%s3940 + $0x18] sm:$0xff]
    %v3945 = vld [vmem:[%s3940 + $0x20] sm:$0xff]
    %v3946 = vld [vmem:[%s3940 + $0x28] sm:$0xff]
    %v3947 = vld [vmem:[%s3940 + $0x30] sm:$0xff]
    %v3948 = vld [vmem:[%s3940 + $0x38] sm:$0xff]
    %v3949 = vld [vmem:[%s3940 + $0x40] sm:$0xff]
    %v3950 = vld [vmem:[%s3940 + $0x48] sm:$0xff]
    %v3951 = vld [vmem:[%s3940 + $0x50] sm:$0xff]
    %v3952 = vld [vmem:[%s3940 + $0x58] sm:$0xff]
    %v3953 = vld [vmem:[%s3940 + $0x60] sm:$0xf]
    %v3955 = vsel %vm3493, %v3941, 0
    %v3958 = vsel %vm3493, %v3942, 0
    %v3961 = vsel %vm3493, %v3943, 0
    %v3964 = vsel %vm3493, %v3944, 0
    %v3967 = vsel %vm3493, %v3945, 0
    %v3970 = vsel %vm3493, %v3946, 0
    %v3973 = vsel %vm3493, %v3947, 0
    %v3976 = vsel %vm3493, %v3948, 0
    %v3979 = vsel %vm3493, %v3949, 0
    %v3982 = vsel %vm3493, %v3950, 0
    %v3985 = vsel %vm3493, %v3951, 0
    %v3988 = vsel %vm3493, %v3952, 0
    %v3991 = vsel %vm3493, %v3953, 0
    %v3994 = vsel %vm3174, %v3937, 0
    %3996 = vmatprep.subr.mxu0 0.0
    %3997 = vmatpush1.msra.mxu0 %v3922
    %3998 = vmatprep.subr.mxu0 0.0
    %3999 = vmatpush1.msra.mxu0 %v3927
    %4000 = vmatprep.subr.mxu0 0.0
    %4001 = vmatpush1.msra.mxu0 %v3932
    %4002 = vmatprep.subr.mxu0 0.0
    %4003 = vmatpush1.msra.mxu0 %v3994
    %4004 = vmatprep.subr.mxu0 0.0
    %4005 = vmatpush1.msra.mxu0 0.0
    %4006 = vmatprep.subr.mxu0 0.0
    %4007 = vmatpush1.msra.mxu0 0.0
    %4008 = vmatprep.subr.mxu0 0.0
    %4009 = vmatpush1.msra.mxu0 0.0
    %4010 = vmatprep.subr.mxu0 0.0
    %4011 = vmatpush1.msra.mxu0 0.0
    %4012 = vmatprep.subr.mxu0 0.0
    %4013 = vmatpush1.msra.mxu0 0.0
    %4014 = vmatprep.subr.mxu0 0.0
    %4015 = vmatpush1.msra.mxu0 0.0
    %4016 = vmatprep.subr.mxu0 0.0
    %4017 = vmatpush1.msra.mxu0 0.0
    %4018 = vmatprep.subr.mxu0 0.0
    %4019 = vmatpush1.msra.mxu0 0.0
    %4020 = vmatprep.subr.mxu0 0.0
    %4021 = vmatpush1.msra.mxu0 0.0
    %4022 = vmatprep.subr.mxu0 0.0
    %4023 = vmatpush1.msra.mxu0 0.0
    %4024 = vmatprep.subr.mxu0 0.0
    %4025 = vmatpush1.msra.mxu0 0.0
    %4026 = vmatprep.subr.mxu0 0.0
    %4027 = vmatpush1.msra.mxu0 0.0
    %4028 = vmatprep.subr.mxu0 0.0
    %4029 = vmatpush1.msra.mxu0 0.0
    %4030 = vmatprep.subr.mxu0 0.0
    %4031 = vmatpush1.msra.mxu0 0.0
    %4032 = vmatprep.subr.mxu0 0.0
    %4033 = vmatpush1.msra.mxu0 0.0
    %4034 = vmatprep.subr.mxu0 0.0
    %4035 = vmatpush1.msra.mxu0 0.0
    %4036 = vmatprep.subr.mxu0 0.0
    %4037 = vmatpush1.msra.mxu0 0.0
    %4038 = vmatprep.subr.mxu0 0.0
    %4039 = vmatpush1.msra.mxu0 0.0
    %4040 = vmatprep.subr.mxu0 0.0
    %4041 = vmatpush1.msra.mxu0 0.0
    %4042 = vmatprep.subr.mxu0 0.0
    %4043 = vmatpush1.msra.mxu0 0.0
    %4044 = vmatprep.subr.mxu0 0.0
    %4045 = vmatpush1.msra.mxu0 0.0
    %4046 = vmatprep.subr.mxu0 0.0
    %4047 = vmatpush1.msra.mxu0 0.0
    %4048 = vmatprep.subr.mxu0 0.0
    %4049 = vmatpush1.msra.mxu0 0.0
    %4050 = vmatprep.subr.mxu0 0.0
    %4051 = vmatpush1.msra.mxu0 0.0
    %4052 = vmatprep.subr.mxu0 0.0
    %4053 = vmatpush1.msra.mxu0 0.0
    %4054 = vmatprep.subr.mxu0 0.0
    %4055 = vmatpush1.msra.mxu0 0.0
    %4056 = vmatprep.subr.mxu0 0.0
    %4057 = vmatpush1.msra.mxu0 0.0
    %4058 = vmatprep.subr.mxu0 0.0
    %4059 = vmatpush1.msra.mxu0 0.0
    %4060 = vmatprep.mubr.f32.mxu0 0.0
    %4061 = vmatmul.mubr.f32.gmra.mrb[0].mxu0 %v3955
    %v4062 = vpop.f32.mrb[0].mxu0
    %v4063 = vadd.f32 0.0, %v4062
    %v4064 = vpop.f32.mrb[0].mxu0
    %4065 = vmatprep.mubr.f32.mxu0 0.0
    %4066 = vmatmul.mubr.f32.gmra.mrb[0].mxu0 %v3958
    %v4067 = vpop.f32.mrb[0].mxu0
    %v4068 = vadd.f32 0.0, %v4067
    %v4069 = vpop.f32.mrb[0].mxu0
    %4070 = vmatprep.mubr.f32.mxu0 0.0
    %4071 = vmatmul.mubr.f32.gmra.mrb[0].mxu0 %v3961
    %v4072 = vpop.f32.mrb[0].mxu0
    %v4073 = vadd.f32 0.0, %v4072
    %v4074 = vpop.f32.mrb[0].mxu0
    %4075 = vmatprep.mubr.f32.mxu0 0.0
    %4076 = vmatmul.mubr.f32.gmra.mrb[0].mxu0 %v3964
    %v4077 = vpop.f32.mrb[0].mxu0
    %v4078 = vadd.f32 0.0, %v4077
    %v4079 = vpop.f32.mrb[0].mxu0
    %4080 = vmatprep.mubr.f32.mxu0 0.0
    %4081 = vmatmul.mubr.f32.gmra.mrb[0].mxu0 %v3967
    %v4082 = vpop.f32.mrb[0].mxu0
    %v4083 = vadd.f32 0.0, %v4082
    %v4084 = vpop.f32.mrb[0].mxu0
    %4085 = vmatprep.mubr.f32.mxu0 0.0
    %4086 = vmatmul.mubr.f32.gmra.mrb[0].mxu0 %v3970
    %v4087 = vpop.f32.mrb[0].mxu0
    %v4088 = vadd.f32 0.0, %v4087
    %v4089 = vpop.f32.mrb[0].mxu0
    %4090 = vmatprep.mubr.f32.mxu0 0.0
    %4091 = vmatmul.mubr.f32.gmra.mrb[0].mxu0 %v3973
    %v4092 = vpop.f32.mrb[0].mxu0
    %v4093 = vadd.f32 0.0, %v4092
    %v4094 = vpop.f32.mrb[0].mxu0
    %4095 = vmatprep.mubr.f32.mxu0 0.0
    %4096 = vmatmul.mubr.f32.gmra.mrb[0].mxu0 %v3976
    %v4097 = vpop.f32.mrb[0].mxu0
    %v4098 = vadd.f32 0.0, %v4097
    %v4099 = vpop.f32.mrb[0].mxu0
    %4100 = vmatprep.mubr.f32.mxu0 0.0
    %4101 = vmatmul.mubr.f32.gmra.mrb[0].mxu0 %v3979
    %v4102 = vpop.f32.mrb[0].mxu0
    %v4103 = vadd.f32 0.0, %v4102
    %v4104 = vpop.f32.mrb[0].mxu0
    %4105 = vmatprep.mubr.f32.mxu0 0.0
    %4106 = vmatmul.mubr.f32.gmra.mrb[0].mxu0 %v3982
    %v4107 = vpop.f32.mrb[0].mxu0
    %v4108 = vadd.f32 0.0, %v4107
    %v4109 = vpop.f32.mrb[0].mxu0
    %4110 = vmatprep.mubr.f32.mxu0 0.0
    %4111 = vmatmul.mubr.f32.gmra.mrb[0].mxu0 %v3985
    %v4112 = vpop.f32.mrb[0].mxu0
    %v4113 = vadd.f32 0.0, %v4112
    %v4114 = vpop.f32.mrb[0].mxu0
    %4115 = vmatprep.mubr.f32.mxu0 0.0
    %4116 = vmatmul.mubr.f32.gmra.mrb[0].mxu0 %v3988
    %v4117 = vpop.f32.mrb[0].mxu0
    %v4118 = vadd.f32 0.0, %v4117
    %v4119 = vpop.f32.mrb[0].mxu0
    %4120 = vmatprep.mubr.f32.mxu0 0.0
    %4121 = vmatmul.mubr.f32.gmra.mrb[0].mxu0 %v3991
    %v4122 = vpop.f32.mrb[0].mxu0
    %v4123 = vadd.f32 0.0, %v4122
    %v4124 = vpop.f32.mrb[0].mxu0
    %4125 = vdwg.mxu0
    %v4126 = vadd.f32 %v3775, %v4063
    %v4127 = vadd.f32 %v3780, %v4068
    %v4128 = vadd.f32 %v3785, %v4073
    %v4129 = vadd.f32 %v3790, %v4078
    %v4130 = vadd.f32 %v3795, %v4083
    %v4131 = vadd.f32 %v3800, %v4088
    %v4132 = vadd.f32 %v3805, %v4093
    %v4133 = vadd.f32 %v3810, %v4098
    %v4134 = vadd.f32 %v3815, %v4103
    %v4135 = vadd.f32 %v3820, %v4108
    %v4136 = vadd.f32 %v3825, %v4113
    %v4137 = vadd.f32 %v3830, %v4118
    %v4138 = vadd.f32 %v3835, %v4123
    %s4139 = scalar_lea.vmem %s7, 384
    %v4140 = vld [vmem:[%s4139] sm:$0xff]
    %v4141 = vld [vmem:[%s4139 + $0x8] sm:$0xff]
    %v4142 = vld [vmem:[%s4139 + $0x10] sm:$0xff]
    %v4143 = vld [vmem:[%s4139 + $0x18] sm:$0xff]
    %v4144 = vld [vmem:[%s4139 + $0x20] sm:$0xff]
    %v4145 = vld [vmem:[%s4139 + $0x28] sm:$0xff]
    %v4146 = vld [vmem:[%s4139 + $0x30] sm:$0xff]
    %v4147 = vld [vmem:[%s4139 + $0x38] sm:$0xff]
    %v4148 = vld [vmem:[%s4139 + $0x40] sm:$0xff]
    %v4149 = vld [vmem:[%s4139 + $0x48] sm:$0xff]
    %v4150 = vld [vmem:[%s4139 + $0x50] sm:$0xff]
    %v4151 = vld [vmem:[%s4139 + $0x58] sm:$0xff]
    %v4152 = vld [vmem:[%s4139 + $0x60] sm:$0xff]
    %v4153 = vld [vmem:[%s4139 + $0x68] sm:$0xff]
    %v4154 = vld [vmem:[%s4139 + $0x70] sm:$0xff]
    %v4155 = vld [vmem:[%s4139 + $0x78] sm:$0xff]
    %4156 = vmatprep.subr.mxu0 0.0
    %4157 = vmatpush1.msra.mxu0 %v4140
    %4158 = vmatprep.subr.mxu0 0.0
    %4159 = vmatpush1.msra.mxu0 %v4141
    %4160 = vmatprep.subr.mxu0 0.0
    %4161 = vmatpush1.msra.mxu0 %v4142
    %4162 = vmatprep.subr.mxu0 0.0
    %4163 = vmatpush1.msra.mxu0 %v4143
    %4164 = vmatprep.subr.mxu0 0.0
    %4165 = vmatpush1.msra.mxu0 %v4144
    %4166 = vmatprep.subr.mxu0 0.0
    %4167 = vmatpush1.msra.mxu0 %v4145
    %4168 = vmatprep.subr.mxu0 0.0
    %4169 = vmatpush1.msra.mxu0 %v4146
    %4170 = vmatprep.subr.mxu0 0.0
    %4171 = vmatpush1.msra.mxu0 %v4147
    %4172 = vmatprep.subr.mxu0 0.0
    %4173 = vmatpush1.msra.mxu0 %v4148
    %4174 = vmatprep.subr.mxu0 0.0
    %4175 = vmatpush1.msra.mxu0 %v4149
    %4176 = vmatprep.subr.mxu0 0.0
    %4177 = vmatpush1.msra.mxu0 %v4150
    %4178 = vmatprep.subr.mxu0 0.0
    %4179 = vmatpush1.msra.mxu0 %v4151
    %4180 = vmatprep.subr.mxu0 0.0
    %4181 = vmatpush1.msra.mxu0 %v4152
    %4182 = vmatprep.subr.mxu0 0.0
    %4183 = vmatpush1.msra.mxu0 %v4153
    %4184 = vmatprep.subr.mxu0 0.0
    %4185 = vmatpush1.msra.mxu0 %v4154
    %4186 = vmatprep.subr.mxu0 0.0
    %4187 = vmatpush1.msra.mxu0 %v4155
    %4188 = vmatprep.subr.mxu0 0.0
    %4189 = vmatpush1.msra.mxu0 0.0
    %4190 = vmatprep.subr.mxu0 0.0
    %4191 = vmatpush1.msra.mxu0 0.0
    %4192 = vmatprep.subr.mxu0 0.0
    %4193 = vmatpush1.msra.mxu0 0.0
    %4194 = vmatprep.subr.mxu0 0.0
    %4195 = vmatpush1.msra.mxu0 0.0
    %4196 = vmatprep.subr.mxu0 0.0
    %4197 = vmatpush1.msra.mxu0 0.0
    %4198 = vmatprep.subr.mxu0 0.0
    %4199 = vmatpush1.msra.mxu0 0.0
    %4200 = vmatprep.subr.mxu0 0.0
    %4201 = vmatpush1.msra.mxu0 0.0
    %4202 = vmatprep.subr.mxu0 0.0
    %4203 = vmatpush1.msra.mxu0 0.0
    %4204 = vmatprep.subr.mxu0 0.0
    %4205 = vmatpush1.msra.mxu0 0.0
    %4206 = vmatprep.subr.mxu0 0.0
    %4207 = vmatpush1.msra.mxu0 0.0
    %4208 = vmatprep.subr.mxu0 0.0
    %4209 = vmatpush1.msra.mxu0 0.0
    %4210 = vmatprep.subr.mxu0 0.0
    %4211 = vmatpush1.msra.mxu0 0.0
    %4212 = vmatprep.subr.mxu0 0.0
    %4213 = vmatpush1.msra.mxu0 0.0
    %4214 = vmatprep.subr.mxu0 0.0
    %4215 = vmatpush1.msra.mxu0 0.0
    %4216 = vmatprep.subr.mxu0 0.0
    %4217 = vmatpush1.msra.mxu0 0.0
    %4218 = vmatprep.subr.mxu0 0.0
    %4219 = vmatpush1.msra.mxu0 0.0
    %4220 = vmatprep.mubr.f32.mxu0 0.0
    %4221 = vmatmul.mubr.f32.gmra.mrb[0].mxu0 %v3245
    %v4222 = vpop.f32.mrb[0].mxu0
    %v4223 = vadd.f32 0.0, %v4222
    %v4224 = vpop.f32.mrb[0].mxu0
    %4225 = vmatprep.mubr.f32.mxu0 0.0
    %4226 = vmatmul.mubr.f32.gmra.mrb[0].mxu0 %v3250
    %v4227 = vpop.f32.mrb[0].mxu0
    %v4228 = vadd.f32 0.0, %v4227
    %v4229 = vpop.f32.mrb[0].mxu0
    %4230 = vmatprep.mubr.f32.mxu0 0.0
    %4231 = vmatmul.mubr.f32.gmra.mrb[0].mxu0 %v3255
    %v4232 = vpop.f32.mrb[0].mxu0
    %v4233 = vadd.f32 0.0, %v4232
    %v4234 = vpop.f32.mrb[0].mxu0
    %4235 = vmatprep.mubr.f32.mxu0 0.0
    %4236 = vmatmul.mubr.f32.gmra.mrb[0].mxu0 %v3260
    %v4237 = vpop.f32.mrb[0].mxu0
    %v4238 = vadd.f32 0.0, %v4237
    %v4239 = vpop.f32.mrb[0].mxu0
    %4240 = vdwg.mxu0
    %s4241 = scalar_lea.vmem %s8, 312
    %v4242 = vld [vmem:[%s4241] sm:$0xff]
    %v4243 = vld [vmem:[%s4241 + $0x8] sm:$0xff]
    %v4244 = vld [vmem:[%s4241 + $0x10] sm:$0xff]
    %v4245 = vld [vmem:[%s4241 + $0x18] sm:$0xff]
    %v4246 = vld [vmem:[%s4241 + $0x20] sm:$0xff]
    %v4247 = vld [vmem:[%s4241 + $0x28] sm:$0xff]
    %v4248 = vld [vmem:[%s4241 + $0x30] sm:$0xff]
    %v4249 = vld [vmem:[%s4241 + $0x38] sm:$0xff]
    %v4250 = vld [vmem:[%s4241 + $0x40] sm:$0xff]
    %v4251 = vld [vmem:[%s4241 + $0x48] sm:$0xff]
    %v4252 = vld [vmem:[%s4241 + $0x50] sm:$0xff]
    %v4253 = vld [vmem:[%s4241 + $0x58] sm:$0xff]
    %v4254 = vld [vmem:[%s4241 + $0x60] sm:$0xf]
    %v4256 = vsel %vm3493, %v4242, 0
    %v4259 = vsel %vm3493, %v4243, 0
    %v4262 = vsel %vm3493, %v4244, 0
    %v4265 = vsel %vm3493, %v4245, 0
    %v4268 = vsel %vm3493, %v4246, 0
    %v4271 = vsel %vm3493, %v4247, 0
    %v4274 = vsel %vm3493, %v4248, 0
    %v4277 = vsel %vm3493, %v4249, 0
    %v4280 = vsel %vm3493, %v4250, 0
    %v4283 = vsel %vm3493, %v4251, 0
    %v4286 = vsel %vm3493, %v4252, 0
    %v4289 = vsel %vm3493, %v4253, 0
    %v4292 = vsel %vm3493, %v4254, 0
    %v4295 = vsel %vm3174, %v4238, 0
    %4297 = vmatprep.subr.mxu0 0.0
    %4298 = vmatpush1.msra.mxu0 %v4223
    %4299 = vmatprep.subr.mxu0 0.0
    %4300 = vmatpush1.msra.mxu0 %v4228
    %4301 = vmatprep.subr.mxu0 0.0
    %4302 = vmatpush1.msra.mxu0 %v4233
    %4303 = vmatprep.subr.mxu0 0.0
    %4304 = vmatpush1.msra.mxu0 %v4295
    %4305 = vmatprep.subr.mxu0 0.0
    %4306 = vmatpush1.msra.mxu0 0.0
    %4307 = vmatprep.subr.mxu0 0.0
    %4308 = vmatpush1.msra.mxu0 0.0
    %4309 = vmatprep.subr.mxu0 0.0
    %4310 = vmatpush1.msra.mxu0 0.0
    %4311 = vmatprep.subr.mxu0 0.0
    %4312 = vmatpush1.msra.mxu0 0.0
    %4313 = vmatprep.subr.mxu0 0.0
    %4314 = vmatpush1.msra.mxu0 0.0
    %4315 = vmatprep.subr.mxu0 0.0
    %4316 = vmatpush1.msra.mxu0 0.0
    %4317 = vmatprep.subr.mxu0 0.0
    %4318 = vmatpush1.msra.mxu0 0.0
    %4319 = vmatprep.subr.mxu0 0.0
    %4320 = vmatpush1.msra.mxu0 0.0
    %4321 = vmatprep.subr.mxu0 0.0
    %4322 = vmatpush1.msra.mxu0 0.0
    %4323 = vmatprep.subr.mxu0 0.0
    %4324 = vmatpush1.msra.mxu0 0.0
    %4325 = vmatprep.subr.mxu0 0.0
    %4326 = vmatpush1.msra.mxu0 0.0
    %4327 = vmatprep.subr.mxu0 0.0
    %4328 = vmatpush1.msra.mxu0 0.0
    %4329 = vmatprep.subr.mxu0 0.0
    %4330 = vmatpush1.msra.mxu0 0.0
    %4331 = vmatprep.subr.mxu0 0.0
    %4332 = vmatpush1.msra.mxu0 0.0
    %4333 = vmatprep.subr.mxu0 0.0
    %4334 = vmatpush1.msra.mxu0 0.0
    %4335 = vmatprep.subr.mxu0 0.0
    %4336 = vmatpush1.msra.mxu0 0.0
    %4337 = vmatprep.subr.mxu0 0.0
    %4338 = vmatpush1.msra.mxu0 0.0
    %4339 = vmatprep.subr.mxu0 0.0
    %4340 = vmatpush1.msra.mxu0 0.0
    %4341 = vmatprep.subr.mxu0 0.0
    %4342 = vmatpush1.msra.mxu0 0.0
    %4343 = vmatprep.subr.mxu0 0.0
    %4344 = vmatpush1.msra.mxu0 0.0
    %4345 = vmatprep.subr.mxu0 0.0
    %4346 = vmatpush1.msra.mxu0 0.0
    %4347 = vmatprep.subr.mxu0 0.0
    %4348 = vmatpush1.msra.mxu0 0.0
    %4349 = vmatprep.subr.mxu0 0.0
    %4350 = vmatpush1.msra.mxu0 0.0
    %4351 = vmatprep.subr.mxu0 0.0
    %4352 = vmatpush1.msra.mxu0 0.0
    %4353 = vmatprep.subr.mxu0 0.0
    %4354 = vmatpush1.msra.mxu0 0.0
    %4355 = vmatprep.subr.mxu0 0.0
    %4356 = vmatpush1.msra.mxu0 0.0
    %4357 = vmatprep.subr.mxu0 0.0
    %4358 = vmatpush1.msra.mxu0 0.0
    %4359 = vmatprep.subr.mxu0 0.0
    %4360 = vmatpush1.msra.mxu0 0.0
    %4361 = vmatprep.mubr.f32.mxu0 0.0
    %4362 = vmatmul.mubr.f32.gmra.mrb[0].mxu0 %v4256
    %v4363 = vpop.f32.mrb[0].mxu0
    %v4364 = vadd.f32 0.0, %v4363
    %v4365 = vpop.f32.mrb[0].mxu0
    %4366 = vmatprep.mubr.f32.mxu0 0.0
    %4367 = vmatmul.mubr.f32.gmra.mrb[0].mxu0 %v4259
    %v4368 = vpop.f32.mrb[0].mxu0
    %v4369 = vadd.f32 0.0, %v4368
    %v4370 = vpop.f32.mrb[0].mxu0
    %4371 = vmatprep.mubr.f32.mxu0 0.0
    %4372 = vmatmul.mubr.f32.gmra.mrb[0].mxu0 %v4262
    %v4373 = vpop.f32.mrb[0].mxu0
    %v4374 = vadd.f32 0.0, %v4373
    %v4375 = vpop.f32.mrb[0].mxu0
    %4376 = vmatprep.mubr.f32.mxu0 0.0
    %4377 = vmatmul.mubr.f32.gmra.mrb[0].mxu0 %v4265
    %v4378 = vpop.f32.mrb[0].mxu0
    %v4379 = vadd.f32 0.0, %v4378
    %v4380 = vpop.f32.mrb[0].mxu0
    %4381 = vmatprep.mubr.f32.mxu0 0.0
    %4382 = vmatmul.mubr.f32.gmra.mrb[0].mxu0 %v4268
    %v4383 = vpop.f32.mrb[0].mxu0
    %v4384 = vadd.f32 0.0, %v4383
    %v4385 = vpop.f32.mrb[0].mxu0
    %4386 = vmatprep.mubr.f32.mxu0 0.0
    %4387 = vmatmul.mubr.f32.gmra.mrb[0].mxu0 %v4271
    %v4388 = vpop.f32.mrb[0].mxu0
    %v4389 = vadd.f32 0.0, %v4388
    %v4390 = vpop.f32.mrb[0].mxu0
    %4391 = vmatprep.mubr.f32.mxu0 0.0
    %4392 = vmatmul.mubr.f32.gmra.mrb[0].mxu0 %v4274
    %v4393 = vpop.f32.mrb[0].mxu0
    %v4394 = vadd.f32 0.0, %v4393
    %v4395 = vpop.f32.mrb[0].mxu0
    %4396 = vmatprep.mubr.f32.mxu0 0.0
    %4397 = vmatmul.mubr.f32.gmra.mrb[0].mxu0 %v4277
    %v4398 = vpop.f32.mrb[0].mxu0
    %v4399 = vadd.f32 0.0, %v4398
    %v4400 = vpop.f32.mrb[0].mxu0
    %4401 = vmatprep.mubr.f32.mxu0 0.0
    %4402 = vmatmul.mubr.f32.gmra.mrb[0].mxu0 %v4280
    %v4403 = vpop.f32.mrb[0].mxu0
    %v4404 = vadd.f32 0.0, %v4403
    %v4405 = vpop.f32.mrb[0].mxu0
    %4406 = vmatprep.mubr.f32.mxu0 0.0
    %4407 = vmatmul.mubr.f32.gmra.mrb[0].mxu0 %v4283
    %v4408 = vpop.f32.mrb[0].mxu0
    %v4409 = vadd.f32 0.0, %v4408
    %v4410 = vpop.f32.mrb[0].mxu0
    %4411 = vmatprep.mubr.f32.mxu0 0.0
    %4412 = vmatmul.mubr.f32.gmra.mrb[0].mxu0 %v4286
    %v4413 = vpop.f32.mrb[0].mxu0
    %v4414 = vadd.f32 0.0, %v4413
    %v4415 = vpop.f32.mrb[0].mxu0
    %4416 = vmatprep.mubr.f32.mxu0 0.0
    %4417 = vmatmul.mubr.f32.gmra.mrb[0].mxu0 %v4289
    %v4418 = vpop.f32.mrb[0].mxu0
    %v4419 = vadd.f32 0.0, %v4418
    %v4420 = vpop.f32.mrb[0].mxu0
    %4421 = vmatprep.mubr.f32.mxu0 0.0
    %4422 = vmatmul.mubr.f32.gmra.mrb[0].mxu0 %v4292
    %v4423 = vpop.f32.mrb[0].mxu0
    %v4424 = vadd.f32 0.0, %v4423
    %v4425 = vpop.f32.mrb[0].mxu0
    %4426 = vdwg.mxu0
    %v4427 = vadd.f32 %v4126, %v4364
    %v4428 = vadd.f32 %v4127, %v4369
    %v4429 = vadd.f32 %v4128, %v4374
    %v4430 = vadd.f32 %v4129, %v4379
    %v4431 = vadd.f32 %v4130, %v4384
    %v4432 = vadd.f32 %v4131, %v4389
    %v4433 = vadd.f32 %v4132, %v4394
    %v4434 = vadd.f32 %v4133, %v4399
    %v4435 = vadd.f32 %v4134, %v4404
    %v4436 = vadd.f32 %v4135, %v4409
    %v4437 = vadd.f32 %v4136, %v4414
    %v4438 = vadd.f32 %v4137, %v4419
    %v4439 = vadd.f32 %v4138, %v4424
    %v4440 = vld [vmem:[%s9] sm:$0xff]
    %v4441 = vld [vmem:[%s9 + $0x8] sm:$0xff]
    %v4442 = vld [vmem:[%s9 + $0x10] sm:$0xff]
    %v4443 = vld [vmem:[%s9 + $0x18] sm:$0xff]
    %v4444 = vld [vmem:[%s9 + $0x20] sm:$0xff]
    %v4445 = vld [vmem:[%s9 + $0x28] sm:$0xff]
    %v4446 = vld [vmem:[%s9 + $0x30] sm:$0xff]
    %v4447 = vld [vmem:[%s9 + $0x38] sm:$0xff]
    %v4448 = vld [vmem:[%s9 + $0x40] sm:$0xff]
    %v4449 = vld [vmem:[%s9 + $0x48] sm:$0xff]
    %v4450 = vld [vmem:[%s9 + $0x50] sm:$0xff]
    %v4451 = vld [vmem:[%s9 + $0x58] sm:$0xff]
    %v4452 = vld [vmem:[%s9 + $0x60] sm:$0xf]
    %4454 = vset.pattern.permute.xlu0 0
    %4455 = vperm.xlu0 %4454, %v4440
    %v4456 = vpop.permute.xlu0 %4455
    %4459 = vset.pattern.permute.xlu0 0
    %4460 = vperm.xlu0 %4459, %v4441
    %v4461 = vpop.permute.xlu0 %4460
    %4464 = vset.pattern.permute.xlu0 0
    %4465 = vperm.xlu0 %4464, %v4442
    %v4466 = vpop.permute.xlu0 %4465
    %4469 = vset.pattern.permute.xlu0 0
    %4470 = vperm.xlu0 %4469, %v4443
    %v4471 = vpop.permute.xlu0 %4470
    %4474 = vset.pattern.permute.xlu0 0
    %4475 = vperm.xlu0 %4474, %v4444
    %v4476 = vpop.permute.xlu0 %4475
    %4479 = vset.pattern.permute.xlu0 0
    %4480 = vperm.xlu0 %4479, %v4445
    %v4481 = vpop.permute.xlu0 %4480
    %4484 = vset.pattern.permute.xlu0 0
    %4485 = vperm.xlu0 %4484, %v4446
    %v4486 = vpop.permute.xlu0 %4485
    %4489 = vset.pattern.permute.xlu0 0
    %4490 = vperm.xlu0 %4489, %v4447
    %v4491 = vpop.permute.xlu0 %4490
    %4494 = vset.pattern.permute.xlu0 0
    %4495 = vperm.xlu0 %4494, %v4448
    %v4496 = vpop.permute.xlu0 %4495
    %4499 = vset.pattern.permute.xlu0 0
    %4500 = vperm.xlu0 %4499, %v4449
    %v4501 = vpop.permute.xlu0 %4500
    %4504 = vset.pattern.permute.xlu0 0
    %4505 = vperm.xlu0 %4504, %v4450
    %v4506 = vpop.permute.xlu0 %4505
    %4509 = vset.pattern.permute.xlu0 0
    %4510 = vperm.xlu0 %4509, %v4451
    %v4511 = vpop.permute.xlu0 %4510
    %4514 = vset.pattern.permute.xlu0 0
    %4515 = vperm.xlu0 %4514, %v4452
    %v4516 = vpop.permute.xlu0 %4515
    %v4518 = vadd.f32 %v4427, %v4456
    %v4519 = vadd.f32 %v4428, %v4461
    %v4520 = vadd.f32 %v4429, %v4466
    %v4521 = vadd.f32 %v4430, %v4471
    %v4522 = vadd.f32 %v4431, %v4476
    %v4523 = vadd.f32 %v4432, %v4481
    %v4524 = vadd.f32 %v4433, %v4486
    %v4525 = vadd.f32 %v4434, %v4491
    %v4526 = vadd.f32 %v4435, %v4496
    %v4527 = vadd.f32 %v4436, %v4501
    %v4528 = vadd.f32 %v4437, %v4506
    %v4529 = vadd.f32 %v4438, %v4511
    %v4530 = vadd.f32 %v4439, %v4516
    %v4531 = vtanh.pop %v4518
    %v4532 = vtanh.pop %v4519
    %v4533 = vtanh.pop %v4520
    %v4534 = vtanh.pop %v4521
    %v4535 = vtanh.pop %v4522
    %v4536 = vtanh.pop %v4523
    %v4537 = vtanh.pop %v4524
    %v4538 = vtanh.pop %v4525
    %v4539 = vtanh.pop %v4526
    %v4540 = vtanh.pop %v4527
    %v4541 = vtanh.pop %v4528
    %v4542 = vtanh.pop %v4529
    %v4543 = vtanh.pop %v4530
    %v4544 = vld [vmem:[%s10] sm:$0xff]
    %v4545 = vld [vmem:[%s11] sm:$0xff]
    %4547 = vset.pattern.permute.xlu0 0
    %4548 = vperm.xlu0 %4547, %v4545
    %v4549 = vpop.permute.xlu0 %4548
    %vm4551 = vcmask 818176
    %v4553 = vsel %vm4551, %v4544, 0
    %vm4555 = vcmask 1043456
    %v4557 = vsel %vm4555, %v4543, 0
    %4559 = vmatprep.subr.mxu0 0.0
    %4560 = vmatpush1.msra.mxu0 %v4531
    %4561 = vmatprep.subr.mxu0 0.0
    %4562 = vmatpush1.msra.mxu0 %v4532
    %4563 = vmatprep.subr.mxu0 0.0
    %4564 = vmatpush1.msra.mxu0 %v4533
    %4565 = vmatprep.subr.mxu0 0.0
    %4566 = vmatpush1.msra.mxu0 %v4534
    %4567 = vmatprep.subr.mxu0 0.0
    %4568 = vmatpush1.msra.mxu0 %v4535
    %4569 = vmatprep.subr.mxu0 0.0
    %4570 = vmatpush1.msra.mxu0 %v4536
    %4571 = vmatprep.subr.mxu0 0.0
    %4572 = vmatpush1.msra.mxu0 %v4537
    %4573 = vmatprep.subr.mxu0 0.0
    %4574 = vmatpush1.msra.mxu0 %v4538
    %4575 = vmatprep.subr.mxu0 0.0
    %4576 = vmatpush1.msra.mxu0 %v4539
    %4577 = vmatprep.subr.mxu0 0.0
    %4578 = vmatpush1.msra.mxu0 %v4540
    %4579 = vmatprep.subr.mxu0 0.0
    %4580 = vmatpush1.msra.mxu0 %v4541
    %4581 = vmatprep.subr.mxu0 0.0
    %4582 = vmatpush1.msra.mxu0 %v4542
    %4583 = vmatprep.subr.mxu0 0.0
    %4584 = vmatpush1.msra.mxu0 %v4557
    %4585 = vmatprep.subr.mxu0 0.0
    %4586 = vmatpush1.msra.mxu0 0.0
    %4587 = vmatprep.subr.mxu0 0.0
    %4588 = vmatpush1.msra.mxu0 0.0
    %4589 = vmatprep.subr.mxu0 0.0
    %4590 = vmatpush1.msra.mxu0 0.0
    %4591 = vmatprep.subr.mxu0 0.0
    %4592 = vmatpush1.msra.mxu0 0.0
    %4593 = vmatprep.subr.mxu0 0.0
    %4594 = vmatpush1.msra.mxu0 0.0
    %4595 = vmatprep.subr.mxu0 0.0
    %4596 = vmatpush1.msra.mxu0 0.0
    %4597 = vmatprep.subr.mxu0 0.0
    %4598 = vmatpush1.msra.mxu0 0.0
    %4599 = vmatprep.subr.mxu0 0.0
    %4600 = vmatpush1.msra.mxu0 0.0
    %4601 = vmatprep.subr.mxu0 0.0
    %4602 = vmatpush1.msra.mxu0 0.0
    %4603 = vmatprep.subr.mxu0 0.0
    %4604 = vmatpush1.msra.mxu0 0.0
    %4605 = vmatprep.subr.mxu0 0.0
    %4606 = vmatpush1.msra.mxu0 0.0
    %4607 = vmatprep.subr.mxu0 0.0
    %4608 = vmatpush1.msra.mxu0 0.0
    %4609 = vmatprep.subr.mxu0 0.0
    %4610 = vmatpush1.msra.mxu0 0.0
    %4611 = vmatprep.subr.mxu0 0.0
    %4612 = vmatpush1.msra.mxu0 0.0
    %4613 = vmatprep.subr.mxu0 0.0
    %4614 = vmatpush1.msra.mxu0 0.0
    %4615 = vmatprep.subr.mxu0 0.0
    %4616 = vmatpush1.msra.mxu0 0.0
    %4617 = vmatprep.subr.mxu0 0.0
    %4618 = vmatpush1.msra.mxu0 0.0
    %4619 = vmatprep.subr.mxu0 0.0
    %4620 = vmatpush1.msra.mxu0 0.0
    %4621 = vmatprep.subr.mxu0 0.0
    %4622 = vmatpush1.msra.mxu0 0.0
    %4623 = vmatprep.mubr.f32.mxu0 0.0
    %4624 = vmatmul.mubr.f32.gmra.mrb[0].mxu0 %v4553
    %v4625 = vpop.f32.mrb[0].mxu0
    %v4626 = vadd.f32 %v4549, %v4625
    %v4627 = vpop.f32.mrb[0].mxu0
    %4628 = vdwg.mxu0
    %4629 = vst [vmem:[%s12] sm:$0xff] %v4626
    // Predicated region
    $region54: #{forward.1} parent=1 // pred_check
      _
    $region55: #{forward.1} parent=1 // pred_check_branch
      %4631 = sbr.rel (0) target = $region57
    $region56: #{forward.1} parent=1 // pred_region
      _
    $region57: #{forward.1} parent=1 // pred_fallthru
      _
    // Predicated region
    $region58: #{forward.1} parent=1 // pred_check
      _
    $region59: #{forward.1} parent=1 // pred_check_branch
      %4633 = sbr.rel (0) target = $region61
    $region60: #{forward.1} parent=1 // pred_region
      _
    $region61: #{forward.1} parent=1 // pred_fallthru
      _
    %4634 = vsyncpa [#allocation5], 1

</llo_original>
